<compile_context>
chip_gen: v5e
topology: v5e:2x2
jax: 0.10.0
libtpu: 0.0.40
codegen_flags: <defaults>
</compile_context>

<pallas_src>
import functools

import jax
import jax.numpy as jnp
import numpy as np
from jax import lax
from jax.experimental import pallas as pl
from jax.experimental.pallas import tpu as pltpu


# ----------------------------- pass 1: conv + partial BN stats -----------------------------

def _conv_stats_kernel(x_ref, w_ref, y_ref, stats_ref, acc_ref, *,
                       TH, W_pad, W_out, KH, KW, dilation):
    """One (batch, row-tile) block.

    x_ref:     (R_tile, Cin) f32   flattened (rows * W_pad) padded activation slab + halo
    w_ref:     (KH*KW, Cin, Cp) bf16
    y_ref:     (TM, Cp)  f32       un-normalized conv output, TM = TH*W_pad (lane-dense)
    stats_ref: (2, Cp)   f32       per-tile (sum, sum-of-squares) over valid pixels
    acc_ref:   (TM, Cp)  f32       VMEM scratch accumulator
    """
    TM = TH * W_pad
    acc_ref[...] = jnp.zeros_like(acc_ref)
    # Static loop over the 9 taps; each tap is a flat row-offset of the same 2D slab,
    # so no strided slice + reshape copies.  bf16 x bf16 -> f32 accumulate on the MXU.
    for kh in range(KH):
        for kw in range(KW):
            off = (kh * W_pad + kw) * dilation                      # static Python int
            lhs = x_ref[off:off + TM, :].astype(jnp.bfloat16)       # (TM, Cin)
            acc_ref[...] += jnp.dot(lhs, w_ref[kh * KW + kw],
                                    preferred_element_type=jnp.float32)

    acc = acc_ref[...]
    # Flattened columns w >= W_out are wrap-around garbage (sliced off in the wrapper);
    # mask them out of the BatchNorm statistics.
    col = lax.broadcasted_iota(jnp.int32, (TM, 1), 0) % W_pad
    valid = (col < W_out).astype(jnp.float32)
    acc_masked = acc * valid
    stats_ref[0:1, :] = jnp.sum(acc_masked, axis=0, keepdims=True)          # sum
    stats_ref[1:2, :] = jnp.sum(acc_masked * acc, axis=0, keepdims=True)    # sum of squares
    y_ref[...] = acc


# ----------------------------- pass 2: BN affine + ReLU -----------------------------------

def _bn_relu_kernel(y_ref, scale_ref, shift_ref, o_ref):
    # y: (TM, Cp), scale/shift: (1, Cp)  ->  lane-dense store of max(y*scale + shift, 0).
    o_ref[...] = jnp.maximum(y_ref[...] * scale_ref[...] + shift_ref[...], 0.0)


# ----------------------------- wrapper -----------------------------------------------------

def _pick_row_tile(h_out, target):
    for th in range(min(target, h_out), 0, -1):
        if h_out % th == 0:
            return th
    return h_out


def conv_bn_relu(x_nchw, weight_oihw, gamma, beta, *, kernel_size=3, dilation=1,
                 eps=1e-5, row_tile=8):
    """NCHW in / NCHW out, matching PyTorch ConvBNReLU.forward (training-mode BN)."""
    N, Cin, H, W = x_nchw.shape
    Cout = weight_oihw.shape[0]
    KH = KW = kernel_size
    pad = kernel_size // 2 if dilation == 1 else dilation
    H_out = H + 2 * pad - dilation * (KH - 1)
    W_out = W + 2 * pad - dilation * (KW - 1)
    H_pad, W_pad = H + 2 * pad, W + 2 * pad
    Cp = ((Cout + 127) // 128) * 128          # lane-dense padded output channel count

    TH = _pick_row_tile(H_out, row_tile)      # output rows per tile (divides H_out)
    T = H_out // TH
    TM = TH * W_pad                           # flattened output rows per tile
    extra = (KW - 1) * dilation               # flat overhang of the last tap
    R_tile = (TH + (KH - 1) * dilation) * W_pad + extra   # input rows per tile (with halo)

    # --- layout prep: NCHW -> padded NHWC -> flattened, halo'd row tiles ---
    x = jnp.transpose(x_nchw, (0, 2, 3, 1)).astype(jnp.float32)           # (N,H,W,Cin)
    x = jnp.pad(x, ((0, 0), (pad, pad), (pad, pad), (0, 0)))              # (N,H_pad,W_pad,Cin)
    x_flat = x.reshape(N, H_pad * W_pad, Cin)
    x_flat = jnp.pad(x_flat, ((0, 0), (0, extra), (0, 0)))
    x_tiles = jnp.stack(
        [lax.slice_in_dim(x_flat, t * TH * W_pad, t * TH * W_pad + R_tile, axis=1)
         for t in range(T)], axis=1)                                      # (N,T,R_tile,Cin)

    # weight (Cout,Cin,KH,KW) -> (KH*KW, Cin, Cp) bf16, zero-padded output channels
    w = jnp.transpose(weight_oihw.astype(jnp.float32), (2, 3, 1, 0))      # (KH,KW,Cin,Cout)
    w = w.reshape(KH * KW, Cin, Cout)
    w = jnp.pad(w, ((0, 0), (0, 0), (0, Cp - Cout))).astype(jnp.bfloat16)

    kernel1 = functools.partial(_conv_stats_kernel, TH=TH, W_pad=W_pad, W_out=W_out,
                                KH=KH, KW=KW, dilation=dilation)

    y_tiles, stats = pl.pallas_call(
        kernel1,
        out_shape=(jax.ShapeDtypeStruct((N, T, TM, Cp), jnp.float32),
                   jax.ShapeDtypeStruct((N, T, 2, Cp), jnp.float32)),
        grid_spec=pltpu.PrefetchScalarGridSpec(
            num_scalar_prefetch=0,
            grid=(N, T),
            in_specs=[
                pl.BlockSpec((None, None, R_tile, Cin), lambda n, t: (n, t, 0, 0)),
                pl.BlockSpec((KH * KW, Cin, Cp), lambda n, t: (0, 0, 0)),
            ],
            out_specs=[
                pl.BlockSpec((None, None, TM, Cp), lambda n, t: (n, t, 0, 0)),
                pl.BlockSpec((None, None, 2, Cp), lambda n, t: (n, t, 0, 0)),
            ],
            scratch_shapes=[pltpu.VMEM((TM, Cp), jnp.float32)]),
        compiler_params=pltpu.CompilerParams(
            dimension_semantics=("parallel", "arbitrary"),
            vmem_limit_bytes=32 * 1024 * 1024),
    )(x_tiles, w)

    # --- tiny global BN reduction (training-mode batch stats, biased variance) ---
    tot = jnp.sum(stats, axis=(0, 1))                         # (2, Cp)
    count = float(N * H_out * W_out)
    mean = tot[0] / count
    var = jnp.maximum(tot[1] / count - mean * mean, 0.0)
    inv_std = lax.rsqrt(var + eps)
    gamma_p = jnp.pad(gamma.astype(jnp.float32), (0, Cp - Cout))
    beta_p = jnp.pad(beta.astype(jnp.float32), (0, Cp - Cout))
    scale_f = gamma_p * inv_std
    shift_f = beta_p - mean * scale_f
    scale = scale_f.reshape(1, Cp)
    shift = shift_f.reshape(1, Cp)

    out_tiles = pl.pallas_call(
        _bn_relu_kernel,
        out_shape=jax.ShapeDtypeStruct((N, T, TM, Cp), jnp.float32),
        grid_spec=pltpu.PrefetchScalarGridSpec(
            num_scalar_prefetch=0,
            grid=(N, T),
            in_specs=[
                pl.BlockSpec((None, None, TM, Cp), lambda n, t: (n, t, 0, 0)),
                pl.BlockSpec((1, Cp), lambda n, t: (0, 0)),
                pl.BlockSpec((1, Cp), lambda n, t: (0, 0)),
            ],
            out_specs=pl.BlockSpec((None, None, TM, Cp), lambda n, t: (n, t, 0, 0))),
        compiler_params=pltpu.CompilerParams(
            dimension_semantics=("parallel", "parallel"),
            vmem_limit_bytes=32 * 1024 * 1024),
    )(y_tiles, scale, shift)

    # --- strip the lane/column padding and return to NCHW ---
    out = out_tiles.reshape(N, T, TH, W_pad, Cp)[:, :, :, :W_out, :Cout]
    out = out.reshape(N, H_out, W_out, Cout)
    return jnp.transpose(out, (0, 3, 1, 2))


# ----------------------------- pure-JAX reference ------------------------------------------

def reference_conv_bn_relu(x_nchw, weight_oihw, gamma, beta, *,
                           kernel_size=3, dilation=1, eps=1e-5):
    """Reproduces PyTorch ConvBNReLU.forward (training-mode BN, biased variance)."""
    pad = kernel_size // 2 if dilation == 1 else dilation
    y = lax.conv_general_dilated(
        x_nchw.astype(jnp.float32), weight_oihw.astype(jnp.float32),
        window_strides=(1, 1), padding=[(pad, pad), (pad, pad)],
        rhs_dilation=(dilation, dilation),
        dimension_numbers=('NCHW', 'OIHW', 'NCHW'),
        precision=lax.Precision.HIGHEST)
    mean = jnp.mean(y, axis=(0, 2, 3), keepdims=True)
    var = jnp.mean((y - mean) ** 2, axis=(0, 2, 3), keepdims=True)
    yhat = (y - mean) / jnp.sqrt(var + eps)
    yhat = yhat * gamma.reshape(1, -1, 1, 1) + beta.reshape(1, -1, 1, 1)
    return jnp.maximum(yhat, 0.0)


if __name__ == "__main__":
    key = jax.random.PRNGKey(0)
    k_x, k_w, k_g, k_b = jax.random.split(key, 4)

    N, Cin, H, W = 2, 4, 16, 16
    Cout, K, dil = 8, 3, 1

    x = jax.random.normal(k_x, (N, Cin, H, W), dtype=jnp.float32)
    weight = jax.random.normal(k_w, (Cout, Cin, K, K), dtype=jnp.float32) * 0.1
    gamma = 1.0 + 0.1 * jax.random.normal(k_g, (Cout,), dtype=jnp.float32)
    beta = 0.1 * jax.random.normal(k_b, (Cout,), dtype=jnp.float32)

    fused = jax.jit(functools.partial(conv_bn_relu, kernel_size=K, dilation=dil))
    out = jax.block_until_ready(fused(x, weight, gamma, beta))

    ref = jax.block_until_ready(
        reference_conv_bn_relu(x, weight, gamma, beta, kernel_size=K, dilation=dil))

    assert out.shape == (N, Cout, H, W), out.shape
    # bf16 MXU operands (f32 accumulation) vs the f32 HIGHEST reference -> looser tolerance.
    np.testing.assert_allclose(np.asarray(out), np.asarray(ref), rtol=2e-2, atol=2e-2)

    print("KERNEL_OK")
</pallas_src>

<mosaic_0001>
module attributes {stable_mosaic.version = 11 : i64} {
  func.func @_conv_stats_kernel(%arg0: i32, %arg1: i32, %arg2: memref<1x1x182x4xf32, #tpu.memory_space<vmem>>, %arg3: memref<9x4x128xbf16, #tpu.memory_space<vmem>>, %arg4: memref<1x1x144x128xf32, #tpu.memory_space<vmem>>, %arg5: memref<1x1x2x128xf32, #tpu.memory_space<vmem>>, %arg6: memref<144x128xf32, #tpu.memory_space<vmem>>) attributes {dimension_semantics = [#tpu.dimension_semantics<parallel>, #tpu.dimension_semantics<arbitrary>], iteration_bounds = array<i64: 2, 2>, scalar_prefetch = 0 : i64, scratch_operands = 1 : i64, tpu.core_type = #tpu.core_type<tc>, window_params = [{transform_indices = @transform_0, window_bounds = array<i64: 1, 1, 182, 4>}, {pipeline_mode = #tpu.pipeline_mode<synchronous>, transform_indices = @transform_1, window_bounds = array<i64: 9, 4, 128>}, {transform_indices = @transform_2, window_bounds = array<i64: 1, 1, 144, 128>}, {transform_indices = @transform_3, window_bounds = array<i64: 1, 1, 2, 128>}]} {
    %cst = arith.constant 0.000000e+00 : f32
    %0 = vector.broadcast %cst : f32 to vector<144x128xf32>
    %c0 = arith.constant 0 : index
    %c0_0 = arith.constant 0 : index
    %1 = vector.load %arg6[%c0, %c0_0] : memref<144x128xf32, #tpu.memory_space<vmem>>, vector<144x128xf32>
    tpu.vector_store %arg6[%c0, %c0_0], %0 {strides = array<i32>} : memref<144x128xf32, #tpu.memory_space<vmem>>, vector<144x128xf32>,
    %c0_1 = arith.constant 0 : index
    %c0_2 = arith.constant 0 : index
    %c0_3 = arith.constant 0 : index
    %c0_4 = arith.constant 0 : index
    %2 = vector.load %arg2[%c0_1, %c0_2, %c0_3, %c0_4] : memref<1x1x182x4xf32, #tpu.memory_space<vmem>>, vector<1x1x144x4xf32>
    %3 = vector.shape_cast %2 : vector<1x1x144x4xf32> to vector<144x4xf32>
    %4 = arith.truncf %3 : vector<144x4xf32> to vector<144x4xbf16>
    %c0_5 = arith.constant 0 : index
    %c0_6 = arith.constant 0 : index
    %5 = vector.load %arg6[%c0_5, %c0_6] : memref<144x128xf32, #tpu.memory_space<vmem>>, vector<144x128xf32>
    %c0_7 = arith.constant 0 : index
    %c0_8 = arith.constant 0 : index
    %c0_9 = arith.constant 0 : index
    %6 = vector.load %arg3[%c0_7, %c0_8, %c0_9] : memref<9x4x128xbf16, #tpu.memory_space<vmem>>, vector<1x4x128xbf16>
    %7 = vector.shape_cast %6 : vector<1x4x128xbf16> to vector<4x128xbf16>
    %cst_10 = arith.constant dense<0.000000e+00> : vector<144x128xf32>
    %8 = tpu.matmul %4, %7, %cst_10 {dimension_numbers = #tpu.dot_dimension_numbers<[1], [0], [0], [1], [0, 0, 1, 1], [], []>} : vector<144x4xbf16>, vector<4x128xbf16>, vector<144x128xf32> -> vector<144x128xf32>
    %9 = arith.addf %5, %8 : vector<144x128xf32>
    %c0_11 = arith.constant 0 : index
    %c0_12 = arith.constant 0 : index
    %10 = vector.load %arg6[%c0_11, %c0_12] : memref<144x128xf32, #tpu.memory_space<vmem>>, vector<144x128xf32>
    tpu.vector_store %arg6[%c0_11, %c0_12], %9 {strides = array<i32>} : memref<144x128xf32, #tpu.memory_space<vmem>>, vector<144x128xf32>,
    %c0_13 = arith.constant 0 : index
    %c0_14 = arith.constant 0 : index
    %c1 = arith.constant 1 : index
    %c0_15 = arith.constant 0 : index
    %11 = vector.load %arg2[%c0_13, %c0_14, %c1, %c0_15] : memref<1x1x182x4xf32, #tpu.memory_space<vmem>>, vector<1x1x144x4xf32>
    %12 = vector.shape_cast %11 : vector<1x1x144x4xf32> to vector<144x4xf32>
    %13 = arith.truncf %12 : vector<144x4xf32> to vector<144x4xbf16>
    %c0_16 = arith.constant 0 : index
    %c0_17 = arith.constant 0 : index
    %14 = vector.load %arg6[%c0_16, %c0_17] : memref<144x128xf32, #tpu.memory_space<vmem>>, vector<144x128xf32>
    %c1_18 = arith.constant 1 : index
    %c0_19 = arith.constant 0 : index
    %c0_20 = arith.constant 0 : index
    %15 = vector.load %arg3[%c1_18, %c0_19, %c0_20] : memref<9x4x128xbf16, #tpu.memory_space<vmem>>, vector<1x4x128xbf16>
    %16 = vector.shape_cast %15 : vector<1x4x128xbf16> to vector<4x128xbf16>
    %cst_21 = arith.constant dense<0.000000e+00> : vector<144x128xf32>
    %17 = tpu.matmul %13, %16, %cst_21 {dimension_numbers = #tpu.dot_dimension_numbers<[1], [0], [0], [1], [0, 0, 1, 1], [], []>} : vector<144x4xbf16>, vector<4x128xbf16>, vector<144x128xf32> -> vector<144x128xf32>
    %18 = arith.addf %14, %17 : vector<144x128xf32>
    %c0_22 = arith.constant 0 : index
    %c0_23 = arith.constant 0 : index
    %19 = vector.load %arg6[%c0_22, %c0_23] : memref<144x128xf32, #tpu.memory_space<vmem>>, vector<144x128xf32>
    tpu.vector_store %arg6[%c0_22, %c0_23], %18 {strides = array<i32>} : memref<144x128xf32, #tpu.memory_space<vmem>>, vector<144x128xf32>,
    %c0_24 = arith.constant 0 : index
    %c0_25 = arith.constant 0 : index
    %c2 = arith.constant 2 : index
    %c0_26 = arith.constant 0 : index
    %20 = vector.load %arg2[%c0_24, %c0_25, %c2, %c0_26] : memref<1x1x182x4xf32, #tpu.memory_space<vmem>>, vector<1x1x144x4xf32>
    %21 = vector.shape_cast %20 : vector<1x1x144x4xf32> to vector<144x4xf32>
    %22 = arith.truncf %21 : vector<144x4xf32> to vector<144x4xbf16>
    %c0_27 = arith.constant 0 : index
    %c0_28 = arith.constant 0 : index
    %23 = vector.load %arg6[%c0_27, %c0_28] : memref<144x128xf32, #tpu.memory_space<vmem>>, vector<144x128xf32>
    %c2_29 = arith.constant 2 : index
    %c0_30 = arith.constant 0 : index
    %c0_31 = arith.constant 0 : index
    %24 = vector.load %arg3[%c2_29, %c0_30, %c0_31] : memref<9x4x128xbf16, #tpu.memory_space<vmem>>, vector<1x4x128xbf16>
    %25 = vector.shape_cast %24 : vector<1x4x128xbf16> to vector<4x128xbf16>
    %cst_32 = arith.constant dense<0.000000e+00> : vector<144x128xf32>
    %26 = tpu.matmul %22, %25, %cst_32 {dimension_numbers = #tpu.dot_dimension_numbers<[1], [0], [0], [1], [0, 0, 1, 1], [], []>} : vector<144x4xbf16>, vector<4x128xbf16>, vector<144x128xf32> -> vector<144x128xf32>
    %27 = arith.addf %23, %26 : vector<144x128xf32>
    %c0_33 = arith.constant 0 : index
    %c0_34 = arith.constant 0 : index
    %28 = vector.load %arg6[%c0_33, %c0_34] : memref<144x128xf32, #tpu.memory_space<vmem>>, vector<144x128xf32>
    tpu.vector_store %arg6[%c0_33, %c0_34], %27 {strides = array<i32>} : memref<144x128xf32, #tpu.memory_space<vmem>>, vector<144x128xf32>,
    %c0_35 = arith.constant 0 : index
    %c0_36 = arith.constant 0 : index
    %c18 = arith.constant 18 : index
    %c0_37 = arith.constant 0 : index
    %29 = vector.load %arg2[%c0_35, %c0_36, %c18, %c0_37] : memref<1x1x182x4xf32, #tpu.memory_space<vmem>>, vector<1x1x144x4xf32>
    %30 = vector.shape_cast %29 : vector<1x1x144x4xf32> to vector<144x4xf32>
    %31 = arith.truncf %30 : vector<144x4xf32> to vector<144x4xbf16>
    %c0_38 = arith.constant 0 : index
    %c0_39 = arith.constant 0 : index
    %32 = vector.load %arg6[%c0_38, %c0_39] : memref<144x128xf32, #tpu.memory_space<vmem>>, vector<144x128xf32>
    %c3 = arith.constant 3 : index
    %c0_40 = arith.constant 0 : index
    %c0_41 = arith.constant 0 : index
    %33 = vector.load %arg3[%c3, %c0_40, %c0_41] : memref<9x4x128xbf16, #tpu.memory_space<vmem>>, vector<1x4x128xbf16>
    %34 = vector.shape_cast %33 : vector<1x4x128xbf16> to vector<4x128xbf16>
    %cst_42 = arith.constant dense<0.000000e+00> : vector<144x128xf32>
    %35 = tpu.matmul %31, %34, %cst_42 {dimension_numbers = #tpu.dot_dimension_numbers<[1], [0], [0], [1], [0, 0, 1, 1], [], []>} : vector<144x4xbf16>, vector<4x128xbf16>, vector<144x128xf32> -> vector<144x128xf32>
    %36 = arith.addf %32, %35 : vector<144x128xf32>
    %c0_43 = arith.constant 0 : index
    %c0_44 = arith.constant 0 : index
    %37 = vector.load %arg6[%c0_43, %c0_44] : memref<144x128xf32, #tpu.memory_space<vmem>>, vector<144x128xf32>
    tpu.vector_store %arg6[%c0_43, %c0_44], %36 {strides = array<i32>} : memref<144x128xf32, #tpu.memory_space<vmem>>, vector<144x128xf32>,
    %c0_45 = arith.constant 0 : index
    %c0_46 = arith.constant 0 : index
    %c19 = arith.constant 19 : index
    %c0_47 = arith.constant 0 : index
    %38 = vector.load %arg2[%c0_45, %c0_46, %c19, %c0_47] : memref<1x1x182x4xf32, #tpu.memory_space<vmem>>, vector<1x1x144x4xf32>
    %39 = vector.shape_cast %38 : vector<1x1x144x4xf32> to vector<144x4xf32>
    %40 = arith.truncf %39 : vector<144x4xf32> to vector<144x4xbf16>
    %c0_48 = arith.constant 0 : index
    %c0_49 = arith.constant 0 : index
    %41 = vector.load %arg6[%c0_48, %c0_49] : memref<144x128xf32, #tpu.memory_space<vmem>>, vector<144x128xf32>
    %c4 = arith.constant 4 : index
    %c0_50 = arith.constant 0 : index
    %c0_51 = arith.constant 0 : index
    %42 = vector.load %arg3[%c4, %c0_50, %c0_51] : memref<9x4x128xbf16, #tpu.memory_space<vmem>>, vector<1x4x128xbf16>
    %43 = vector.shape_cast %42 : vector<1x4x128xbf16> to vector<4x128xbf16>
    %cst_52 = arith.constant dense<0.000000e+00> : vector<144x128xf32>
    %44 = tpu.matmul %40, %43, %cst_52 {dimension_numbers = #tpu.dot_dimension_numbers<[1], [0], [0], [1], [0, 0, 1, 1], [], []>} : vector<144x4xbf16>, vector<4x128xbf16>, vector<144x128xf32> -> vector<144x128xf32>
    %45 = arith.addf %41, %44 : vector<144x128xf32>
    %c0_53 = arith.constant 0 : index
    %c0_54 = arith.constant 0 : index
    %46 = vector.load %arg6[%c0_53, %c0_54] : memref<144x128xf32, #tpu.memory_space<vmem>>, vector<144x128xf32>
    tpu.vector_store %arg6[%c0_53, %c0_54], %45 {strides = array<i32>} : memref<144x128xf32, #tpu.memory_space<vmem>>, vector<144x128xf32>,
    %c0_55 = arith.constant 0 : index
    %c0_56 = arith.constant 0 : index
    %c20 = arith.constant 20 : index
    %c0_57 = arith.constant 0 : index
    %47 = vector.load %arg2[%c0_55, %c0_56, %c20, %c0_57] : memref<1x1x182x4xf32, #tpu.memory_space<vmem>>, vector<1x1x144x4xf32>
    %48 = vector.shape_cast %47 : vector<1x1x144x4xf32> to vector<144x4xf32>
    %49 = arith.truncf %48 : vector<144x4xf32> to vector<144x4xbf16>
    %c0_58 = arith.constant 0 : index
    %c0_59 = arith.constant 0 : index
    %50 = vector.load %arg6[%c0_58, %c0_59] : memref<144x128xf32, #tpu.memory_space<vmem>>, vector<144x128xf32>
    %c5 = arith.constant 5 : index
    %c0_60 = arith.constant 0 : index
    %c0_61 = arith.constant 0 : index
    %51 = vector.load %arg3[%c5, %c0_60, %c0_61] : memref<9x4x128xbf16, #tpu.memory_space<vmem>>, vector<1x4x128xbf16>
    %52 = vector.shape_cast %51 : vector<1x4x128xbf16> to vector<4x128xbf16>
    %cst_62 = arith.constant dense<0.000000e+00> : vector<144x128xf32>
    %53 = tpu.matmul %49, %52, %cst_62 {dimension_numbers = #tpu.dot_dimension_numbers<[1], [0], [0], [1], [0, 0, 1, 1], [], []>} : vector<144x4xbf16>, vector<4x128xbf16>, vector<144x128xf32> -> vector<144x128xf32>
    %54 = arith.addf %50, %53 : vector<144x128xf32>
    %c0_63 = arith.constant 0 : index
    %c0_64 = arith.constant 0 : index
    %55 = vector.load %arg6[%c0_63, %c0_64] : memref<144x128xf32, #tpu.memory_space<vmem>>, vector<144x128xf32>
    tpu.vector_store %arg6[%c0_63, %c0_64], %54 {strides = array<i32>} : memref<144x128xf32, #tpu.memory_space<vmem>>, vector<144x128xf32>,
    %c0_65 = arith.constant 0 : index
    %c0_66 = arith.constant 0 : index
    %c36 = arith.constant 36 : index
    %c0_67 = arith.constant 0 : index
    %56 = vector.load %arg2[%c0_65, %c0_66, %c36, %c0_67] : memref<1x1x182x4xf32, #tpu.memory_space<vmem>>, vector<1x1x144x4xf32>
    %57 = vector.shape_cast %56 : vector<1x1x144x4xf32> to vector<144x4xf32>
    %58 = arith.truncf %57 : vector<144x4xf32> to vector<144x4xbf16>
    %c0_68 = arith.constant 0 : index
    %c0_69 = arith.constant 0 : index
    %59 = vector.load %arg6[%c0_68, %c0_69] : memref<144x128xf32, #tpu.memory_space<vmem>>, vector<144x128xf32>
    %c6 = arith.constant 6 : index
    %c0_70 = arith.constant 0 : index
    %c0_71 = arith.constant 0 : index
    %60 = vector.load %arg3[%c6, %c0_70, %c0_71] : memref<9x4x128xbf16, #tpu.memory_space<vmem>>, vector<1x4x128xbf16>
    %61 = vector.shape_cast %60 : vector<1x4x128xbf16> to vector<4x128xbf16>
    %cst_72 = arith.constant dense<0.000000e+00> : vector<144x128xf32>
    %62 = tpu.matmul %58, %61, %cst_72 {dimension_numbers = #tpu.dot_dimension_numbers<[1], [0], [0], [1], [0, 0, 1, 1], [], []>} : vector<144x4xbf16>, vector<4x128xbf16>, vector<144x128xf32> -> vector<144x128xf32>
    %63 = arith.addf %59, %62 : vector<144x128xf32>
    %c0_73 = arith.constant 0 : index
    %c0_74 = arith.constant 0 : index
    %64 = vector.load %arg6[%c0_73, %c0_74] : memref<144x128xf32, #tpu.memory_space<vmem>>, vector<144x128xf32>
    tpu.vector_store %arg6[%c0_73, %c0_74], %63 {strides = array<i32>} : memref<144x128xf32, #tpu.memory_space<vmem>>, vector<144x128xf32>,
    %c0_75 = arith.constant 0 : index
    %c0_76 = arith.constant 0 : index
    %c37 = arith.constant 37 : index
    %c0_77 = arith.constant 0 : index
    %65 = vector.load %arg2[%c0_75, %c0_76, %c37, %c0_77] : memref<1x1x182x4xf32, #tpu.memory_space<vmem>>, vector<1x1x144x4xf32>
    %66 = vector.shape_cast %65 : vector<1x1x144x4xf32> to vector<144x4xf32>
    %67 = arith.truncf %66 : vector<144x4xf32> to vector<144x4xbf16>
    %c0_78 = arith.constant 0 : index
    %c0_79 = arith.constant 0 : index
    %68 = vector.load %arg6[%c0_78, %c0_79] : memref<144x128xf32, #tpu.memory_space<vmem>>, vector<144x128xf32>
    %c7 = arith.constant 7 : index
    %c0_80 = arith.constant 0 : index
    %c0_81 = arith.constant 0 : index
    %69 = vector.load %arg3[%c7, %c0_80, %c0_81] : memref<9x4x128xbf16, #tpu.memory_space<vmem>>, vector<1x4x128xbf16>
    %70 = vector.shape_cast %69 : vector<1x4x128xbf16> to vector<4x128xbf16>
    %cst_82 = arith.constant dense<0.000000e+00> : vector<144x128xf32>
    %71 = tpu.matmul %67, %70, %cst_82 {dimension_numbers = #tpu.dot_dimension_numbers<[1], [0], [0], [1], [0, 0, 1, 1], [], []>} : vector<144x4xbf16>, vector<4x128xbf16>, vector<144x128xf32> -> vector<144x128xf32>
    %72 = arith.addf %68, %71 : vector<144x128xf32>
    %c0_83 = arith.constant 0 : index
    %c0_84 = arith.constant 0 : index
    %73 = vector.load %arg6[%c0_83, %c0_84] : memref<144x128xf32, #tpu.memory_space<vmem>>, vector<144x128xf32>
    tpu.vector_store %arg6[%c0_83, %c0_84], %72 {strides = array<i32>} : memref<144x128xf32, #tpu.memory_space<vmem>>, vector<144x128xf32>,
    %c0_85 = arith.constant 0 : index
    %c0_86 = arith.constant 0 : index
    %c38 = arith.constant 38 : index
    %c0_87 = arith.constant 0 : index
    %74 = vector.load %arg2[%c0_85, %c0_86, %c38, %c0_87] : memref<1x1x182x4xf32, #tpu.memory_space<vmem>>, vector<1x1x144x4xf32>
    %75 = vector.shape_cast %74 : vector<1x1x144x4xf32> to vector<144x4xf32>
    %76 = arith.truncf %75 : vector<144x4xf32> to vector<144x4xbf16>
    %c0_88 = arith.constant 0 : index
    %c0_89 = arith.constant 0 : index
    %77 = vector.load %arg6[%c0_88, %c0_89] : memref<144x128xf32, #tpu.memory_space<vmem>>, vector<144x128xf32>
    %c8 = arith.constant 8 : index
    %c0_90 = arith.constant 0 : index
    %c0_91 = arith.constant 0 : index
    %78 = vector.load %arg3[%c8, %c0_90, %c0_91] : memref<9x4x128xbf16, #tpu.memory_space<vmem>>, vector<1x4x128xbf16>
    %79 = vector.shape_cast %78 : vector<1x4x128xbf16> to vector<4x128xbf16>
    %cst_92 = arith.constant dense<0.000000e+00> : vector<144x128xf32>
    %80 = tpu.matmul %76, %79, %cst_92 {dimension_numbers = #tpu.dot_dimension_numbers<[1], [0], [0], [1], [0, 0, 1, 1], [], []>} : vector<144x4xbf16>, vector<4x128xbf16>, vector<144x128xf32> -> vector<144x128xf32>
    %81 = arith.addf %77, %80 : vector<144x128xf32>
    %c0_93 = arith.constant 0 : index
    %c0_94 = arith.constant 0 : index
    %82 = vector.load %arg6[%c0_93, %c0_94] : memref<144x128xf32, #tpu.memory_space<vmem>>, vector<144x128xf32>
    tpu.vector_store %arg6[%c0_93, %c0_94], %81 {strides = array<i32>} : memref<144x128xf32, #tpu.memory_space<vmem>>, vector<144x128xf32>,
    %c0_95 = arith.constant 0 : index
    %c0_96 = arith.constant 0 : index
    %83 = vector.load %arg6[%c0_95, %c0_96] : memref<144x128xf32, #tpu.memory_space<vmem>>, vector<144x128xf32>
    %84 = tpu.iota {dimensions = array<i32: 0>} : vector<144x1xi32>
    %c18_i32 = arith.constant 18 : i32
    %c0_i32 = arith.constant 0 : i32
    %85 = arith.cmpi eq, %c18_i32, %c0_i32 : i32
    %c1_i32 = arith.constant 1 : i32
    %86 = arith.select %85, %c1_i32, %c18_i32 : i32
    %87 = vector.broadcast %86 : i32 to vector<144x1xi32>
    %88 = arith.remsi %84, %87 : vector<144x1xi32>
    %c0_i32_97 = arith.constant 0 : i32
    %89 = vector.broadcast %c0_i32_97 : i32 to vector<144x1xi32>
    %90 = arith.cmpi ne, %88, %89 : vector<144x1xi32>
    %c0_i32_98 = arith.constant 0 : i32
    %91 = vector.broadcast %c0_i32_98 : i32 to vector<144x1xi32>
    %92 = arith.cmpi slt, %88, %91 : vector<144x1xi32>
    %c0_i32_99 = arith.constant 0 : i32
    %93 = arith.cmpi slt, %86, %c0_i32_99 : i32
    %94 = vector.broadcast %93 : i1 to vector<144x1xi1>
    %95 = vector.broadcast %94 : vector<144x1xi1> to vector<144x1xi1>
    %96 = arith.xori %92, %95 : vector<144x1xi1>
    %97 = arith.andi %96, %90 : vector<144x1xi1>
    %98 = vector.broadcast %86 : i32 to vector<144x1xi32>
    %99 = arith.addi %88, %98 : vector<144x1xi32>
    %100 = arith.select %97, %99, %88 : vector<144x1xi1>, vector<144x1xi32>
    %c16_i32 = arith.constant 16 : i32
    %101 = vector.broadcast %c16_i32 : i32 to vector<144x1xi32>
    %102 = arith.cmpi slt, %100, %101 : vector<144x1xi32>
    %103 = arith.extui %102 : vector<144x1xi1> to vector<144x1xi32>
    %104 = arith.sitofp %103 : vector<144x1xi32> to vector<144x1xf32>
    %105 = vector.broadcast %104 : vector<144x1xf32> to vector<144x128xf32>
    %106 = arith.mulf %83, %105 : vector<144x128xf32>
    %cst_100 = arith.constant dense<0.000000e+00> : vector<128xf32>
    %107 = vector.multi_reduction <add>, %106, %cst_100 [0] : vector<144x128xf32> to vector<128xf32>
    %108 = vector.shape_cast %107 : vector<128xf32> to vector<1x128xf32>
    %c0_101 = arith.constant 0 : index
    %c0_102 = arith.constant 0 : index
    %c0_103 = arith.constant 0 : index
    %c0_104 = arith.constant 0 : index
    %109 = vector.load %arg5[%c0_101, %c0_102, %c0_103, %c0_104] : memref<1x1x2x128xf32, #tpu.memory_space<vmem>>, vector<1x1x1x128xf32>
    %110 = vector.shape_cast %109 : vector<1x1x1x128xf32> to vector<1x128xf32>
    %111 = vector.shape_cast %108 : vector<1x128xf32> to vector<1x1x1x128xf32>
    tpu.vector_store %arg5[%c0_101, %c0_102, %c0_103, %c0_104], %111 {strides = array<i32>} : memref<1x1x2x128xf32, #tpu.memory_space<vmem>>, vector<1x1x1x128xf32>,
    %112 = arith.mulf %106, %83 : vector<144x128xf32>
    %cst_105 = arith.constant dense<0.000000e+00> : vector<128xf32>
    %113 = vector.multi_reduction <add>, %112, %cst_105 [0] : vector<144x128xf32> to vector<128xf32>
    %114 = vector.shape_cast %113 : vector<128xf32> to vector<1x128xf32>
    %c0_106 = arith.constant 0 : index
    %c0_107 = arith.constant 0 : index
    %c1_108 = arith.constant 1 : index
    %c0_109 = arith.constant 0 : index
    %115 = vector.load %arg5[%c0_106, %c0_107, %c1_108, %c0_109] : memref<1x1x2x128xf32, #tpu.memory_space<vmem>>, vector<1x1x1x128xf32>
    %116 = vector.shape_cast %115 : vector<1x1x1x128xf32> to vector<1x128xf32>
    %117 = vector.shape_cast %114 : vector<1x128xf32> to vector<1x1x1x128xf32>
    tpu.vector_store %arg5[%c0_106, %c0_107, %c1_108, %c0_109], %117 {strides = array<i32>} : memref<1x1x2x128xf32, #tpu.memory_space<vmem>>, vector<1x1x1x128xf32>,
    %c0_110 = arith.constant 0 : index
    %c0_111 = arith.constant 0 : index
    %c0_112 = arith.constant 0 : index
    %c0_113 = arith.constant 0 : index
    %118 = vector.load %arg4[%c0_110, %c0_111, %c0_112, %c0_113] : memref<1x1x144x128xf32, #tpu.memory_space<vmem>>, vector<1x1x144x128xf32>
    %119 = vector.shape_cast %118 : vector<1x1x144x128xf32> to vector<144x128xf32>
    %120 = vector.shape_cast %83 : vector<144x128xf32> to vector<1x1x144x128xf32>
    tpu.vector_store %arg4[%c0_110, %c0_111, %c0_112, %c0_113], %120 {strides = array<i32>} : memref<1x1x144x128xf32, #tpu.memory_space<vmem>>, vector<1x1x144x128xf32>,
    return
  }
  func.func @transform_0(%arg0: i32, %arg1: i32) -> (i32, i32, i32, i32) {
    %c0_i32 = arith.constant 0 : i32
    %c0_i32_0 = arith.constant 0 : i32
    %c0_i32_1 = arith.constant 0 : i32
    return %arg0, %arg1, %c0_i32, %c0_i32_0 : i32, i32, i32, i32
  }
  func.func @transform_1(%arg0: i32, %arg1: i32) -> (i32, i32, i32) {
    %c0_i32 = arith.constant 0 : i32
    %c0_i32_0 = arith.constant 0 : i32
    %c0_i32_1 = arith.constant 0 : i32
    %c0_i32_2 = arith.constant 0 : i32
    return %c0_i32, %c0_i32_0, %c0_i32_1 : i32, i32, i32
  }
  func.func @transform_2(%arg0: i32, %arg1: i32) -> (i32, i32, i32, i32) {
    %c0_i32 = arith.constant 0 : i32
    %c0_i32_0 = arith.constant 0 : i32
    %c0_i32_1 = arith.constant 0 : i32
    return %arg0, %arg1, %c0_i32, %c0_i32_0 : i32, i32, i32, i32
  }
  func.func @transform_3(%arg0: i32, %arg1: i32) -> (i32, i32, i32, i32) {
    %c0_i32 = arith.constant 0 : i32
    %c0_i32_0 = arith.constant 0 : i32
    %c0_i32_1 = arith.constant 0 : i32
    return %arg0, %arg1, %c0_i32, %c0_i32_0 : i32, i32, i32, i32
  }
}

module attributes {stable_mosaic.version = 11 : i64} {
  func.func @_bn_relu_kernel(%arg0: i32, %arg1: i32, %arg2: memref<1x1x144x128xf32, #tpu.memory_space<vmem>>, %arg3: memref<1x128xf32, #tpu.memory_space<vmem>>, %arg4: memref<1x128xf32, #tpu.memory_space<vmem>>, %arg5: memref<1x1x144x128xf32, #tpu.memory_space<vmem>>) attributes {dimension_semantics = [#tpu.dimension_semantics<parallel>, #tpu.dimension_semantics<parallel>], iteration_bounds = array<i64: 2, 2>, scalar_prefetch = 0 : i64, scratch_operands = 0 : i64, tpu.core_type = #tpu.core_type<tc>, window_params = [{transform_indices = @transform_0, window_bounds = array<i64: 1, 1, 144, 128>}, {pipeline_mode = #tpu.pipeline_mode<synchronous>, transform_indices = @transform_1, window_bounds = array<i64: 1, 128>}, {pipeline_mode = #tpu.pipeline_mode<synchronous>, transform_indices = @transform_2, window_bounds = array<i64: 1, 128>}, {transform_indices = @transform_3, window_bounds = array<i64: 1, 1, 144, 128>}]} {
    %c0 = arith.constant 0 : index
    %c0_0 = arith.constant 0 : index
    %c0_1 = arith.constant 0 : index
    %c0_2 = arith.constant 0 : index
    %0 = vector.load %arg2[%c0, %c0_0, %c0_1, %c0_2] : memref<1x1x144x128xf32, #tpu.memory_space<vmem>>, vector<1x1x144x128xf32>
    %1 = vector.shape_cast %0 : vector<1x1x144x128xf32> to vector<144x128xf32>
    %c0_3 = arith.constant 0 : index
    %c0_4 = arith.constant 0 : index
    %2 = vector.load %arg3[%c0_3, %c0_4] : memref<1x128xf32, #tpu.memory_space<vmem>>, vector<1x128xf32>
    %3 = vector.broadcast %2 : vector<1x128xf32> to vector<144x128xf32>
    %4 = arith.mulf %1, %3 : vector<144x128xf32>
    %c0_5 = arith.constant 0 : index
    %c0_6 = arith.constant 0 : index
    %5 = vector.load %arg4[%c0_5, %c0_6] : memref<1x128xf32, #tpu.memory_space<vmem>>, vector<1x128xf32>
    %6 = vector.broadcast %5 : vector<1x128xf32> to vector<144x128xf32>
    %7 = arith.addf %4, %6 : vector<144x128xf32>
    %cst = arith.constant 0.000000e+00 : f32
    %8 = vector.broadcast %cst : f32 to vector<144x128xf32>
    %9 = arith.maximumf %7, %8 : vector<144x128xf32>
    %c0_7 = arith.constant 0 : index
    %c0_8 = arith.constant 0 : index
    %c0_9 = arith.constant 0 : index
    %c0_10 = arith.constant 0 : index
    %10 = vector.load %arg5[%c0_7, %c0_8, %c0_9, %c0_10] : memref<1x1x144x128xf32, #tpu.memory_space<vmem>>, vector<1x1x144x128xf32>
    %11 = vector.shape_cast %10 : vector<1x1x144x128xf32> to vector<144x128xf32>
    %12 = vector.shape_cast %9 : vector<144x128xf32> to vector<1x1x144x128xf32>
    tpu.vector_store %arg5[%c0_7, %c0_8, %c0_9, %c0_10], %12 {strides = array<i32>} : memref<1x1x144x128xf32, #tpu.memory_space<vmem>>, vector<1x1x144x128xf32>,
    return
  }
  func.func @transform_0(%arg0: i32, %arg1: i32) -> (i32, i32, i32, i32) {
    %c0_i32 = arith.constant 0 : i32
    %c0_i32_0 = arith.constant 0 : i32
    %c0_i32_1 = arith.constant 0 : i32
    return %arg0, %arg1, %c0_i32, %c0_i32_0 : i32, i32, i32, i32
  }
  func.func @transform_1(%arg0: i32, %arg1: i32) -> (i32, i32) {
    %c0_i32 = arith.constant 0 : i32
    %c0_i32_0 = arith.constant 0 : i32
    %c0_i32_1 = arith.constant 0 : i32
    return %c0_i32, %c0_i32_0 : i32, i32
  }
  func.func @transform_2(%arg0: i32, %arg1: i32) -> (i32, i32) {
    %c0_i32 = arith.constant 0 : i32
    %c0_i32_0 = arith.constant 0 : i32
    %c0_i32_1 = arith.constant 0 : i32
    return %c0_i32, %c0_i32_0 : i32, i32
  }
  func.func @transform_3(%arg0: i32, %arg1: i32) -> (i32, i32, i32, i32) {
    %c0_i32 = arith.constant 0 : i32
    %c0_i32_0 = arith.constant 0 : i32
    %c0_i32_1 = arith.constant 0 : i32
    return %arg0, %arg1, %c0_i32, %c0_i32_0 : i32, i32, i32, i32
  }
}

</mosaic_0001>

<llo_original>
// kernel: conv_bn_relu.3
$region0: #{conv_bn_relu.3}
  #allocation0 [shape = 'u32[]', space=smem, size = 0x4, offset = 0x4, fixed_abs, tag = 'smem constant byte address 0x4 - core index']
  #allocation1 [shape = 'u32[72,128]{1,0:T(1,128)}', space=vmem, size = 0x9000, scoped, tag = 'internal scratch']
  %s0 = inlined_call_operand.vmem [shape: f32[2,2,144,128], index: 0, kind: input, shape index: {}]
  %s1 = inlined_call_operand.vmem [shape: f32[1,128], index: 1, kind: input, shape index: {}]
  %s2 = inlined_call_operand.vmem [shape: f32[1,128], index: 2, kind: input, shape index: {}]
  %s3 = inlined_call_operand.vmem [shape: f32[2,2,144,128], index: 3, kind: output, shape index: {}]
  %s4 = sld [smem:[#allocation0]]
  $region45: #{conv_bn_relu.3} parent=0
    _
  %s6 = ssub.s32 1, %s4
  %s7 = scalar_select 0, %s6, %s4
  loop: start=0, step=1, limit=6
  $region2: #{conv_bn_relu.3} parent=0 // loop_pre_header
    _
  $region3: #{conv_bn_relu.3} parent=0 // loop_header
    %s9 = sphi 0, %s13
    %p10 = scmp.ge.s32.totalorder %s9, 6
    %s16 = sphi 0, %s28
    %s17 = sphi 0, %s24
    %s18 = sphi 0, %s16
    %s19 = sphi 0, %s17
    %s20 = sphi 0, %s18
    %s21 = sphi 0, %s19
    %s33 = sphi 0, %s35
    %s36 = sphi 0, %s33
    %s37 = sphi 0, %s36
    %s53 = sphi 0, %s37
    %s57 = sphi 0, %s57
    %s59 = sphi 0, %s57
    %s60 = sphi 0, %s59
    %s74 = sphi 0, %s60
    %s78 = sphi 0, %s78
    %s80 = sphi 0, %s78
    %s81 = sphi 0, %s80
    %s95 = sphi 0, %s81
    %s103 = sphi 0, %s105
    %s106 = sphi 0, %s103
    %s107 = sphi 0, %s106
    %s123 = sphi 0, %s107
  $region4: #{conv_bn_relu.3} parent=0 // loop_header_branch
    %12 = sbr.rel (%p10) target = $region8
  $region5: #{conv_bn_relu.3} parent=0 // loop_body
    %s14 = ssub.s32 %s9, 1
    %s15 = ssub.s32 %s9, 2
    %s22 = sadd.s32 1, %s17
    %p23 = scmp.ge.s32.totalorder %s22, 2
    %s24 = scalar_select %p23, 0, %s22
    %s25 = sadd.s32 1, %s16
    %s26 = scalar_select %p23, %s25, %s16
    %p27 = scmp.ge.s32.totalorder %s26, 2
    %s28 = scalar_select %p27, 0, %s26
    %s29 = ssub.s32 %s16, %s28
    %s30 = ssub.s32 %s17, %s24
    %s31 = sor.u32 %s29, %s30
    %p32 = scmp.eq.s32.totalorder %s31, 0
    %s34 = sadd.s32 %s33, 1
    %s35 = scalar_select %p32, %s33, %s34
    %p38 = pneg %p32
    %p39 = scmp.eq.s32.totalorder %s9, 3
    %p40 = por %p38, %p39
    %p41 = scmp.ne.s32.totalorder %s33, %s36
    %p42 = scmp.eq.s32.totalorder %s9, 0
    %p43 = por %p41, %p42
    %p44 = scmp.ne.s32.totalorder %s33, %s36
    %p45 = scmp.eq.s32.totalorder %s14, 3
    %p46 = por %p44, %p45
    %p47 = scmp.ne.s32.totalorder %s36, %s37
    %p48 = scmp.eq.s32.totalorder %s14, 0
    %p49 = por %p47, %p48
    %p50 = scmp.ne.s32.totalorder %s36, %s37
    %p51 = scmp.eq.s32.totalorder %s15, 3
    %p52 = por %p50, %p51
    %p54 = scmp.ne.s32.totalorder %s37, %s53
    %p55 = scmp.eq.s32.totalorder %s15, 0
    %p56 = por %p54, %p55
    %s58 = sadd.s32 %s57, 1
    %p61 = scmp.eq.s32.totalorder %s9, 3
    %p62 = scmp.ne.s32.totalorder %s57, %s59
    %p63 = scmp.eq.s32.totalorder %s9, 0
    %p64 = por %p62, %p63
    %p65 = scmp.ne.s32.totalorder %s57, %s59
    %p66 = scmp.eq.s32.totalorder %s14, 3
    %p67 = por %p65, %p66
    %p68 = scmp.ne.s32.totalorder %s59, %s60
    %p69 = scmp.eq.s32.totalorder %s14, 0
    %p70 = por %p68, %p69
    %p71 = scmp.ne.s32.totalorder %s59, %s60
    %p72 = scmp.eq.s32.totalorder %s15, 3
    %p73 = por %p71, %p72
    %p75 = scmp.ne.s32.totalorder %s60, %s74
    %p76 = scmp.eq.s32.totalorder %s15, 0
    %p77 = por %p75, %p76
    %s79 = sadd.s32 %s78, 1
    %p82 = scmp.eq.s32.totalorder %s9, 3
    %p83 = scmp.ne.s32.totalorder %s78, %s80
    %p84 = scmp.eq.s32.totalorder %s9, 0
    %p85 = por %p83, %p84
    %p86 = scmp.ne.s32.totalorder %s78, %s80
    %p87 = scmp.eq.s32.totalorder %s14, 3
    %p88 = por %p86, %p87
    %p89 = scmp.ne.s32.totalorder %s80, %s81
    %p90 = scmp.eq.s32.totalorder %s14, 0
    %p91 = por %p89, %p90
    %p92 = scmp.ne.s32.totalorder %s80, %s81
    %p93 = scmp.eq.s32.totalorder %s15, 3
    %p94 = por %p92, %p93
    %p96 = scmp.ne.s32.totalorder %s81, %s95
    %p97 = scmp.eq.s32.totalorder %s15, 0
    %p98 = por %p96, %p97
    %s99 = ssub.s32 %s16, %s28
    %s100 = ssub.s32 %s17, %s24
    %s101 = sor.u32 %s99, %s100
    %p102 = scmp.eq.s32.totalorder %s101, 0
    %s104 = sadd.s32 %s103, 1
    %s105 = scalar_select %p102, %s103, %s104
    %p108 = pneg %p102
    %p109 = scmp.eq.s32.totalorder %s9, 3
    %p110 = por %p108, %p109
    %p111 = scmp.ne.s32.totalorder %s103, %s106
    %p112 = scmp.eq.s32.totalorder %s9, 0
    %p113 = por %p111, %p112
    %p114 = scmp.ne.s32.totalorder %s103, %s106
    %p115 = scmp.eq.s32.totalorder %s14, 3
    %p116 = por %p114, %p115
    %p117 = scmp.ne.s32.totalorder %s106, %s107
    %p118 = scmp.eq.s32.totalorder %s14, 0
    %p119 = por %p117, %p118
    %p120 = scmp.ne.s32.totalorder %s106, %s107
    %p121 = scmp.eq.s32.totalorder %s15, 3
    %p122 = por %p120, %p121
    %p124 = scmp.ne.s32.totalorder %s107, %s123
    %p125 = scmp.eq.s32.totalorder %s15, 0
    %p126 = por %p124, %p125
    %p127 = scmp.le.s32.totalorder 1, %s9
    %p128 = scmp.lt.s32.totalorder %s9, 5
    %p129 = pnand %p127, %p128
    %p130 = pneg %p129
    // Predicated region
    $region9: #{conv_bn_relu.3} parent=5 // pred_check
      _
    $region10: #{conv_bn_relu.3} parent=5 // pred_check_branch
      %132 = sbr.rel (%p129) target = $region12
    $region11: #{conv_bn_relu.3} parent=5 // pred_region
      %s133 = ssub.s32 %s9, 1
      // Predicated region
      $region13: #{conv_bn_relu.3} parent=11 // pred_check
        %p134 = pneg %p70
      $region14: #{conv_bn_relu.3} parent=11 // pred_check_branch
        %136 = sbr.rel (%p134) target = $region16
      $region15: #{conv_bn_relu.3} parent=11 // pred_region
        _
      $region16: #{conv_bn_relu.3} parent=11 // pred_fallthru
        _
      // Predicated region
      $region17: #{conv_bn_relu.3} parent=11 // pred_check
        %p137 = pneg %p91
      $region18: #{conv_bn_relu.3} parent=11 // pred_check_branch
        %139 = sbr.rel (%p137) target = $region20
      $region19: #{conv_bn_relu.3} parent=11 // pred_region
        _
      $region20: #{conv_bn_relu.3} parent=11 // pred_fallthru
        _
    $region12: #{conv_bn_relu.3} parent=5 // pred_fallthru
      _
    %p140 = scmp.lt.s32.totalorder %s9, 4
    // Predicated region
    $region21: #{conv_bn_relu.3} parent=5 // pred_check
      %p141 = pneg %p140
    $region22: #{conv_bn_relu.3} parent=5 // pred_check_branch
      %143 = sbr.rel (%p141) target = $region24
    $region23: #{conv_bn_relu.3} parent=5 // pred_region
      // Predicated region
      $region25: #{conv_bn_relu.3} parent=23 // pred_check
        %p144 = pneg %p43
      $region26: #{conv_bn_relu.3} parent=23 // pred_check_branch
        %146 = sbr.rel (%p144) target = $region28
      $region27: #{conv_bn_relu.3} parent=23 // pred_region
        %p147 = scmp.lt.s32.totalorder %s16, 1
        %s148 = scalar_select %p147, %s16, 1
        %p149 = scmp.lt.s32.totalorder %s17, 1
        %s150 = scalar_select %p149, %s17, 1
        %s151 = smul.addr %s150, 18
        %s152 = smul.addr %s148, 36
        %s153 = sadd.s32 %s151, %s152
        %s154 = smul.addr %s153, 8
        %s155 = scalar_lea.vmem %s0, %s154
      $region28: #{conv_bn_relu.3} parent=23 // pred_fallthru
        _
    $region24: #{conv_bn_relu.3} parent=5 // pred_fallthru
      _
    %p156 = scmp.le.s32.totalorder 1, %s9
    %p157 = scmp.lt.s32.totalorder %s9, 5
    %p158 = pnand %p156, %p157
    %p159 = pneg %p158
    // Predicated region
    $region29: #{conv_bn_relu.3} parent=5 // pred_check
      _
    $region30: #{conv_bn_relu.3} parent=5 // pred_check_branch
      %161 = sbr.rel (%p158) target = $region32
    $region31: #{conv_bn_relu.3} parent=5 // pred_region
      %s162 = ssub.s32 %s9, 1
      %p163 = scmp.lt.s32.totalorder %s18, 1
      %s164 = scalar_select %p163, %s18, 1
      %p165 = scmp.lt.s32.totalorder %s19, 1
      %s166 = scalar_select %p165, %s19, 1
      %s167 = smul.addr %s166, 18
      %s168 = smul.addr %s164, 36
      %s169 = sadd.s32 %s167, %s168
      %s170 = smul.addr %s169, 8
      %s171 = scalar_lea.vmem %s0, %s170
      %p172 = pneg %p49
      %p173 = pneg %p46
      %p174 = pneg %p70
      %p175 = pneg %p67
      %p176 = pneg %p91
      %p177 = pneg %p88
      %p178 = pneg %p119
      %p179 = pneg %p116
      %p180 = scmp.lt.s32.totalorder %s18, 1
      %s181 = scalar_select %p180, %s18, 1
      %p182 = scmp.lt.s32.totalorder %s19, 1
      %s183 = scalar_select %p182, %s19, 1
      %s184 = smul.addr %s183, 18
      %s185 = smul.addr %s181, 36
      %s186 = sadd.s32 %s184, %s185
      %s187 = smul.addr %s186, 8
      %s188 = scalar_lea.vmem %s3, %s187
      %p189 = scmp.lt.s32.totalorder %s18, 1
      %s190 = scalar_select %p189, %s18, 1
      %p191 = scmp.lt.s32.totalorder %s19, 1
      %s192 = scalar_select %p191, %s19, 1
      %s193 = smul.addr %s192, 18
      %s194 = smul.addr %s190, 36
      %s195 = sadd.s32 %s193, %s194
      %s196 = smul.addr %s195, 8
      %s197 = scalar_lea.vmem %s0, %s196
      %p198 = scmp.lt.s32.totalorder %s18, 1
      %s199 = scalar_select %p198, %s18, 1
      %p200 = scmp.lt.s32.totalorder %s19, 1
      %s201 = scalar_select %p200, %s19, 1
      %s202 = smul.addr %s201, 18
      %s203 = smul.addr %s199, 36
      %s204 = sadd.s32 %s202, %s203
      %s205 = smul.addr %s204, 8
      %s206 = scalar_lea.vmem %s3, %s205
      %v207 = vld [vmem:[%s197] sm:$0xff]
      %v208 = vld [vmem:[%s197 + $0x8] sm:$0xff]
      %v209 = vld [vmem:[%s197 + $0x10] sm:$0xff]
      %v210 = vld [vmem:[%s197 + $0x18] sm:$0xff]
      %v211 = vld [vmem:[%s197 + $0x20] sm:$0xff]
      %v212 = vld [vmem:[%s197 + $0x28] sm:$0xff]
      %v213 = vld [vmem:[%s197 + $0x30] sm:$0xff]
      %v214 = vld [vmem:[%s197 + $0x38] sm:$0xff]
      %v215 = vld [vmem:[%s197 + $0x40] sm:$0xff]
      %v216 = vld [vmem:[%s197 + $0x48] sm:$0xff]
      %v217 = vld [vmem:[%s197 + $0x50] sm:$0xff]
      %v218 = vld [vmem:[%s197 + $0x58] sm:$0xff]
      %v219 = vld [vmem:[%s197 + $0x60] sm:$0xff]
      %v220 = vld [vmem:[%s197 + $0x68] sm:$0xff]
      %v221 = vld [vmem:[%s197 + $0x70] sm:$0xff]
      %v222 = vld [vmem:[%s197 + $0x78] sm:$0xff]
      %v223 = vld [vmem:[%s197 + $0x80] sm:$0xff]
      %v224 = vld [vmem:[%s197 + $0x88] sm:$0xff]
      %v225 = vld [vmem:[%s1] sm:$0x1]
      %v227 = vperm.slane %v225, 0
      %v229 = vmul.f32 %v207, %v227
      %v230 = vmul.f32 %v208, %v227
      %v231 = vmul.f32 %v209, %v227
      %v232 = vmul.f32 %v210, %v227
      %v233 = vmul.f32 %v211, %v227
      %v234 = vmul.f32 %v212, %v227
      %v235 = vmul.f32 %v213, %v227
      %v236 = vmul.f32 %v214, %v227
      %v237 = vmul.f32 %v215, %v227
      %v238 = vmul.f32 %v216, %v227
      %v239 = vmul.f32 %v217, %v227
      %v240 = vmul.f32 %v218, %v227
      %v241 = vmul.f32 %v219, %v227
      %v242 = vmul.f32 %v220, %v227
      %v243 = vmul.f32 %v221, %v227
      %v244 = vmul.f32 %v222, %v227
      %v245 = vmul.f32 %v223, %v227
      %v246 = vmul.f32 %v224, %v227
      %v247 = vld [vmem:[%s2] sm:$0x1]
      %v249 = vperm.slane %v247, 0
      %v251 = vadd.f32 %v229, %v249
      %v252 = vadd.f32 %v230, %v249
      %v253 = vadd.f32 %v231, %v249
      %v254 = vadd.f32 %v232, %v249
      %v255 = vadd.f32 %v233, %v249
      %v256 = vadd.f32 %v234, %v249
      %v257 = vadd.f32 %v235, %v249
      %v258 = vadd.f32 %v236, %v249
      %v259 = vadd.f32 %v237, %v249
      %v260 = vadd.f32 %v238, %v249
      %v261 = vadd.f32 %v239, %v249
      %v262 = vadd.f32 %v240, %v249
      %v263 = vadd.f32 %v241, %v249
      %v264 = vadd.f32 %v242, %v249
      %v265 = vadd.f32 %v243, %v249
      %v266 = vadd.f32 %v244, %v249
      %v267 = vadd.f32 %v245, %v249
      %v268 = vadd.f32 %v246, %v249
      %v269 = vmax.f32 %v251, 0.0
      %v270 = vmax.f32 %v252, 0.0
      %v271 = vmax.f32 %v253, 0.0
      %v272 = vmax.f32 %v254, 0.0
      %v273 = vmax.f32 %v255, 0.0
      %v274 = vmax.f32 %v256, 0.0
      %v275 = vmax.f32 %v257, 0.0
      %v276 = vmax.f32 %v258, 0.0
      %v277 = vmax.f32 %v259, 0.0
      %v278 = vmax.f32 %v260, 0.0
      %v279 = vmax.f32 %v261, 0.0
      %v280 = vmax.f32 %v262, 0.0
      %v281 = vmax.f32 %v263, 0.0
      %v282 = vmax.f32 %v264, 0.0
      %v283 = vmax.f32 %v265, 0.0
      %v284 = vmax.f32 %v266, 0.0
      %v285 = vmax.f32 %v267, 0.0
      %v286 = vmax.f32 %v268, 0.0
      %287 = vst [vmem:[%s206] sm:$0xff] %v269
      %288 = vst [vmem:[%s206 + $0x8] sm:$0xff] %v270
      %289 = vst [vmem:[%s206 + $0x10] sm:$0xff] %v271
      %290 = vst [vmem:[%s206 + $0x18] sm:$0xff] %v272
      %291 = vst [vmem:[%s206 + $0x20] sm:$0xff] %v273
      %292 = vst [vmem:[%s206 + $0x28] sm:$0xff] %v274
      %293 = vst [vmem:[%s206 + $0x30] sm:$0xff] %v275
      %294 = vst [vmem:[%s206 + $0x38] sm:$0xff] %v276
      %295 = vst [vmem:[%s206 + $0x40] sm:$0xff] %v277
      %296 = vst [vmem:[%s206 + $0x48] sm:$0xff] %v278
      %297 = vst [vmem:[%s206 + $0x50] sm:$0xff] %v279
      %298 = vst [vmem:[%s206 + $0x58] sm:$0xff] %v280
      %299 = vst [vmem:[%s206 + $0x60] sm:$0xff] %v281
      %300 = vst [vmem:[%s206 + $0x68] sm:$0xff] %v282
      %301 = vst [vmem:[%s206 + $0x70] sm:$0xff] %v283
      %302 = vst [vmem:[%s206 + $0x78] sm:$0xff] %v284
      %303 = vst [vmem:[%s206 + $0x80] sm:$0xff] %v285
      %304 = vst [vmem:[%s206 + $0x88] sm:$0xff] %v286
      %p305 = scmp.lt.s32.totalorder %s18, 1
      %s306 = scalar_select %p305, %s18, 1
      %p307 = scmp.lt.s32.totalorder %s19, 1
      %s308 = scalar_select %p307, %s19, 1
      %s309 = smul.addr %s308, 18
      %s310 = smul.addr %s306, 36
      %s311 = sadd.s32 %s309, %s310
      %s312 = smul.addr %s311, 8
      %s313 = scalar_lea.vmem %s3, %s312
      // Predicated region
      $region33: #{conv_bn_relu.3} parent=31 // pred_check
        %p314 = pneg %p116
      $region34: #{conv_bn_relu.3} parent=31 // pred_check_branch
        %316 = sbr.rel (%p314) target = $region36
      $region35: #{conv_bn_relu.3} parent=31 // pred_region
        _
      $region36: #{conv_bn_relu.3} parent=31 // pred_fallthru
        _
    $region32: #{conv_bn_relu.3} parent=5 // pred_fallthru
      _
    %p317 = scmp.le.s32.totalorder 2, %s9
    // Predicated region
    $region37: #{conv_bn_relu.3} parent=5 // pred_check
      %p318 = pneg %p317
    $region38: #{conv_bn_relu.3} parent=5 // pred_check_branch
      %320 = sbr.rel (%p318) target = $region40
    $region39: #{conv_bn_relu.3} parent=5 // pred_region
      %s321 = ssub.s32 %s9, 2
      // Predicated region
      $region41: #{conv_bn_relu.3} parent=39 // pred_check
        %p322 = pneg %p122
      $region42: #{conv_bn_relu.3} parent=39 // pred_check_branch
        %324 = sbr.rel (%p322) target = $region44
      $region43: #{conv_bn_relu.3} parent=39 // pred_region
        %p325 = scmp.lt.s32.totalorder %s20, 1
        %s326 = scalar_select %p325, %s20, 1
        %p327 = scmp.lt.s32.totalorder %s21, 1
        %s328 = scalar_select %p327, %s21, 1
        %s329 = smul.addr %s328, 18
        %s330 = smul.addr %s326, 36
        %s331 = sadd.s32 %s329, %s330
        %s332 = smul.addr %s331, 8
        %s333 = scalar_lea.vmem %s3, %s332
      $region44: #{conv_bn_relu.3} parent=39 // pred_fallthru
        _
    $region40: #{conv_bn_relu.3} parent=5 // pred_fallthru
      _
  $region6: #{conv_bn_relu.3} parent=0 // loop_footer
    %s13 = sadd.s32 1, %s9
  $region7: #{conv_bn_relu.3} parent=0 // loop_footer_branch
    %8 = sbr.rel target = $region3
  $region8: #{conv_bn_relu.3} parent=0 // loop_exit
    _

// kernel: conv_bn_relu.2
$region0: #{conv_bn_relu.2}
  #allocation0 [shape = 'u32[]', space=smem, size = 0x4, offset = 0x4, fixed_abs, tag = 'smem constant byte address 0x4 - core index']
  #allocation1 [shape = 'u32[72,128]{1,0:T(1,128)}', space=vmem, size = 0x9000, scoped, tag = 'internal scratch']
  #allocation2 [shape = 'f32[144,128]{1,0:T(8,128)}', space=vmem, size = 0x12000, scoped, tag = 'scratch operand']
  %s0 = inlined_call_operand.vmem [shape: f32[2,2,182,4], index: 0, kind: input, shape index: {}]
  %s1 = inlined_call_operand.vmem [shape: bf16[9,4,128], index: 1, kind: input, shape index: {}]
  %s2 = inlined_call_operand.vmem [shape: f32[2,2,144,128], index: 2, kind: output, shape index: {0}]
  %s3 = inlined_call_operand.vmem [shape: f32[2,2,2,128], index: 3, kind: output, shape index: {1}]
  %4 = xla_tuple %s2, %s3
  %s5 = sld [smem:[#allocation0]]
  $region49: #{conv_bn_relu.2} parent=0
    _
  %s7 = ssub.s32 1, %s5
  %s8 = scalar_select 0, %s7, %s5
  loop: start=0, step=1, limit=6
  $region2: #{conv_bn_relu.2} parent=0 // loop_pre_header
    _
  $region3: #{conv_bn_relu.2} parent=0 // loop_header
    %s10 = sphi 0, %s14
    %p11 = scmp.ge.s32.totalorder %s10, 6
    %s17 = sphi 0, %s29
    %s18 = sphi 0, %s25
    %s19 = sphi 0, %s17
    %s20 = sphi 0, %s18
    %s21 = sphi 0, %s19
    %s22 = sphi 0, %s20
    %s34 = sphi 0, %s36
    %s37 = sphi 0, %s34
    %s38 = sphi 0, %s37
    %s54 = sphi 0, %s38
    %s58 = sphi 0, %s58
    %s60 = sphi 0, %s58
    %s61 = sphi 0, %s60
    %s75 = sphi 0, %s61
    %s83 = sphi 0, %s85
    %s86 = sphi 0, %s83
    %s87 = sphi 0, %s86
    %s103 = sphi 0, %s87
    %s111 = sphi 0, %s113
    %s114 = sphi 0, %s111
    %s115 = sphi 0, %s114
    %s131 = sphi 0, %s115
  $region4: #{conv_bn_relu.2} parent=0 // loop_header_branch
    %13 = sbr.rel (%p11) target = $region8
  $region5: #{conv_bn_relu.2} parent=0 // loop_body
    %s15 = ssub.s32 %s10, 1
    %s16 = ssub.s32 %s10, 2
    %s23 = sadd.s32 1, %s18
    %p24 = scmp.ge.s32.totalorder %s23, 2
    %s25 = scalar_select %p24, 0, %s23
    %s26 = sadd.s32 1, %s17
    %s27 = scalar_select %p24, %s26, %s17
    %p28 = scmp.ge.s32.totalorder %s27, 2
    %s29 = scalar_select %p28, 0, %s27
    %s30 = ssub.s32 %s17, %s29
    %s31 = ssub.s32 %s18, %s25
    %s32 = sor.u32 %s30, %s31
    %p33 = scmp.eq.s32.totalorder %s32, 0
    %s35 = sadd.s32 %s34, 1
    %s36 = scalar_select %p33, %s34, %s35
    %p39 = pneg %p33
    %p40 = scmp.eq.s32.totalorder %s10, 3
    %p41 = por %p39, %p40
    %p42 = scmp.ne.s32.totalorder %s34, %s37
    %p43 = scmp.eq.s32.totalorder %s10, 0
    %p44 = por %p42, %p43
    %p45 = scmp.ne.s32.totalorder %s34, %s37
    %p46 = scmp.eq.s32.totalorder %s15, 3
    %p47 = por %p45, %p46
    %p48 = scmp.ne.s32.totalorder %s37, %s38
    %p49 = scmp.eq.s32.totalorder %s15, 0
    %p50 = por %p48, %p49
    %p51 = scmp.ne.s32.totalorder %s37, %s38
    %p52 = scmp.eq.s32.totalorder %s16, 3
    %p53 = por %p51, %p52
    %p55 = scmp.ne.s32.totalorder %s38, %s54
    %p56 = scmp.eq.s32.totalorder %s16, 0
    %p57 = por %p55, %p56
    %s59 = sadd.s32 %s58, 1
    %p62 = scmp.eq.s32.totalorder %s10, 3
    %p63 = scmp.ne.s32.totalorder %s58, %s60
    %p64 = scmp.eq.s32.totalorder %s10, 0
    %p65 = por %p63, %p64
    %p66 = scmp.ne.s32.totalorder %s58, %s60
    %p67 = scmp.eq.s32.totalorder %s15, 3
    %p68 = por %p66, %p67
    %p69 = scmp.ne.s32.totalorder %s60, %s61
    %p70 = scmp.eq.s32.totalorder %s15, 0
    %p71 = por %p69, %p70
    %p72 = scmp.ne.s32.totalorder %s60, %s61
    %p73 = scmp.eq.s32.totalorder %s16, 3
    %p74 = por %p72, %p73
    %p76 = scmp.ne.s32.totalorder %s61, %s75
    %p77 = scmp.eq.s32.totalorder %s16, 0
    %p78 = por %p76, %p77
    %s79 = ssub.s32 %s17, %s29
    %s80 = ssub.s32 %s18, %s25
    %s81 = sor.u32 %s79, %s80
    %p82 = scmp.eq.s32.totalorder %s81, 0
    %s84 = sadd.s32 %s83, 1
    %s85 = scalar_select %p82, %s83, %s84
    %p88 = pneg %p82
    %p89 = scmp.eq.s32.totalorder %s10, 3
    %p90 = por %p88, %p89
    %p91 = scmp.ne.s32.totalorder %s83, %s86
    %p92 = scmp.eq.s32.totalorder %s10, 0
    %p93 = por %p91, %p92
    %p94 = scmp.ne.s32.totalorder %s83, %s86
    %p95 = scmp.eq.s32.totalorder %s15, 3
    %p96 = por %p94, %p95
    %p97 = scmp.ne.s32.totalorder %s86, %s87
    %p98 = scmp.eq.s32.totalorder %s15, 0
    %p99 = por %p97, %p98
    %p100 = scmp.ne.s32.totalorder %s86, %s87
    %p101 = scmp.eq.s32.totalorder %s16, 3
    %p102 = por %p100, %p101
    %p104 = scmp.ne.s32.totalorder %s87, %s103
    %p105 = scmp.eq.s32.totalorder %s16, 0
    %p106 = por %p104, %p105
    %s107 = ssub.s32 %s17, %s29
    %s108 = ssub.s32 %s18, %s25
    %s109 = sor.u32 %s107, %s108
    %p110 = scmp.eq.s32.totalorder %s109, 0
    %s112 = sadd.s32 %s111, 1
    %s113 = scalar_select %p110, %s111, %s112
    %p116 = pneg %p110
    %p117 = scmp.eq.s32.totalorder %s10, 3
    %p118 = por %p116, %p117
    %p119 = scmp.ne.s32.totalorder %s111, %s114
    %p120 = scmp.eq.s32.totalorder %s10, 0
    %p121 = por %p119, %p120
    %p122 = scmp.ne.s32.totalorder %s111, %s114
    %p123 = scmp.eq.s32.totalorder %s15, 3
    %p124 = por %p122, %p123
    %p125 = scmp.ne.s32.totalorder %s114, %s115
    %p126 = scmp.eq.s32.totalorder %s15, 0
    %p127 = por %p125, %p126
    %p128 = scmp.ne.s32.totalorder %s114, %s115
    %p129 = scmp.eq.s32.totalorder %s16, 3
    %p130 = por %p128, %p129
    %p132 = scmp.ne.s32.totalorder %s115, %s131
    %p133 = scmp.eq.s32.totalorder %s16, 0
    %p134 = por %p132, %p133
    %p135 = scmp.le.s32.totalorder 1, %s10
    %p136 = scmp.lt.s32.totalorder %s10, 5
    %p137 = pnand %p135, %p136
    %p138 = pneg %p137
    // Predicated region
    $region9: #{conv_bn_relu.2} parent=5 // pred_check
      _
    $region10: #{conv_bn_relu.2} parent=5 // pred_check_branch
      %140 = sbr.rel (%p137) target = $region12
    $region11: #{conv_bn_relu.2} parent=5 // pred_region
      %s141 = ssub.s32 %s10, 1
      // Predicated region
      $region13: #{conv_bn_relu.2} parent=11 // pred_check
        %p142 = pneg %p71
      $region14: #{conv_bn_relu.2} parent=11 // pred_check_branch
        %144 = sbr.rel (%p142) target = $region16
      $region15: #{conv_bn_relu.2} parent=11 // pred_region
        _
      $region16: #{conv_bn_relu.2} parent=11 // pred_fallthru
        _
    $region12: #{conv_bn_relu.2} parent=5 // pred_fallthru
      _
    %p145 = scmp.lt.s32.totalorder %s10, 4
    // Predicated region
    $region17: #{conv_bn_relu.2} parent=5 // pred_check
      %p146 = pneg %p145
    $region18: #{conv_bn_relu.2} parent=5 // pred_check_branch
      %148 = sbr.rel (%p146) target = $region20
    $region19: #{conv_bn_relu.2} parent=5 // pred_region
      // Predicated region
      $region21: #{conv_bn_relu.2} parent=19 // pred_check
        %p149 = pneg %p44
      $region22: #{conv_bn_relu.2} parent=19 // pred_check_branch
        %151 = sbr.rel (%p149) target = $region24
      $region23: #{conv_bn_relu.2} parent=19 // pred_region
        %p152 = scmp.lt.s32.totalorder %s17, 1
        %s153 = scalar_select %p152, %s17, 1
        %p154 = scmp.lt.s32.totalorder %s18, 1
        %s155 = scalar_select %p154, %s18, 1
        %s156 = smul.addr %s155, 23
        %s157 = smul.addr %s153, 46
        %s158 = sadd.s32 %s156, %s157
        %s159 = smul.addr %s158, 8
        %s160 = scalar_lea.vmem %s0, %s159
      $region24: #{conv_bn_relu.2} parent=19 // pred_fallthru
        _
    $region20: #{conv_bn_relu.2} parent=5 // pred_fallthru
      _
    %p161 = scmp.le.s32.totalorder 1, %s10
    %p162 = scmp.lt.s32.totalorder %s10, 5
    %p163 = pnand %p161, %p162
    %p164 = pneg %p163
    // Predicated region
    $region25: #{conv_bn_relu.2} parent=5 // pred_check
      _
    $region26: #{conv_bn_relu.2} parent=5 // pred_check_branch
      %166 = sbr.rel (%p163) target = $region28
    $region27: #{conv_bn_relu.2} parent=5 // pred_region
      %s167 = ssub.s32 %s10, 1
      %p168 = scmp.lt.s32.totalorder %s19, 1
      %s169 = scalar_select %p168, %s19, 1
      %p170 = scmp.lt.s32.totalorder %s20, 1
      %s171 = scalar_select %p170, %s20, 1
      %s172 = smul.addr %s171, 23
      %s173 = smul.addr %s169, 46
      %s174 = sadd.s32 %s172, %s173
      %s175 = smul.addr %s174, 8
      %s176 = scalar_lea.vmem %s0, %s175
      %p177 = pneg %p50
      %p178 = pneg %p47
      %p179 = pneg %p71
      %p180 = pneg %p68
      %p181 = pneg %p99
      %p182 = pneg %p96
      %p183 = scmp.lt.s32.totalorder %s19, 1
      %s184 = scalar_select %p183, %s19, 1
      %p185 = scmp.lt.s32.totalorder %s20, 1
      %s186 = scalar_select %p185, %s20, 1
      %s187 = smul.addr %s186, 18
      %s188 = smul.addr %s184, 36
      %s189 = sadd.s32 %s187, %s188
      %s190 = smul.addr %s189, 8
      %s191 = scalar_lea.vmem %s2, %s190
      %p192 = pneg %p127
      %p193 = pneg %p124
      %p194 = scmp.lt.s32.totalorder %s19, 1
      %s195 = scalar_select %p194, %s19, 1
      %p196 = scmp.lt.s32.totalorder %s20, 1
      %s197 = scalar_select %p196, %s20, 1
      %s198 = smul.addr %s195, 2
      %s199 = sadd.s32 %s197, %s198
      %s200 = smul.addr %s199, 2
      %s201 = scalar_lea.vmem %s3, %s200
      %p202 = scmp.lt.s32.totalorder %s19, 1
      %s203 = scalar_select %p202, %s19, 1
      %p204 = scmp.lt.s32.totalorder %s20, 1
      %s205 = scalar_select %p204, %s20, 1
      %s206 = smul.addr %s205, 23
      %s207 = smul.addr %s203, 46
      %s208 = sadd.s32 %s206, %s207
      %s209 = smul.addr %s208, 8
      %s210 = scalar_lea.vmem %s0, %s209
      %p211 = scmp.lt.s32.totalorder %s19, 1
      %s212 = scalar_select %p211, %s19, 1
      %p213 = scmp.lt.s32.totalorder %s20, 1
      %s214 = scalar_select %p213, %s20, 1
      %s215 = smul.addr %s214, 18
      %s216 = smul.addr %s212, 36
      %s217 = sadd.s32 %s215, %s216
      %s218 = smul.addr %s217, 8
      %s219 = scalar_lea.vmem %s2, %s218
      %p220 = scmp.lt.s32.totalorder %s19, 1
      %s221 = scalar_select %p220, %s19, 1
      %p222 = scmp.lt.s32.totalorder %s20, 1
      %s223 = scalar_select %p222, %s20, 1
      %s224 = smul.addr %s221, 2
      %s225 = sadd.s32 %s223, %s224
      %s226 = smul.addr %s225, 2
      %s227 = scalar_lea.vmem %s3, %s226
      %229 = vst [vmem:[#allocation2] sm:$0xff] 0.0
      %230 = vst [vmem:[#allocation2 + $0x8] sm:$0xff] 0.0
      %231 = vst [vmem:[#allocation2 + $0x10] sm:$0xff] 0.0
      %232 = vst [vmem:[#allocation2 + $0x18] sm:$0xff] 0.0
      %233 = vst [vmem:[#allocation2 + $0x20] sm:$0xff] 0.0
      %234 = vst [vmem:[#allocation2 + $0x28] sm:$0xff] 0.0
      %235 = vst [vmem:[#allocation2 + $0x30] sm:$0xff] 0.0
      %236 = vst [vmem:[#allocation2 + $0x38] sm:$0xff] 0.0
      %237 = vst [vmem:[#allocation2 + $0x40] sm:$0xff] 0.0
      %238 = vst [vmem:[#allocation2 + $0x48] sm:$0xff] 0.0
      %239 = vst [vmem:[#allocation2 + $0x50] sm:$0xff] 0.0
      %240 = vst [vmem:[#allocation2 + $0x58] sm:$0xff] 0.0
      %241 = vst [vmem:[#allocation2 + $0x60] sm:$0xff] 0.0
      %242 = vst [vmem:[#allocation2 + $0x68] sm:$0xff] 0.0
      %243 = vst [vmem:[#allocation2 + $0x70] sm:$0xff] 0.0
      %244 = vst [vmem:[#allocation2 + $0x78] sm:$0xff] 0.0
      %245 = vst [vmem:[#allocation2 + $0x80] sm:$0xff] 0.0
      %246 = vst [vmem:[#allocation2 + $0x88] sm:$0xff] 0.0
      %v247 = vld [vmem:[%s210] sm:$0xff]
      %v248 = vld [vmem:[%s210 + $0x8] sm:$0xff]
      %v249 = vld [vmem:[%s210 + $0x10] sm:$0xff]
      %v250 = vld [vmem:[%s210 + $0x18] sm:$0xff]
      %v251 = vld [vmem:[%s210 + $0x20] sm:$0xff]
      %v252 = vld [vmem:[%s210 + $0x28] sm:$0xff]
      %v253 = vld [vmem:[%s210 + $0x30] sm:$0xff]
      %v254 = vld [vmem:[%s210 + $0x38] sm:$0xff]
      %v255 = vld [vmem:[%s210 + $0x40] sm:$0xff]
      %v256 = vld [vmem:[%s210 + $0x48] sm:$0xff]
      %v257 = vld [vmem:[%s210 + $0x50] sm:$0xff]
      %v258 = vld [vmem:[%s210 + $0x58] sm:$0xff]
      %v259 = vld [vmem:[%s210 + $0x60] sm:$0xff]
      %v260 = vld [vmem:[%s210 + $0x68] sm:$0xff]
      %v261 = vld [vmem:[%s210 + $0x70] sm:$0xff]
      %v262 = vld [vmem:[%s210 + $0x78] sm:$0xff]
      %v263 = vld [vmem:[%s210 + $0x80] sm:$0xff]
      %v264 = vld [vmem:[%s210 + $0x88] sm:$0xff]
      %v265 = vpack.c.bf16 %v248, %v247
      %v266 = vpack.c.bf16 %v250, %v249
      %v267 = vpack.c.bf16 %v252, %v251
      %v268 = vpack.c.bf16 %v254, %v253
      %v269 = vpack.c.bf16 %v256, %v255
      %v270 = vpack.c.bf16 %v258, %v257
      %v271 = vpack.c.bf16 %v260, %v259
      %v272 = vpack.c.bf16 %v262, %v261
      %v273 = vpack.c.bf16 %v264, %v263
      %v274 = vld [vmem:[#allocation2] sm:$0xff]
      %v275 = vld [vmem:[#allocation2 + $0x8] sm:$0xff]
      %v276 = vld [vmem:[#allocation2 + $0x10] sm:$0xff]
      %v277 = vld [vmem:[#allocation2 + $0x18] sm:$0xff]
      %v278 = vld [vmem:[#allocation2 + $0x20] sm:$0xff]
      %v279 = vld [vmem:[#allocation2 + $0x28] sm:$0xff]
      %v280 = vld [vmem:[#allocation2 + $0x30] sm:$0xff]
      %v281 = vld [vmem:[#allocation2 + $0x38] sm:$0xff]
      %v282 = vld [vmem:[#allocation2 + $0x40] sm:$0xff]
      %v283 = vld [vmem:[#allocation2 + $0x48] sm:$0xff]
      %v284 = vld [vmem:[#allocation2 + $0x50] sm:$0xff]
      %v285 = vld [vmem:[#allocation2 + $0x58] sm:$0xff]
      %v286 = vld [vmem:[#allocation2 + $0x60] sm:$0xff]
      %v287 = vld [vmem:[#allocation2 + $0x68] sm:$0xff]
      %v288 = vld [vmem:[#allocation2 + $0x70] sm:$0xff]
      %v289 = vld [vmem:[#allocation2 + $0x78] sm:$0xff]
      %v290 = vld [vmem:[#allocation2 + $0x80] sm:$0xff]
      %v291 = vld [vmem:[#allocation2 + $0x88] sm:$0xff]
      %v292 = vld [vmem:[%s1] sm:$0x3]
      %vm293 = vcmask 31744
      %v295 = vsel %vm293, %v265, 0
      %v298 = vsel %vm293, %v266, 0
      %v301 = vsel %vm293, %v267, 0
      %v304 = vsel %vm293, %v268, 0
      %v307 = vsel %vm293, %v269, 0
      %v310 = vsel %vm293, %v270, 0
      %v313 = vsel %vm293, %v271, 0
      %v316 = vsel %vm293, %v272, 0
      %v319 = vsel %vm293, %v273, 0
      %vm321 = vcmask 1041408
      %v323 = vsel %vm321, %v292, 0
      %325 = vmatpush.bf16.msra.mxu0 0
      %326 = vmatpush.bf16.msra.mxu0 0
      %327 = vmatpush.bf16.msra.mxu0 0
      %328 = vmatpush.bf16.msra.mxu0 0
      %329 = vmatpush.bf16.msra.mxu0 0
      %330 = vmatpush.bf16.msra.mxu0 0
      %331 = vmatpush.bf16.msra.mxu0 0
      %332 = vmatpush.bf16.msra.mxu0 %v323
      %333 = vmatmul.bf16.gmra.mxu0 %v295
      %v334 = vpop.f32.mrf.mxu0
      %v335 = vadd.f32 0.0, %v334
      %v336 = vpop.f32.mrf.mxu0
      %v337 = vadd.f32 0.0, %v336
      %338 = vmatmul.bf16.gmra.mxu0 %v298
      %v339 = vpop.f32.mrf.mxu0
      %v340 = vadd.f32 0.0, %v339
      %v341 = vpop.f32.mrf.mxu0
      %v342 = vadd.f32 0.0, %v341
      %343 = vmatmul.bf16.gmra.mxu0 %v301
      %v344 = vpop.f32.mrf.mxu0
      %v345 = vadd.f32 0.0, %v344
      %v346 = vpop.f32.mrf.mxu0
      %v347 = vadd.f32 0.0, %v346
      %348 = vmatmul.bf16.gmra.mxu0 %v304
      %v349 = vpop.f32.mrf.mxu0
      %v350 = vadd.f32 0.0, %v349
      %v351 = vpop.f32.mrf.mxu0
      %v352 = vadd.f32 0.0, %v351
      %353 = vmatmul.bf16.gmra.mxu0 %v307
      %v354 = vpop.f32.mrf.mxu0
      %v355 = vadd.f32 0.0, %v354
      %v356 = vpop.f32.mrf.mxu0
      %v357 = vadd.f32 0.0, %v356
      %358 = vmatmul.bf16.gmra.mxu0 %v310
      %v359 = vpop.f32.mrf.mxu0
      %v360 = vadd.f32 0.0, %v359
      %v361 = vpop.f32.mrf.mxu0
      %v362 = vadd.f32 0.0, %v361
      %363 = vmatmul.bf16.gmra.mxu0 %v313
      %v364 = vpop.f32.mrf.mxu0
      %v365 = vadd.f32 0.0, %v364
      %v366 = vpop.f32.mrf.mxu0
      %v367 = vadd.f32 0.0, %v366
      %368 = vmatmul.bf16.gmra.mxu0 %v316
      %v369 = vpop.f32.mrf.mxu0
      %v370 = vadd.f32 0.0, %v369
      %v371 = vpop.f32.mrf.mxu0
      %v372 = vadd.f32 0.0, %v371
      %373 = vmatmul.bf16.gmra.mxu0 %v319
      %v374 = vpop.f32.mrf.mxu0
      %v375 = vadd.f32 0.0, %v374
      %v376 = vpop.f32.mrf.mxu0
      %v377 = vadd.f32 0.0, %v376
      %378 = vdwg.mxu0
      %v379 = vadd.f32 %v274, %v335
      %v380 = vadd.f32 %v275, %v337
      %v381 = vadd.f32 %v276, %v340
      %v382 = vadd.f32 %v277, %v342
      %v383 = vadd.f32 %v278, %v345
      %v384 = vadd.f32 %v279, %v347
      %v385 = vadd.f32 %v280, %v350
      %v386 = vadd.f32 %v281, %v352
      %v387 = vadd.f32 %v282, %v355
      %v388 = vadd.f32 %v283, %v357
      %v389 = vadd.f32 %v284, %v360
      %v390 = vadd.f32 %v285, %v362
      %v391 = vadd.f32 %v286, %v365
      %v392 = vadd.f32 %v287, %v367
      %v393 = vadd.f32 %v288, %v370
      %v394 = vadd.f32 %v289, %v372
      %v395 = vadd.f32 %v290, %v375
      %v396 = vadd.f32 %v291, %v377
      %397 = vst [vmem:[#allocation2] sm:$0xff] %v379
      %398 = vst [vmem:[#allocation2 + $0x8] sm:$0xff] %v380
      %399 = vst [vmem:[#allocation2 + $0x10] sm:$0xff] %v381
      %400 = vst [vmem:[#allocation2 + $0x18] sm:$0xff] %v382
      %401 = vst [vmem:[#allocation2 + $0x20] sm:$0xff] %v383
      %402 = vst [vmem:[#allocation2 + $0x28] sm:$0xff] %v384
      %403 = vst [vmem:[#allocation2 + $0x30] sm:$0xff] %v385
      %404 = vst [vmem:[#allocation2 + $0x38] sm:$0xff] %v386
      %405 = vst [vmem:[#allocation2 + $0x40] sm:$0xff] %v387
      %406 = vst [vmem:[#allocation2 + $0x48] sm:$0xff] %v388
      %407 = vst [vmem:[#allocation2 + $0x50] sm:$0xff] %v389
      %408 = vst [vmem:[#allocation2 + $0x58] sm:$0xff] %v390
      %409 = vst [vmem:[#allocation2 + $0x60] sm:$0xff] %v391
      %410 = vst [vmem:[#allocation2 + $0x68] sm:$0xff] %v392
      %411 = vst [vmem:[#allocation2 + $0x70] sm:$0xff] %v393
      %412 = vst [vmem:[#allocation2 + $0x78] sm:$0xff] %v394
      %413 = vst [vmem:[#allocation2 + $0x80] sm:$0xff] %v395
      %414 = vst [vmem:[#allocation2 + $0x88] sm:$0xff] %v396
      %v415 = vld [vmem:[%s210 + $0x1] sm:$0xff]
      %v416 = vld [vmem:[%s210 + $0x9] sm:$0xff]
      %v417 = vld [vmem:[%s210 + $0x11] sm:$0xff]
      %v418 = vld [vmem:[%s210 + $0x19] sm:$0xff]
      %v419 = vld [vmem:[%s210 + $0x21] sm:$0xff]
      %v420 = vld [vmem:[%s210 + $0x29] sm:$0xff]
      %v421 = vld [vmem:[%s210 + $0x31] sm:$0xff]
      %v422 = vld [vmem:[%s210 + $0x39] sm:$0xff]
      %v423 = vld [vmem:[%s210 + $0x41] sm:$0xff]
      %v424 = vld [vmem:[%s210 + $0x49] sm:$0xff]
      %v425 = vld [vmem:[%s210 + $0x51] sm:$0xff]
      %v426 = vld [vmem:[%s210 + $0x59] sm:$0xff]
      %v427 = vld [vmem:[%s210 + $0x61] sm:$0xff]
      %v428 = vld [vmem:[%s210 + $0x69] sm:$0xff]
      %v429 = vld [vmem:[%s210 + $0x71] sm:$0xff]
      %v430 = vld [vmem:[%s210 + $0x79] sm:$0xff]
      %v431 = vld [vmem:[%s210 + $0x81] sm:$0xff]
      %v432 = vld [vmem:[%s210 + $0x89] sm:$0xff]
      %v433 = vpack.c.bf16 %v416, %v415
      %v434 = vpack.c.bf16 %v418, %v417
      %v435 = vpack.c.bf16 %v420, %v419
      %v436 = vpack.c.bf16 %v422, %v421
      %v437 = vpack.c.bf16 %v424, %v423
      %v438 = vpack.c.bf16 %v426, %v425
      %v439 = vpack.c.bf16 %v428, %v427
      %v440 = vpack.c.bf16 %v430, %v429
      %v441 = vpack.c.bf16 %v432, %v431
      %v442 = vld [vmem:[#allocation2] sm:$0xff]
      %v443 = vld [vmem:[#allocation2 + $0x8] sm:$0xff]
      %v444 = vld [vmem:[#allocation2 + $0x10] sm:$0xff]
      %v445 = vld [vmem:[#allocation2 + $0x18] sm:$0xff]
      %v446 = vld [vmem:[#allocation2 + $0x20] sm:$0xff]
      %v447 = vld [vmem:[#allocation2 + $0x28] sm:$0xff]
      %v448 = vld [vmem:[#allocation2 + $0x30] sm:$0xff]
      %v449 = vld [vmem:[#allocation2 + $0x38] sm:$0xff]
      %v450 = vld [vmem:[#allocation2 + $0x40] sm:$0xff]
      %v451 = vld [vmem:[#allocation2 + $0x48] sm:$0xff]
      %v452 = vld [vmem:[#allocation2 + $0x50] sm:$0xff]
      %v453 = vld [vmem:[#allocation2 + $0x58] sm:$0xff]
      %v454 = vld [vmem:[#allocation2 + $0x60] sm:$0xff]
      %v455 = vld [vmem:[#allocation2 + $0x68] sm:$0xff]
      %v456 = vld [vmem:[#allocation2 + $0x70] sm:$0xff]
      %v457 = vld [vmem:[#allocation2 + $0x78] sm:$0xff]
      %v458 = vld [vmem:[#allocation2 + $0x80] sm:$0xff]
      %v459 = vld [vmem:[#allocation2 + $0x88] sm:$0xff]
      %s460 = scalar_lea.vmem %s1, 2
      %v461 = vld [vmem:[%s460] sm:$0x3]
      %v463 = vsel %vm293, %v433, 0
      %v466 = vsel %vm293, %v434, 0
      %v469 = vsel %vm293, %v435, 0
      %v472 = vsel %vm293, %v436, 0
      %v475 = vsel %vm293, %v437, 0
      %v478 = vsel %vm293, %v438, 0
      %v481 = vsel %vm293, %v439, 0
      %v484 = vsel %vm293, %v440, 0
      %v487 = vsel %vm293, %v441, 0
      %v490 = vsel %vm321, %v461, 0
      %492 = vmatpush.bf16.msra.mxu0 0
      %493 = vmatpush.bf16.msra.mxu0 0
      %494 = vmatpush.bf16.msra.mxu0 0
      %495 = vmatpush.bf16.msra.mxu0 0
      %496 = vmatpush.bf16.msra.mxu0 0
      %497 = vmatpush.bf16.msra.mxu0 0
      %498 = vmatpush.bf16.msra.mxu0 0
      %499 = vmatpush.bf16.msra.mxu0 %v490
      %500 = vmatmul.bf16.gmra.mxu0 %v463
      %v501 = vpop.f32.mrf.mxu0
      %v502 = vadd.f32 0.0, %v501
      %v503 = vpop.f32.mrf.mxu0
      %v504 = vadd.f32 0.0, %v503
      %505 = vmatmul.bf16.gmra.mxu0 %v466
      %v506 = vpop.f32.mrf.mxu0
      %v507 = vadd.f32 0.0, %v506
      %v508 = vpop.f32.mrf.mxu0
      %v509 = vadd.f32 0.0, %v508
      %510 = vmatmul.bf16.gmra.mxu0 %v469
      %v511 = vpop.f32.mrf.mxu0
      %v512 = vadd.f32 0.0, %v511
      %v513 = vpop.f32.mrf.mxu0
      %v514 = vadd.f32 0.0, %v513
      %515 = vmatmul.bf16.gmra.mxu0 %v472
      %v516 = vpop.f32.mrf.mxu0
      %v517 = vadd.f32 0.0, %v516
      %v518 = vpop.f32.mrf.mxu0
      %v519 = vadd.f32 0.0, %v518
      %520 = vmatmul.bf16.gmra.mxu0 %v475
      %v521 = vpop.f32.mrf.mxu0
      %v522 = vadd.f32 0.0, %v521
      %v523 = vpop.f32.mrf.mxu0
      %v524 = vadd.f32 0.0, %v523
      %525 = vmatmul.bf16.gmra.mxu0 %v478
      %v526 = vpop.f32.mrf.mxu0
      %v527 = vadd.f32 0.0, %v526
      %v528 = vpop.f32.mrf.mxu0
      %v529 = vadd.f32 0.0, %v528
      %530 = vmatmul.bf16.gmra.mxu0 %v481
      %v531 = vpop.f32.mrf.mxu0
      %v532 = vadd.f32 0.0, %v531
      %v533 = vpop.f32.mrf.mxu0
      %v534 = vadd.f32 0.0, %v533
      %535 = vmatmul.bf16.gmra.mxu0 %v484
      %v536 = vpop.f32.mrf.mxu0
      %v537 = vadd.f32 0.0, %v536
      %v538 = vpop.f32.mrf.mxu0
      %v539 = vadd.f32 0.0, %v538
      %540 = vmatmul.bf16.gmra.mxu0 %v487
      %v541 = vpop.f32.mrf.mxu0
      %v542 = vadd.f32 0.0, %v541
      %v543 = vpop.f32.mrf.mxu0
      %v544 = vadd.f32 0.0, %v543
      %545 = vdwg.mxu0
      %v546 = vadd.f32 %v442, %v502
      %v547 = vadd.f32 %v443, %v504
      %v548 = vadd.f32 %v444, %v507
      %v549 = vadd.f32 %v445, %v509
      %v550 = vadd.f32 %v446, %v512
      %v551 = vadd.f32 %v447, %v514
      %v552 = vadd.f32 %v448, %v517
      %v553 = vadd.f32 %v449, %v519
      %v554 = vadd.f32 %v450, %v522
      %v555 = vadd.f32 %v451, %v524
      %v556 = vadd.f32 %v452, %v527
      %v557 = vadd.f32 %v453, %v529
      %v558 = vadd.f32 %v454, %v532
      %v559 = vadd.f32 %v455, %v534
      %v560 = vadd.f32 %v456, %v537
      %v561 = vadd.f32 %v457, %v539
      %v562 = vadd.f32 %v458, %v542
      %v563 = vadd.f32 %v459, %v544
      %564 = vst [vmem:[#allocation2] sm:$0xff] %v546
      %565 = vst [vmem:[#allocation2 + $0x8] sm:$0xff] %v547
      %566 = vst [vmem:[#allocation2 + $0x10] sm:$0xff] %v548
      %567 = vst [vmem:[#allocation2 + $0x18] sm:$0xff] %v549
      %568 = vst [vmem:[#allocation2 + $0x20] sm:$0xff] %v550
      %569 = vst [vmem:[#allocation2 + $0x28] sm:$0xff] %v551
      %570 = vst [vmem:[#allocation2 + $0x30] sm:$0xff] %v552
      %571 = vst [vmem:[#allocation2 + $0x38] sm:$0xff] %v553
      %572 = vst [vmem:[#allocation2 + $0x40] sm:$0xff] %v554
      %573 = vst [vmem:[#allocation2 + $0x48] sm:$0xff] %v555
      %574 = vst [vmem:[#allocation2 + $0x50] sm:$0xff] %v556
      %575 = vst [vmem:[#allocation2 + $0x58] sm:$0xff] %v557
      %576 = vst [vmem:[#allocation2 + $0x60] sm:$0xff] %v558
      %577 = vst [vmem:[#allocation2 + $0x68] sm:$0xff] %v559
      %578 = vst [vmem:[#allocation2 + $0x70] sm:$0xff] %v560
      %579 = vst [vmem:[#allocation2 + $0x78] sm:$0xff] %v561
      %580 = vst [vmem:[#allocation2 + $0x80] sm:$0xff] %v562
      %581 = vst [vmem:[#allocation2 + $0x88] sm:$0xff] %v563
      %v582 = vld [vmem:[%s210 + $0x2] sm:$0xff]
      %v583 = vld [vmem:[%s210 + $0xa] sm:$0xff]
      %v584 = vld [vmem:[%s210 + $0x12] sm:$0xff]
      %v585 = vld [vmem:[%s210 + $0x1a] sm:$0xff]
      %v586 = vld [vmem:[%s210 + $0x22] sm:$0xff]
      %v587 = vld [vmem:[%s210 + $0x2a] sm:$0xff]
      %v588 = vld [vmem:[%s210 + $0x32] sm:$0xff]
      %v589 = vld [vmem:[%s210 + $0x3a] sm:$0xff]
      %v590 = vld [vmem:[%s210 + $0x42] sm:$0xff]
      %v591 = vld [vmem:[%s210 + $0x4a] sm:$0xff]
      %v592 = vld [vmem:[%s210 + $0x52] sm:$0xff]
      %v593 = vld [vmem:[%s210 + $0x5a] sm:$0xff]
      %v594 = vld [vmem:[%s210 + $0x62] sm:$0xff]
      %v595 = vld [vmem:[%s210 + $0x6a] sm:$0xff]
      %v596 = vld [vmem:[%s210 + $0x72] sm:$0xff]
      %v597 = vld [vmem:[%s210 + $0x7a] sm:$0xff]
      %v598 = vld [vmem:[%s210 + $0x82] sm:$0xff]
      %v599 = vld [vmem:[%s210 + $0x8a] sm:$0xff]
      %v600 = vpack.c.bf16 %v583, %v582
      %v601 = vpack.c.bf16 %v585, %v584
      %v602 = vpack.c.bf16 %v587, %v586
      %v603 = vpack.c.bf16 %v589, %v588
      %v604 = vpack.c.bf16 %v591, %v590
      %v605 = vpack.c.bf16 %v593, %v592
      %v606 = vpack.c.bf16 %v595, %v594
      %v607 = vpack.c.bf16 %v597, %v596
      %v608 = vpack.c.bf16 %v599, %v598
      %v609 = vld [vmem:[#allocation2] sm:$0xff]
      %v610 = vld [vmem:[#allocation2 + $0x8] sm:$0xff]
      %v611 = vld [vmem:[#allocation2 + $0x10] sm:$0xff]
      %v612 = vld [vmem:[#allocation2 + $0x18] sm:$0xff]
      %v613 = vld [vmem:[#allocation2 + $0x20] sm:$0xff]
      %v614 = vld [vmem:[#allocation2 + $0x28] sm:$0xff]
      %v615 = vld [vmem:[#allocation2 + $0x30] sm:$0xff]
      %v616 = vld [vmem:[#allocation2 + $0x38] sm:$0xff]
      %v617 = vld [vmem:[#allocation2 + $0x40] sm:$0xff]
      %v618 = vld [vmem:[#allocation2 + $0x48] sm:$0xff]
      %v619 = vld [vmem:[#allocation2 + $0x50] sm:$0xff]
      %v620 = vld [vmem:[#allocation2 + $0x58] sm:$0xff]
      %v621 = vld [vmem:[#allocation2 + $0x60] sm:$0xff]
      %v622 = vld [vmem:[#allocation2 + $0x68] sm:$0xff]
      %v623 = vld [vmem:[#allocation2 + $0x70] sm:$0xff]
      %v624 = vld [vmem:[#allocation2 + $0x78] sm:$0xff]
      %v625 = vld [vmem:[#allocation2 + $0x80] sm:$0xff]
      %v626 = vld [vmem:[#allocation2 + $0x88] sm:$0xff]
      %s627 = scalar_lea.vmem %s1, 4
      %v628 = vld [vmem:[%s627] sm:$0x3]
      %v630 = vsel %vm293, %v600, 0
      %v633 = vsel %vm293, %v601, 0
      %v636 = vsel %vm293, %v602, 0
      %v639 = vsel %vm293, %v603, 0
      %v642 = vsel %vm293, %v604, 0
      %v645 = vsel %vm293, %v605, 0
      %v648 = vsel %vm293, %v606, 0
      %v651 = vsel %vm293, %v607, 0
      %v654 = vsel %vm293, %v608, 0
      %v657 = vsel %vm321, %v628, 0
      %659 = vmatpush.bf16.msra.mxu0 0
      %660 = vmatpush.bf16.msra.mxu0 0
      %661 = vmatpush.bf16.msra.mxu0 0
      %662 = vmatpush.bf16.msra.mxu0 0
      %663 = vmatpush.bf16.msra.mxu0 0
      %664 = vmatpush.bf16.msra.mxu0 0
      %665 = vmatpush.bf16.msra.mxu0 0
      %666 = vmatpush.bf16.msra.mxu0 %v657
      %667 = vmatmul.bf16.gmra.mxu0 %v630
      %v668 = vpop.f32.mrf.mxu0
      %v669 = vadd.f32 0.0, %v668
      %v670 = vpop.f32.mrf.mxu0
      %v671 = vadd.f32 0.0, %v670
      %672 = vmatmul.bf16.gmra.mxu0 %v633
      %v673 = vpop.f32.mrf.mxu0
      %v674 = vadd.f32 0.0, %v673
      %v675 = vpop.f32.mrf.mxu0
      %v676 = vadd.f32 0.0, %v675
      %677 = vmatmul.bf16.gmra.mxu0 %v636
      %v678 = vpop.f32.mrf.mxu0
      %v679 = vadd.f32 0.0, %v678
      %v680 = vpop.f32.mrf.mxu0
      %v681 = vadd.f32 0.0, %v680
      %682 = vmatmul.bf16.gmra.mxu0 %v639
      %v683 = vpop.f32.mrf.mxu0
      %v684 = vadd.f32 0.0, %v683
      %v685 = vpop.f32.mrf.mxu0
      %v686 = vadd.f32 0.0, %v685
      %687 = vmatmul.bf16.gmra.mxu0 %v642
      %v688 = vpop.f32.mrf.mxu0
      %v689 = vadd.f32 0.0, %v688
      %v690 = vpop.f32.mrf.mxu0
      %v691 = vadd.f32 0.0, %v690
      %692 = vmatmul.bf16.gmra.mxu0 %v645
      %v693 = vpop.f32.mrf.mxu0
      %v694 = vadd.f32 0.0, %v693
      %v695 = vpop.f32.mrf.mxu0
      %v696 = vadd.f32 0.0, %v695
      %697 = vmatmul.bf16.gmra.mxu0 %v648
      %v698 = vpop.f32.mrf.mxu0
      %v699 = vadd.f32 0.0, %v698
      %v700 = vpop.f32.mrf.mxu0
      %v701 = vadd.f32 0.0, %v700
      %702 = vmatmul.bf16.gmra.mxu0 %v651
      %v703 = vpop.f32.mrf.mxu0
      %v704 = vadd.f32 0.0, %v703
      %v705 = vpop.f32.mrf.mxu0
      %v706 = vadd.f32 0.0, %v705
      %707 = vmatmul.bf16.gmra.mxu0 %v654
      %v708 = vpop.f32.mrf.mxu0
      %v709 = vadd.f32 0.0, %v708
      %v710 = vpop.f32.mrf.mxu0
      %v711 = vadd.f32 0.0, %v710
      %712 = vdwg.mxu0
      %v713 = vadd.f32 %v609, %v669
      %v714 = vadd.f32 %v610, %v671
      %v715 = vadd.f32 %v611, %v674
      %v716 = vadd.f32 %v612, %v676
      %v717 = vadd.f32 %v613, %v679
      %v718 = vadd.f32 %v614, %v681
      %v719 = vadd.f32 %v615, %v684
      %v720 = vadd.f32 %v616, %v686
      %v721 = vadd.f32 %v617, %v689
      %v722 = vadd.f32 %v618, %v691
      %v723 = vadd.f32 %v619, %v694
      %v724 = vadd.f32 %v620, %v696
      %v725 = vadd.f32 %v621, %v699
      %v726 = vadd.f32 %v622, %v701
      %v727 = vadd.f32 %v623, %v704
      %v728 = vadd.f32 %v624, %v706
      %v729 = vadd.f32 %v625, %v709
      %v730 = vadd.f32 %v626, %v711
      %731 = vst [vmem:[#allocation2] sm:$0xff] %v713
      %732 = vst [vmem:[#allocation2 + $0x8] sm:$0xff] %v714
      %733 = vst [vmem:[#allocation2 + $0x10] sm:$0xff] %v715
      %734 = vst [vmem:[#allocation2 + $0x18] sm:$0xff] %v716
      %735 = vst [vmem:[#allocation2 + $0x20] sm:$0xff] %v717
      %736 = vst [vmem:[#allocation2 + $0x28] sm:$0xff] %v718
      %737 = vst [vmem:[#allocation2 + $0x30] sm:$0xff] %v719
      %738 = vst [vmem:[#allocation2 + $0x38] sm:$0xff] %v720
      %739 = vst [vmem:[#allocation2 + $0x40] sm:$0xff] %v721
      %740 = vst [vmem:[#allocation2 + $0x48] sm:$0xff] %v722
      %741 = vst [vmem:[#allocation2 + $0x50] sm:$0xff] %v723
      %742 = vst [vmem:[#allocation2 + $0x58] sm:$0xff] %v724
      %743 = vst [vmem:[#allocation2 + $0x60] sm:$0xff] %v725
      %744 = vst [vmem:[#allocation2 + $0x68] sm:$0xff] %v726
      %745 = vst [vmem:[#allocation2 + $0x70] sm:$0xff] %v727
      %746 = vst [vmem:[#allocation2 + $0x78] sm:$0xff] %v728
      %747 = vst [vmem:[#allocation2 + $0x80] sm:$0xff] %v729
      %748 = vst [vmem:[#allocation2 + $0x88] sm:$0xff] %v730
      %v749 = vld [vmem:[%s210 + $0x12] sm:$0xff]
      %v750 = vld [vmem:[%s210 + $0x1a] sm:$0xff]
      %v751 = vld [vmem:[%s210 + $0x22] sm:$0xff]
      %v752 = vld [vmem:[%s210 + $0x2a] sm:$0xff]
      %v753 = vld [vmem:[%s210 + $0x32] sm:$0xff]
      %v754 = vld [vmem:[%s210 + $0x3a] sm:$0xff]
      %v755 = vld [vmem:[%s210 + $0x42] sm:$0xff]
      %v756 = vld [vmem:[%s210 + $0x4a] sm:$0xff]
      %v757 = vld [vmem:[%s210 + $0x52] sm:$0xff]
      %v758 = vld [vmem:[%s210 + $0x5a] sm:$0xff]
      %v759 = vld [vmem:[%s210 + $0x62] sm:$0xff]
      %v760 = vld [vmem:[%s210 + $0x6a] sm:$0xff]
      %v761 = vld [vmem:[%s210 + $0x72] sm:$0xff]
      %v762 = vld [vmem:[%s210 + $0x7a] sm:$0xff]
      %v763 = vld [vmem:[%s210 + $0x82] sm:$0xff]
      %v764 = vld [vmem:[%s210 + $0x8a] sm:$0xff]
      %v765 = vld [vmem:[%s210 + $0x92] sm:$0xff]
      %v766 = vld [vmem:[%s210 + $0x9a] sm:$0xff]
      %v767 = vpack.c.bf16 %v750, %v749
      %v768 = vpack.c.bf16 %v752, %v751
      %v769 = vpack.c.bf16 %v754, %v753
      %v770 = vpack.c.bf16 %v756, %v755
      %v771 = vpack.c.bf16 %v758, %v757
      %v772 = vpack.c.bf16 %v760, %v759
      %v773 = vpack.c.bf16 %v762, %v761
      %v774 = vpack.c.bf16 %v764, %v763
      %v775 = vpack.c.bf16 %v766, %v765
      %v776 = vld [vmem:[#allocation2] sm:$0xff]
      %v777 = vld [vmem:[#allocation2 + $0x8] sm:$0xff]
      %v778 = vld [vmem:[#allocation2 + $0x10] sm:$0xff]
      %v779 = vld [vmem:[#allocation2 + $0x18] sm:$0xff]
      %v780 = vld [vmem:[#allocation2 + $0x20] sm:$0xff]
      %v781 = vld [vmem:[#allocation2 + $0x28] sm:$0xff]
      %v782 = vld [vmem:[#allocation2 + $0x30] sm:$0xff]
      %v783 = vld [vmem:[#allocation2 + $0x38] sm:$0xff]
      %v784 = vld [vmem:[#allocation2 + $0x40] sm:$0xff]
      %v785 = vld [vmem:[#allocation2 + $0x48] sm:$0xff]
      %v786 = vld [vmem:[#allocation2 + $0x50] sm:$0xff]
      %v787 = vld [vmem:[#allocation2 + $0x58] sm:$0xff]
      %v788 = vld [vmem:[#allocation2 + $0x60] sm:$0xff]
      %v789 = vld [vmem:[#allocation2 + $0x68] sm:$0xff]
      %v790 = vld [vmem:[#allocation2 + $0x70] sm:$0xff]
      %v791 = vld [vmem:[#allocation2 + $0x78] sm:$0xff]
      %v792 = vld [vmem:[#allocation2 + $0x80] sm:$0xff]
      %v793 = vld [vmem:[#allocation2 + $0x88] sm:$0xff]
      %s794 = scalar_lea.vmem %s1, 6
      %v795 = vld [vmem:[%s794] sm:$0x3]
      %v797 = vsel %vm293, %v767, 0
      %v800 = vsel %vm293, %v768, 0
      %v803 = vsel %vm293, %v769, 0
      %v806 = vsel %vm293, %v770, 0
      %v809 = vsel %vm293, %v771, 0
      %v812 = vsel %vm293, %v772, 0
      %v815 = vsel %vm293, %v773, 0
      %v818 = vsel %vm293, %v774, 0
      %v821 = vsel %vm293, %v775, 0
      %v824 = vsel %vm321, %v795, 0
      %826 = vmatpush.bf16.msra.mxu0 0
      %827 = vmatpush.bf16.msra.mxu0 0
      %828 = vmatpush.bf16.msra.mxu0 0
      %829 = vmatpush.bf16.msra.mxu0 0
      %830 = vmatpush.bf16.msra.mxu0 0
      %831 = vmatpush.bf16.msra.mxu0 0
      %832 = vmatpush.bf16.msra.mxu0 0
      %833 = vmatpush.bf16.msra.mxu0 %v824
      %834 = vmatmul.bf16.gmra.mxu0 %v797
      %v835 = vpop.f32.mrf.mxu0
      %v836 = vadd.f32 0.0, %v835
      %v837 = vpop.f32.mrf.mxu0
      %v838 = vadd.f32 0.0, %v837
      %839 = vmatmul.bf16.gmra.mxu0 %v800
      %v840 = vpop.f32.mrf.mxu0
      %v841 = vadd.f32 0.0, %v840
      %v842 = vpop.f32.mrf.mxu0
      %v843 = vadd.f32 0.0, %v842
      %844 = vmatmul.bf16.gmra.mxu0 %v803
      %v845 = vpop.f32.mrf.mxu0
      %v846 = vadd.f32 0.0, %v845
      %v847 = vpop.f32.mrf.mxu0
      %v848 = vadd.f32 0.0, %v847
      %849 = vmatmul.bf16.gmra.mxu0 %v806
      %v850 = vpop.f32.mrf.mxu0
      %v851 = vadd.f32 0.0, %v850
      %v852 = vpop.f32.mrf.mxu0
      %v853 = vadd.f32 0.0, %v852
      %854 = vmatmul.bf16.gmra.mxu0 %v809
      %v855 = vpop.f32.mrf.mxu0
      %v856 = vadd.f32 0.0, %v855
      %v857 = vpop.f32.mrf.mxu0
      %v858 = vadd.f32 0.0, %v857
      %859 = vmatmul.bf16.gmra.mxu0 %v812
      %v860 = vpop.f32.mrf.mxu0
      %v861 = vadd.f32 0.0, %v860
      %v862 = vpop.f32.mrf.mxu0
      %v863 = vadd.f32 0.0, %v862
      %864 = vmatmul.bf16.gmra.mxu0 %v815
      %v865 = vpop.f32.mrf.mxu0
      %v866 = vadd.f32 0.0, %v865
      %v867 = vpop.f32.mrf.mxu0
      %v868 = vadd.f32 0.0, %v867
      %869 = vmatmul.bf16.gmra.mxu0 %v818
      %v870 = vpop.f32.mrf.mxu0
      %v871 = vadd.f32 0.0, %v870
      %v872 = vpop.f32.mrf.mxu0
      %v873 = vadd.f32 0.0, %v872
      %874 = vmatmul.bf16.gmra.mxu0 %v821
      %v875 = vpop.f32.mrf.mxu0
      %v876 = vadd.f32 0.0, %v875
      %v877 = vpop.f32.mrf.mxu0
      %v878 = vadd.f32 0.0, %v877
      %879 = vdwg.mxu0
      %v880 = vadd.f32 %v776, %v836
      %v881 = vadd.f32 %v777, %v838
      %v882 = vadd.f32 %v778, %v841
      %v883 = vadd.f32 %v779, %v843
      %v884 = vadd.f32 %v780, %v846
      %v885 = vadd.f32 %v781, %v848
      %v886 = vadd.f32 %v782, %v851
      %v887 = vadd.f32 %v783, %v853
      %v888 = vadd.f32 %v784, %v856
      %v889 = vadd.f32 %v785, %v858
      %v890 = vadd.f32 %v786, %v861
      %v891 = vadd.f32 %v787, %v863
      %v892 = vadd.f32 %v788, %v866
      %v893 = vadd.f32 %v789, %v868
      %v894 = vadd.f32 %v790, %v871
      %v895 = vadd.f32 %v791, %v873
      %v896 = vadd.f32 %v792, %v876
      %v897 = vadd.f32 %v793, %v878
      %898 = vst [vmem:[#allocation2] sm:$0xff] %v880
      %899 = vst [vmem:[#allocation2 + $0x8] sm:$0xff] %v881
      %900 = vst [vmem:[#allocation2 + $0x10] sm:$0xff] %v882
      %901 = vst [vmem:[#allocation2 + $0x18] sm:$0xff] %v883
      %902 = vst [vmem:[#allocation2 + $0x20] sm:$0xff] %v884
      %903 = vst [vmem:[#allocation2 + $0x28] sm:$0xff] %v885
      %904 = vst [vmem:[#allocation2 + $0x30] sm:$0xff] %v886
      %905 = vst [vmem:[#allocation2 + $0x38] sm:$0xff] %v887
      %906 = vst [vmem:[#allocation2 + $0x40] sm:$0xff] %v888
      %907 = vst [vmem:[#allocation2 + $0x48] sm:$0xff] %v889
      %908 = vst [vmem:[#allocation2 + $0x50] sm:$0xff] %v890
      %909 = vst [vmem:[#allocation2 + $0x58] sm:$0xff] %v891
      %910 = vst [vmem:[#allocation2 + $0x60] sm:$0xff] %v892
      %911 = vst [vmem:[#allocation2 + $0x68] sm:$0xff] %v893
      %912 = vst [vmem:[#allocation2 + $0x70] sm:$0xff] %v894
      %913 = vst [vmem:[#allocation2 + $0x78] sm:$0xff] %v895
      %914 = vst [vmem:[#allocation2 + $0x80] sm:$0xff] %v896
      %915 = vst [vmem:[#allocation2 + $0x88] sm:$0xff] %v897
      %v916 = vld [vmem:[%s210 + $0x13] sm:$0xff]
      %v917 = vld [vmem:[%s210 + $0x1b] sm:$0xff]
      %v918 = vld [vmem:[%s210 + $0x23] sm:$0xff]
      %v919 = vld [vmem:[%s210 + $0x2b] sm:$0xff]
      %v920 = vld [vmem:[%s210 + $0x33] sm:$0xff]
      %v921 = vld [vmem:[%s210 + $0x3b] sm:$0xff]
      %v922 = vld [vmem:[%s210 + $0x43] sm:$0xff]
      %v923 = vld [vmem:[%s210 + $0x4b] sm:$0xff]
      %v924 = vld [vmem:[%s210 + $0x53] sm:$0xff]
      %v925 = vld [vmem:[%s210 + $0x5b] sm:$0xff]
      %v926 = vld [vmem:[%s210 + $0x63] sm:$0xff]
      %v927 = vld [vmem:[%s210 + $0x6b] sm:$0xff]
      %v928 = vld [vmem:[%s210 + $0x73] sm:$0xff]
      %v929 = vld [vmem:[%s210 + $0x7b] sm:$0xff]
      %v930 = vld [vmem:[%s210 + $0x83] sm:$0xff]
      %v931 = vld [vmem:[%s210 + $0x8b] sm:$0xff]
      %v932 = vld [vmem:[%s210 + $0x93] sm:$0xff]
      %v933 = vld [vmem:[%s210 + $0x9b] sm:$0xff]
      %v934 = vpack.c.bf16 %v917, %v916
      %v935 = vpack.c.bf16 %v919, %v918
      %v936 = vpack.c.bf16 %v921, %v920
      %v937 = vpack.c.bf16 %v923, %v922
      %v938 = vpack.c.bf16 %v925, %v924
      %v939 = vpack.c.bf16 %v927, %v926
      %v940 = vpack.c.bf16 %v929, %v928
      %v941 = vpack.c.bf16 %v931, %v930
      %v942 = vpack.c.bf16 %v933, %v932
      %v943 = vld [vmem:[#allocation2] sm:$0xff]
      %v944 = vld [vmem:[#allocation2 + $0x8] sm:$0xff]
      %v945 = vld [vmem:[#allocation2 + $0x10] sm:$0xff]
      %v946 = vld [vmem:[#allocation2 + $0x18] sm:$0xff]
      %v947 = vld [vmem:[#allocation2 + $0x20] sm:$0xff]
      %v948 = vld [vmem:[#allocation2 + $0x28] sm:$0xff]
      %v949 = vld [vmem:[#allocation2 + $0x30] sm:$0xff]
      %v950 = vld [vmem:[#allocation2 + $0x38] sm:$0xff]
      %v951 = vld [vmem:[#allocation2 + $0x40] sm:$0xff]
      %v952 = vld [vmem:[#allocation2 + $0x48] sm:$0xff]
      %v953 = vld [vmem:[#allocation2 + $0x50] sm:$0xff]
      %v954 = vld [vmem:[#allocation2 + $0x58] sm:$0xff]
      %v955 = vld [vmem:[#allocation2 + $0x60] sm:$0xff]
      %v956 = vld [vmem:[#allocation2 + $0x68] sm:$0xff]
      %v957 = vld [vmem:[#allocation2 + $0x70] sm:$0xff]
      %v958 = vld [vmem:[#allocation2 + $0x78] sm:$0xff]
      %v959 = vld [vmem:[#allocation2 + $0x80] sm:$0xff]
      %v960 = vld [vmem:[#allocation2 + $0x88] sm:$0xff]
      %s961 = scalar_lea.vmem %s1, 8
      %v962 = vld [vmem:[%s961] sm:$0x3]
      %v964 = vsel %vm293, %v934, 0
      %v967 = vsel %vm293, %v935, 0
      %v970 = vsel %vm293, %v936, 0
      %v973 = vsel %vm293, %v937, 0
      %v976 = vsel %vm293, %v938, 0
      %v979 = vsel %vm293, %v939, 0
      %v982 = vsel %vm293, %v940, 0
      %v985 = vsel %vm293, %v941, 0
      %v988 = vsel %vm293, %v942, 0
      %v991 = vsel %vm321, %v962, 0
      %993 = vmatpush.bf16.msra.mxu0 0
      %994 = vmatpush.bf16.msra.mxu0 0
      %995 = vmatpush.bf16.msra.mxu0 0
      %996 = vmatpush.bf16.msra.mxu0 0
      %997 = vmatpush.bf16.msra.mxu0 0
      %998 = vmatpush.bf16.msra.mxu0 0
      %999 = vmatpush.bf16.msra.mxu0 0
      %1000 = vmatpush.bf16.msra.mxu0 %v991
      %1001 = vmatmul.bf16.gmra.mxu0 %v964
      %v1002 = vpop.f32.mrf.mxu0
      %v1003 = vadd.f32 0.0, %v1002
      %v1004 = vpop.f32.mrf.mxu0
      %v1005 = vadd.f32 0.0, %v1004
      %1006 = vmatmul.bf16.gmra.mxu0 %v967
      %v1007 = vpop.f32.mrf.mxu0
      %v1008 = vadd.f32 0.0, %v1007
      %v1009 = vpop.f32.mrf.mxu0
      %v1010 = vadd.f32 0.0, %v1009
      %1011 = vmatmul.bf16.gmra.mxu0 %v970
      %v1012 = vpop.f32.mrf.mxu0
      %v1013 = vadd.f32 0.0, %v1012
      %v1014 = vpop.f32.mrf.mxu0
      %v1015 = vadd.f32 0.0, %v1014
      %1016 = vmatmul.bf16.gmra.mxu0 %v973
      %v1017 = vpop.f32.mrf.mxu0
      %v1018 = vadd.f32 0.0, %v1017
      %v1019 = vpop.f32.mrf.mxu0
      %v1020 = vadd.f32 0.0, %v1019
      %1021 = vmatmul.bf16.gmra.mxu0 %v976
      %v1022 = vpop.f32.mrf.mxu0
      %v1023 = vadd.f32 0.0, %v1022
      %v1024 = vpop.f32.mrf.mxu0
      %v1025 = vadd.f32 0.0, %v1024
      %1026 = vmatmul.bf16.gmra.mxu0 %v979
      %v1027 = vpop.f32.mrf.mxu0
      %v1028 = vadd.f32 0.0, %v1027
      %v1029 = vpop.f32.mrf.mxu0
      %v1030 = vadd.f32 0.0, %v1029
      %1031 = vmatmul.bf16.gmra.mxu0 %v982
      %v1032 = vpop.f32.mrf.mxu0
      %v1033 = vadd.f32 0.0, %v1032
      %v1034 = vpop.f32.mrf.mxu0
      %v1035 = vadd.f32 0.0, %v1034
      %1036 = vmatmul.bf16.gmra.mxu0 %v985
      %v1037 = vpop.f32.mrf.mxu0
      %v1038 = vadd.f32 0.0, %v1037
      %v1039 = vpop.f32.mrf.mxu0
      %v1040 = vadd.f32 0.0, %v1039
      %1041 = vmatmul.bf16.gmra.mxu0 %v988
      %v1042 = vpop.f32.mrf.mxu0
      %v1043 = vadd.f32 0.0, %v1042
      %v1044 = vpop.f32.mrf.mxu0
      %v1045 = vadd.f32 0.0, %v1044
      %1046 = vdwg.mxu0
      %v1047 = vadd.f32 %v943, %v1003
      %v1048 = vadd.f32 %v944, %v1005
      %v1049 = vadd.f32 %v945, %v1008
      %v1050 = vadd.f32 %v946, %v1010
      %v1051 = vadd.f32 %v947, %v1013
      %v1052 = vadd.f32 %v948, %v1015
      %v1053 = vadd.f32 %v949, %v1018
      %v1054 = vadd.f32 %v950, %v1020
      %v1055 = vadd.f32 %v951, %v1023
      %v1056 = vadd.f32 %v952, %v1025
      %v1057 = vadd.f32 %v953, %v1028
      %v1058 = vadd.f32 %v954, %v1030
      %v1059 = vadd.f32 %v955, %v1033
      %v1060 = vadd.f32 %v956, %v1035
      %v1061 = vadd.f32 %v957, %v1038
      %v1062 = vadd.f32 %v958, %v1040
      %v1063 = vadd.f32 %v959, %v1043
      %v1064 = vadd.f32 %v960, %v1045
      %1065 = vst [vmem:[#allocation2] sm:$0xff] %v1047
      %1066 = vst [vmem:[#allocation2 + $0x8] sm:$0xff] %v1048
      %1067 = vst [vmem:[#allocation2 + $0x10] sm:$0xff] %v1049
      %1068 = vst [vmem:[#allocation2 + $0x18] sm:$0xff] %v1050
      %1069 = vst [vmem:[#allocation2 + $0x20] sm:$0xff] %v1051
      %1070 = vst [vmem:[#allocation2 + $0x28] sm:$0xff] %v1052
      %1071 = vst [vmem:[#allocation2 + $0x30] sm:$0xff] %v1053
      %1072 = vst [vmem:[#allocation2 + $0x38] sm:$0xff] %v1054
      %1073 = vst [vmem:[#allocation2 + $0x40] sm:$0xff] %v1055
      %1074 = vst [vmem:[#allocation2 + $0x48] sm:$0xff] %v1056
      %1075 = vst [vmem:[#allocation2 + $0x50] sm:$0xff] %v1057
      %1076 = vst [vmem:[#allocation2 + $0x58] sm:$0xff] %v1058
      %1077 = vst [vmem:[#allocation2 + $0x60] sm:$0xff] %v1059
      %1078 = vst [vmem:[#allocation2 + $0x68] sm:$0xff] %v1060
      %1079 = vst [vmem:[#allocation2 + $0x70] sm:$0xff] %v1061
      %1080 = vst [vmem:[#allocation2 + $0x78] sm:$0xff] %v1062
      %1081 = vst [vmem:[#allocation2 + $0x80] sm:$0xff] %v1063
      %1082 = vst [vmem:[#allocation2 + $0x88] sm:$0xff] %v1064
      %v1083 = vld [vmem:[%s210 + $0x14] sm:$0xff]
      %v1084 = vld [vmem:[%s210 + $0x1c] sm:$0xff]
      %v1085 = vld [vmem:[%s210 + $0x24] sm:$0xff]
      %v1086 = vld [vmem:[%s210 + $0x2c] sm:$0xff]
      %v1087 = vld [vmem:[%s210 + $0x34] sm:$0xff]
      %v1088 = vld [vmem:[%s210 + $0x3c] sm:$0xff]
      %v1089 = vld [vmem:[%s210 + $0x44] sm:$0xff]
      %v1090 = vld [vmem:[%s210 + $0x4c] sm:$0xff]
      %v1091 = vld [vmem:[%s210 + $0x54] sm:$0xff]
      %v1092 = vld [vmem:[%s210 + $0x5c] sm:$0xff]
      %v1093 = vld [vmem:[%s210 + $0x64] sm:$0xff]
      %v1094 = vld [vmem:[%s210 + $0x6c] sm:$0xff]
      %v1095 = vld [vmem:[%s210 + $0x74] sm:$0xff]
      %v1096 = vld [vmem:[%s210 + $0x7c] sm:$0xff]
      %v1097 = vld [vmem:[%s210 + $0x84] sm:$0xff]
      %v1098 = vld [vmem:[%s210 + $0x8c] sm:$0xff]
      %v1099 = vld [vmem:[%s210 + $0x94] sm:$0xff]
      %v1100 = vld [vmem:[%s210 + $0x9c] sm:$0xff]
      %v1101 = vpack.c.bf16 %v1084, %v1083
      %v1102 = vpack.c.bf16 %v1086, %v1085
      %v1103 = vpack.c.bf16 %v1088, %v1087
      %v1104 = vpack.c.bf16 %v1090, %v1089
      %v1105 = vpack.c.bf16 %v1092, %v1091
      %v1106 = vpack.c.bf16 %v1094, %v1093
      %v1107 = vpack.c.bf16 %v1096, %v1095
      %v1108 = vpack.c.bf16 %v1098, %v1097
      %v1109 = vpack.c.bf16 %v1100, %v1099
      %v1110 = vld [vmem:[#allocation2] sm:$0xff]
      %v1111 = vld [vmem:[#allocation2 + $0x8] sm:$0xff]
      %v1112 = vld [vmem:[#allocation2 + $0x10] sm:$0xff]
      %v1113 = vld [vmem:[#allocation2 + $0x18] sm:$0xff]
      %v1114 = vld [vmem:[#allocation2 + $0x20] sm:$0xff]
      %v1115 = vld [vmem:[#allocation2 + $0x28] sm:$0xff]
      %v1116 = vld [vmem:[#allocation2 + $0x30] sm:$0xff]
      %v1117 = vld [vmem:[#allocation2 + $0x38] sm:$0xff]
      %v1118 = vld [vmem:[#allocation2 + $0x40] sm:$0xff]
      %v1119 = vld [vmem:[#allocation2 + $0x48] sm:$0xff]
      %v1120 = vld [vmem:[#allocation2 + $0x50] sm:$0xff]
      %v1121 = vld [vmem:[#allocation2 + $0x58] sm:$0xff]
      %v1122 = vld [vmem:[#allocation2 + $0x60] sm:$0xff]
      %v1123 = vld [vmem:[#allocation2 + $0x68] sm:$0xff]
      %v1124 = vld [vmem:[#allocation2 + $0x70] sm:$0xff]
      %v1125 = vld [vmem:[#allocation2 + $0x78] sm:$0xff]
      %v1126 = vld [vmem:[#allocation2 + $0x80] sm:$0xff]
      %v1127 = vld [vmem:[#allocation2 + $0x88] sm:$0xff]
      %s1128 = scalar_lea.vmem %s1, 10
      %v1129 = vld [vmem:[%s1128] sm:$0x3]
      %v1131 = vsel %vm293, %v1101, 0
      %v1134 = vsel %vm293, %v1102, 0
      %v1137 = vsel %vm293, %v1103, 0
      %v1140 = vsel %vm293, %v1104, 0
      %v1143 = vsel %vm293, %v1105, 0
      %v1146 = vsel %vm293, %v1106, 0
      %v1149 = vsel %vm293, %v1107, 0
      %v1152 = vsel %vm293, %v1108, 0
      %v1155 = vsel %vm293, %v1109, 0
      %v1158 = vsel %vm321, %v1129, 0
      %1160 = vmatpush.bf16.msra.mxu0 0
      %1161 = vmatpush.bf16.msra.mxu0 0
      %1162 = vmatpush.bf16.msra.mxu0 0
      %1163 = vmatpush.bf16.msra.mxu0 0
      %1164 = vmatpush.bf16.msra.mxu0 0
      %1165 = vmatpush.bf16.msra.mxu0 0
      %1166 = vmatpush.bf16.msra.mxu0 0
      %1167 = vmatpush.bf16.msra.mxu0 %v1158
      %1168 = vmatmul.bf16.gmra.mxu0 %v1131
      %v1169 = vpop.f32.mrf.mxu0
      %v1170 = vadd.f32 0.0, %v1169
      %v1171 = vpop.f32.mrf.mxu0
      %v1172 = vadd.f32 0.0, %v1171
      %1173 = vmatmul.bf16.gmra.mxu0 %v1134
      %v1174 = vpop.f32.mrf.mxu0
      %v1175 = vadd.f32 0.0, %v1174
      %v1176 = vpop.f32.mrf.mxu0
      %v1177 = vadd.f32 0.0, %v1176
      %1178 = vmatmul.bf16.gmra.mxu0 %v1137
      %v1179 = vpop.f32.mrf.mxu0
      %v1180 = vadd.f32 0.0, %v1179
      %v1181 = vpop.f32.mrf.mxu0
      %v1182 = vadd.f32 0.0, %v1181
      %1183 = vmatmul.bf16.gmra.mxu0 %v1140
      %v1184 = vpop.f32.mrf.mxu0
      %v1185 = vadd.f32 0.0, %v1184
      %v1186 = vpop.f32.mrf.mxu0
      %v1187 = vadd.f32 0.0, %v1186
      %1188 = vmatmul.bf16.gmra.mxu0 %v1143
      %v1189 = vpop.f32.mrf.mxu0
      %v1190 = vadd.f32 0.0, %v1189
      %v1191 = vpop.f32.mrf.mxu0
      %v1192 = vadd.f32 0.0, %v1191
      %1193 = vmatmul.bf16.gmra.mxu0 %v1146
      %v1194 = vpop.f32.mrf.mxu0
      %v1195 = vadd.f32 0.0, %v1194
      %v1196 = vpop.f32.mrf.mxu0
      %v1197 = vadd.f32 0.0, %v1196
      %1198 = vmatmul.bf16.gmra.mxu0 %v1149
      %v1199 = vpop.f32.mrf.mxu0
      %v1200 = vadd.f32 0.0, %v1199
      %v1201 = vpop.f32.mrf.mxu0
      %v1202 = vadd.f32 0.0, %v1201
      %1203 = vmatmul.bf16.gmra.mxu0 %v1152
      %v1204 = vpop.f32.mrf.mxu0
      %v1205 = vadd.f32 0.0, %v1204
      %v1206 = vpop.f32.mrf.mxu0
      %v1207 = vadd.f32 0.0, %v1206
      %1208 = vmatmul.bf16.gmra.mxu0 %v1155
      %v1209 = vpop.f32.mrf.mxu0
      %v1210 = vadd.f32 0.0, %v1209
      %v1211 = vpop.f32.mrf.mxu0
      %v1212 = vadd.f32 0.0, %v1211
      %1213 = vdwg.mxu0
      %v1214 = vadd.f32 %v1110, %v1170
      %v1215 = vadd.f32 %v1111, %v1172
      %v1216 = vadd.f32 %v1112, %v1175
      %v1217 = vadd.f32 %v1113, %v1177
      %v1218 = vadd.f32 %v1114, %v1180
      %v1219 = vadd.f32 %v1115, %v1182
      %v1220 = vadd.f32 %v1116, %v1185
      %v1221 = vadd.f32 %v1117, %v1187
      %v1222 = vadd.f32 %v1118, %v1190
      %v1223 = vadd.f32 %v1119, %v1192
      %v1224 = vadd.f32 %v1120, %v1195
      %v1225 = vadd.f32 %v1121, %v1197
      %v1226 = vadd.f32 %v1122, %v1200
      %v1227 = vadd.f32 %v1123, %v1202
      %v1228 = vadd.f32 %v1124, %v1205
      %v1229 = vadd.f32 %v1125, %v1207
      %v1230 = vadd.f32 %v1126, %v1210
      %v1231 = vadd.f32 %v1127, %v1212
      %1232 = vst [vmem:[#allocation2] sm:$0xff] %v1214
      %1233 = vst [vmem:[#allocation2 + $0x8] sm:$0xff] %v1215
      %1234 = vst [vmem:[#allocation2 + $0x10] sm:$0xff] %v1216
      %1235 = vst [vmem:[#allocation2 + $0x18] sm:$0xff] %v1217
      %1236 = vst [vmem:[#allocation2 + $0x20] sm:$0xff] %v1218
      %1237 = vst [vmem:[#allocation2 + $0x28] sm:$0xff] %v1219
      %1238 = vst [vmem:[#allocation2 + $0x30] sm:$0xff] %v1220
      %1239 = vst [vmem:[#allocation2 + $0x38] sm:$0xff] %v1221
      %1240 = vst [vmem:[#allocation2 + $0x40] sm:$0xff] %v1222
      %1241 = vst [vmem:[#allocation2 + $0x48] sm:$0xff] %v1223
      %1242 = vst [vmem:[#allocation2 + $0x50] sm:$0xff] %v1224
      %1243 = vst [vmem:[#allocation2 + $0x58] sm:$0xff] %v1225
      %1244 = vst [vmem:[#allocation2 + $0x60] sm:$0xff] %v1226
      %1245 = vst [vmem:[#allocation2 + $0x68] sm:$0xff] %v1227
      %1246 = vst [vmem:[#allocation2 + $0x70] sm:$0xff] %v1228
      %1247 = vst [vmem:[#allocation2 + $0x78] sm:$0xff] %v1229
      %1248 = vst [vmem:[#allocation2 + $0x80] sm:$0xff] %v1230
      %1249 = vst [vmem:[#allocation2 + $0x88] sm:$0xff] %v1231
      %v1250 = vld [vmem:[%s210 + $0x24] sm:$0xff]
      %v1251 = vld [vmem:[%s210 + $0x2c] sm:$0xff]
      %v1252 = vld [vmem:[%s210 + $0x34] sm:$0xff]
      %v1253 = vld [vmem:[%s210 + $0x3c] sm:$0xff]
      %v1254 = vld [vmem:[%s210 + $0x44] sm:$0xff]
      %v1255 = vld [vmem:[%s210 + $0x4c] sm:$0xff]
      %v1256 = vld [vmem:[%s210 + $0x54] sm:$0xff]
      %v1257 = vld [vmem:[%s210 + $0x5c] sm:$0xff]
      %v1258 = vld [vmem:[%s210 + $0x64] sm:$0xff]
      %v1259 = vld [vmem:[%s210 + $0x6c] sm:$0xff]
      %v1260 = vld [vmem:[%s210 + $0x74] sm:$0xff]
      %v1261 = vld [vmem:[%s210 + $0x7c] sm:$0xff]
      %v1262 = vld [vmem:[%s210 + $0x84] sm:$0xff]
      %v1263 = vld [vmem:[%s210 + $0x8c] sm:$0xff]
      %v1264 = vld [vmem:[%s210 + $0x94] sm:$0xff]
      %v1265 = vld [vmem:[%s210 + $0x9c] sm:$0xff]
      %v1266 = vld [vmem:[%s210 + $0xa4] sm:$0xff]
      %v1267 = vld [vmem:[%s210 + $0xac] sm:$0xff]
      %v1268 = vpack.c.bf16 %v1251, %v1250
      %v1269 = vpack.c.bf16 %v1253, %v1252
      %v1270 = vpack.c.bf16 %v1255, %v1254
      %v1271 = vpack.c.bf16 %v1257, %v1256
      %v1272 = vpack.c.bf16 %v1259, %v1258
      %v1273 = vpack.c.bf16 %v1261, %v1260
      %v1274 = vpack.c.bf16 %v1263, %v1262
      %v1275 = vpack.c.bf16 %v1265, %v1264
      %v1276 = vpack.c.bf16 %v1267, %v1266
      %v1277 = vld [vmem:[#allocation2] sm:$0xff]
      %v1278 = vld [vmem:[#allocation2 + $0x8] sm:$0xff]
      %v1279 = vld [vmem:[#allocation2 + $0x10] sm:$0xff]
      %v1280 = vld [vmem:[#allocation2 + $0x18] sm:$0xff]
      %v1281 = vld [vmem:[#allocation2 + $0x20] sm:$0xff]
      %v1282 = vld [vmem:[#allocation2 + $0x28] sm:$0xff]
      %v1283 = vld [vmem:[#allocation2 + $0x30] sm:$0xff]
      %v1284 = vld [vmem:[#allocation2 + $0x38] sm:$0xff]
      %v1285 = vld [vmem:[#allocation2 + $0x40] sm:$0xff]
      %v1286 = vld [vmem:[#allocation2 + $0x48] sm:$0xff]
      %v1287 = vld [vmem:[#allocation2 + $0x50] sm:$0xff]
      %v1288 = vld [vmem:[#allocation2 + $0x58] sm:$0xff]
      %v1289 = vld [vmem:[#allocation2 + $0x60] sm:$0xff]
      %v1290 = vld [vmem:[#allocation2 + $0x68] sm:$0xff]
      %v1291 = vld [vmem:[#allocation2 + $0x70] sm:$0xff]
      %v1292 = vld [vmem:[#allocation2 + $0x78] sm:$0xff]
      %v1293 = vld [vmem:[#allocation2 + $0x80] sm:$0xff]
      %v1294 = vld [vmem:[#allocation2 + $0x88] sm:$0xff]
      %s1295 = scalar_lea.vmem %s1, 12
      %v1296 = vld [vmem:[%s1295] sm:$0x3]
      %v1298 = vsel %vm293, %v1268, 0
      %v1301 = vsel %vm293, %v1269, 0
      %v1304 = vsel %vm293, %v1270, 0
      %v1307 = vsel %vm293, %v1271, 0
      %v1310 = vsel %vm293, %v1272, 0
      %v1313 = vsel %vm293, %v1273, 0
      %v1316 = vsel %vm293, %v1274, 0
      %v1319 = vsel %vm293, %v1275, 0
      %v1322 = vsel %vm293, %v1276, 0
      %v1325 = vsel %vm321, %v1296, 0
      %1327 = vmatpush.bf16.msra.mxu0 0
      %1328 = vmatpush.bf16.msra.mxu0 0
      %1329 = vmatpush.bf16.msra.mxu0 0
      %1330 = vmatpush.bf16.msra.mxu0 0
      %1331 = vmatpush.bf16.msra.mxu0 0
      %1332 = vmatpush.bf16.msra.mxu0 0
      %1333 = vmatpush.bf16.msra.mxu0 0
      %1334 = vmatpush.bf16.msra.mxu0 %v1325
      %1335 = vmatmul.bf16.gmra.mxu0 %v1298
      %v1336 = vpop.f32.mrf.mxu0
      %v1337 = vadd.f32 0.0, %v1336
      %v1338 = vpop.f32.mrf.mxu0
      %v1339 = vadd.f32 0.0, %v1338
      %1340 = vmatmul.bf16.gmra.mxu0 %v1301
      %v1341 = vpop.f32.mrf.mxu0
      %v1342 = vadd.f32 0.0, %v1341
      %v1343 = vpop.f32.mrf.mxu0
      %v1344 = vadd.f32 0.0, %v1343
      %1345 = vmatmul.bf16.gmra.mxu0 %v1304
      %v1346 = vpop.f32.mrf.mxu0
      %v1347 = vadd.f32 0.0, %v1346
      %v1348 = vpop.f32.mrf.mxu0
      %v1349 = vadd.f32 0.0, %v1348
      %1350 = vmatmul.bf16.gmra.mxu0 %v1307
      %v1351 = vpop.f32.mrf.mxu0
      %v1352 = vadd.f32 0.0, %v1351
      %v1353 = vpop.f32.mrf.mxu0
      %v1354 = vadd.f32 0.0, %v1353
      %1355 = vmatmul.bf16.gmra.mxu0 %v1310
      %v1356 = vpop.f32.mrf.mxu0
      %v1357 = vadd.f32 0.0, %v1356
      %v1358 = vpop.f32.mrf.mxu0
      %v1359 = vadd.f32 0.0, %v1358
      %1360 = vmatmul.bf16.gmra.mxu0 %v1313
      %v1361 = vpop.f32.mrf.mxu0
      %v1362 = vadd.f32 0.0, %v1361
      %v1363 = vpop.f32.mrf.mxu0
      %v1364 = vadd.f32 0.0, %v1363
      %1365 = vmatmul.bf16.gmra.mxu0 %v1316
      %v1366 = vpop.f32.mrf.mxu0
      %v1367 = vadd.f32 0.0, %v1366
      %v1368 = vpop.f32.mrf.mxu0
      %v1369 = vadd.f32 0.0, %v1368
      %1370 = vmatmul.bf16.gmra.mxu0 %v1319
      %v1371 = vpop.f32.mrf.mxu0
      %v1372 = vadd.f32 0.0, %v1371
      %v1373 = vpop.f32.mrf.mxu0
      %v1374 = vadd.f32 0.0, %v1373
      %1375 = vmatmul.bf16.gmra.mxu0 %v1322
      %v1376 = vpop.f32.mrf.mxu0
      %v1377 = vadd.f32 0.0, %v1376
      %v1378 = vpop.f32.mrf.mxu0
      %v1379 = vadd.f32 0.0, %v1378
      %1380 = vdwg.mxu0
      %v1381 = vadd.f32 %v1277, %v1337
      %v1382 = vadd.f32 %v1278, %v1339
      %v1383 = vadd.f32 %v1279, %v1342
      %v1384 = vadd.f32 %v1280, %v1344
      %v1385 = vadd.f32 %v1281, %v1347
      %v1386 = vadd.f32 %v1282, %v1349
      %v1387 = vadd.f32 %v1283, %v1352
      %v1388 = vadd.f32 %v1284, %v1354
      %v1389 = vadd.f32 %v1285, %v1357
      %v1390 = vadd.f32 %v1286, %v1359
      %v1391 = vadd.f32 %v1287, %v1362
      %v1392 = vadd.f32 %v1288, %v1364
      %v1393 = vadd.f32 %v1289, %v1367
      %v1394 = vadd.f32 %v1290, %v1369
      %v1395 = vadd.f32 %v1291, %v1372
      %v1396 = vadd.f32 %v1292, %v1374
      %v1397 = vadd.f32 %v1293, %v1377
      %v1398 = vadd.f32 %v1294, %v1379
      %1399 = vst [vmem:[#allocation2] sm:$0xff] %v1381
      %1400 = vst [vmem:[#allocation2 + $0x8] sm:$0xff] %v1382
      %1401 = vst [vmem:[#allocation2 + $0x10] sm:$0xff] %v1383
      %1402 = vst [vmem:[#allocation2 + $0x18] sm:$0xff] %v1384
      %1403 = vst [vmem:[#allocation2 + $0x20] sm:$0xff] %v1385
      %1404 = vst [vmem:[#allocation2 + $0x28] sm:$0xff] %v1386
      %1405 = vst [vmem:[#allocation2 + $0x30] sm:$0xff] %v1387
      %1406 = vst [vmem:[#allocation2 + $0x38] sm:$0xff] %v1388
      %1407 = vst [vmem:[#allocation2 + $0x40] sm:$0xff] %v1389
      %1408 = vst [vmem:[#allocation2 + $0x48] sm:$0xff] %v1390
      %1409 = vst [vmem:[#allocation2 + $0x50] sm:$0xff] %v1391
      %1410 = vst [vmem:[#allocation2 + $0x58] sm:$0xff] %v1392
      %1411 = vst [vmem:[#allocation2 + $0x60] sm:$0xff] %v1393
      %1412 = vst [vmem:[#allocation2 + $0x68] sm:$0xff] %v1394
      %1413 = vst [vmem:[#allocation2 + $0x70] sm:$0xff] %v1395
      %1414 = vst [vmem:[#allocation2 + $0x78] sm:$0xff] %v1396
      %1415 = vst [vmem:[#allocation2 + $0x80] sm:$0xff] %v1397
      %1416 = vst [vmem:[#allocation2 + $0x88] sm:$0xff] %v1398
      %v1417 = vld [vmem:[%s210 + $0x25] sm:$0xff]
      %v1418 = vld [vmem:[%s210 + $0x2d] sm:$0xff]
      %v1419 = vld [vmem:[%s210 + $0x35] sm:$0xff]
      %v1420 = vld [vmem:[%s210 + $0x3d] sm:$0xff]
      %v1421 = vld [vmem:[%s210 + $0x45] sm:$0xff]
      %v1422 = vld [vmem:[%s210 + $0x4d] sm:$0xff]
      %v1423 = vld [vmem:[%s210 + $0x55] sm:$0xff]
      %v1424 = vld [vmem:[%s210 + $0x5d] sm:$0xff]
      %v1425 = vld [vmem:[%s210 + $0x65] sm:$0xff]
      %v1426 = vld [vmem:[%s210 + $0x6d] sm:$0xff]
      %v1427 = vld [vmem:[%s210 + $0x75] sm:$0xff]
      %v1428 = vld [vmem:[%s210 + $0x7d] sm:$0xff]
      %v1429 = vld [vmem:[%s210 + $0x85] sm:$0xff]
      %v1430 = vld [vmem:[%s210 + $0x8d] sm:$0xff]
      %v1431 = vld [vmem:[%s210 + $0x95] sm:$0xff]
      %v1432 = vld [vmem:[%s210 + $0x9d] sm:$0xff]
      %v1433 = vld [vmem:[%s210 + $0xa5] sm:$0xff]
      %v1434 = vld [vmem:[%s210 + $0xad] sm:$0xff]
      %v1435 = vpack.c.bf16 %v1418, %v1417
      %v1436 = vpack.c.bf16 %v1420, %v1419
      %v1437 = vpack.c.bf16 %v1422, %v1421
      %v1438 = vpack.c.bf16 %v1424, %v1423
      %v1439 = vpack.c.bf16 %v1426, %v1425
      %v1440 = vpack.c.bf16 %v1428, %v1427
      %v1441 = vpack.c.bf16 %v1430, %v1429
      %v1442 = vpack.c.bf16 %v1432, %v1431
      %v1443 = vpack.c.bf16 %v1434, %v1433
      %v1444 = vld [vmem:[#allocation2] sm:$0xff]
      %v1445 = vld [vmem:[#allocation2 + $0x8] sm:$0xff]
      %v1446 = vld [vmem:[#allocation2 + $0x10] sm:$0xff]
      %v1447 = vld [vmem:[#allocation2 + $0x18] sm:$0xff]
      %v1448 = vld [vmem:[#allocation2 + $0x20] sm:$0xff]
      %v1449 = vld [vmem:[#allocation2 + $0x28] sm:$0xff]
      %v1450 = vld [vmem:[#allocation2 + $0x30] sm:$0xff]
      %v1451 = vld [vmem:[#allocation2 + $0x38] sm:$0xff]
      %v1452 = vld [vmem:[#allocation2 + $0x40] sm:$0xff]
      %v1453 = vld [vmem:[#allocation2 + $0x48] sm:$0xff]
      %v1454 = vld [vmem:[#allocation2 + $0x50] sm:$0xff]
      %v1455 = vld [vmem:[#allocation2 + $0x58] sm:$0xff]
      %v1456 = vld [vmem:[#allocation2 + $0x60] sm:$0xff]
      %v1457 = vld [vmem:[#allocation2 + $0x68] sm:$0xff]
      %v1458 = vld [vmem:[#allocation2 + $0x70] sm:$0xff]
      %v1459 = vld [vmem:[#allocation2 + $0x78] sm:$0xff]
      %v1460 = vld [vmem:[#allocation2 + $0x80] sm:$0xff]
      %v1461 = vld [vmem:[#allocation2 + $0x88] sm:$0xff]
      %s1462 = scalar_lea.vmem %s1, 14
      %v1463 = vld [vmem:[%s1462] sm:$0x3]
      %v1465 = vsel %vm293, %v1435, 0
      %v1468 = vsel %vm293, %v1436, 0
      %v1471 = vsel %vm293, %v1437, 0
      %v1474 = vsel %vm293, %v1438, 0
      %v1477 = vsel %vm293, %v1439, 0
      %v1480 = vsel %vm293, %v1440, 0
      %v1483 = vsel %vm293, %v1441, 0
      %v1486 = vsel %vm293, %v1442, 0
      %v1489 = vsel %vm293, %v1443, 0
      %v1492 = vsel %vm321, %v1463, 0
      %1494 = vmatpush.bf16.msra.mxu0 0
      %1495 = vmatpush.bf16.msra.mxu0 0
      %1496 = vmatpush.bf16.msra.mxu0 0
      %1497 = vmatpush.bf16.msra.mxu0 0
      %1498 = vmatpush.bf16.msra.mxu0 0
      %1499 = vmatpush.bf16.msra.mxu0 0
      %1500 = vmatpush.bf16.msra.mxu0 0
      %1501 = vmatpush.bf16.msra.mxu0 %v1492
      %1502 = vmatmul.bf16.gmra.mxu0 %v1465
      %v1503 = vpop.f32.mrf.mxu0
      %v1504 = vadd.f32 0.0, %v1503
      %v1505 = vpop.f32.mrf.mxu0
      %v1506 = vadd.f32 0.0, %v1505
      %1507 = vmatmul.bf16.gmra.mxu0 %v1468
      %v1508 = vpop.f32.mrf.mxu0
      %v1509 = vadd.f32 0.0, %v1508
      %v1510 = vpop.f32.mrf.mxu0
      %v1511 = vadd.f32 0.0, %v1510
      %1512 = vmatmul.bf16.gmra.mxu0 %v1471
      %v1513 = vpop.f32.mrf.mxu0
      %v1514 = vadd.f32 0.0, %v1513
      %v1515 = vpop.f32.mrf.mxu0
      %v1516 = vadd.f32 0.0, %v1515
      %1517 = vmatmul.bf16.gmra.mxu0 %v1474
      %v1518 = vpop.f32.mrf.mxu0
      %v1519 = vadd.f32 0.0, %v1518
      %v1520 = vpop.f32.mrf.mxu0
      %v1521 = vadd.f32 0.0, %v1520
      %1522 = vmatmul.bf16.gmra.mxu0 %v1477
      %v1523 = vpop.f32.mrf.mxu0
      %v1524 = vadd.f32 0.0, %v1523
      %v1525 = vpop.f32.mrf.mxu0
      %v1526 = vadd.f32 0.0, %v1525
      %1527 = vmatmul.bf16.gmra.mxu0 %v1480
      %v1528 = vpop.f32.mrf.mxu0
      %v1529 = vadd.f32 0.0, %v1528
      %v1530 = vpop.f32.mrf.mxu0
      %v1531 = vadd.f32 0.0, %v1530
      %1532 = vmatmul.bf16.gmra.mxu0 %v1483
      %v1533 = vpop.f32.mrf.mxu0
      %v1534 = vadd.f32 0.0, %v1533
      %v1535 = vpop.f32.mrf.mxu0
      %v1536 = vadd.f32 0.0, %v1535
      %1537 = vmatmul.bf16.gmra.mxu0 %v1486
      %v1538 = vpop.f32.mrf.mxu0
      %v1539 = vadd.f32 0.0, %v1538
      %v1540 = vpop.f32.mrf.mxu0
      %v1541 = vadd.f32 0.0, %v1540
      %1542 = vmatmul.bf16.gmra.mxu0 %v1489
      %v1543 = vpop.f32.mrf.mxu0
      %v1544 = vadd.f32 0.0, %v1543
      %v1545 = vpop.f32.mrf.mxu0
      %v1546 = vadd.f32 0.0, %v1545
      %1547 = vdwg.mxu0
      %v1548 = vadd.f32 %v1444, %v1504
      %v1549 = vadd.f32 %v1445, %v1506
      %v1550 = vadd.f32 %v1446, %v1509
      %v1551 = vadd.f32 %v1447, %v1511
      %v1552 = vadd.f32 %v1448, %v1514
      %v1553 = vadd.f32 %v1449, %v1516
      %v1554 = vadd.f32 %v1450, %v1519
      %v1555 = vadd.f32 %v1451, %v1521
      %v1556 = vadd.f32 %v1452, %v1524
      %v1557 = vadd.f32 %v1453, %v1526
      %v1558 = vadd.f32 %v1454, %v1529
      %v1559 = vadd.f32 %v1455, %v1531
      %v1560 = vadd.f32 %v1456, %v1534
      %v1561 = vadd.f32 %v1457, %v1536
      %v1562 = vadd.f32 %v1458, %v1539
      %v1563 = vadd.f32 %v1459, %v1541
      %v1564 = vadd.f32 %v1460, %v1544
      %v1565 = vadd.f32 %v1461, %v1546
      %1566 = vst [vmem:[#allocation2] sm:$0xff] %v1548
      %1567 = vst [vmem:[#allocation2 + $0x8] sm:$0xff] %v1549
      %1568 = vst [vmem:[#allocation2 + $0x10] sm:$0xff] %v1550
      %1569 = vst [vmem:[#allocation2 + $0x18] sm:$0xff] %v1551
      %1570 = vst [vmem:[#allocation2 + $0x20] sm:$0xff] %v1552
      %1571 = vst [vmem:[#allocation2 + $0x28] sm:$0xff] %v1553
      %1572 = vst [vmem:[#allocation2 + $0x30] sm:$0xff] %v1554
      %1573 = vst [vmem:[#allocation2 + $0x38] sm:$0xff] %v1555
      %1574 = vst [vmem:[#allocation2 + $0x40] sm:$0xff] %v1556
      %1575 = vst [vmem:[#allocation2 + $0x48] sm:$0xff] %v1557
      %1576 = vst [vmem:[#allocation2 + $0x50] sm:$0xff] %v1558
      %1577 = vst [vmem:[#allocation2 + $0x58] sm:$0xff] %v1559
      %1578 = vst [vmem:[#allocation2 + $0x60] sm:$0xff] %v1560
      %1579 = vst [vmem:[#allocation2 + $0x68] sm:$0xff] %v1561
      %1580 = vst [vmem:[#allocation2 + $0x70] sm:$0xff] %v1562
      %1581 = vst [vmem:[#allocation2 + $0x78] sm:$0xff] %v1563
      %1582 = vst [vmem:[#allocation2 + $0x80] sm:$0xff] %v1564
      %1583 = vst [vmem:[#allocation2 + $0x88] sm:$0xff] %v1565
      %v1584 = vld [vmem:[%s210 + $0x26] sm:$0xff]
      %v1585 = vld [vmem:[%s210 + $0x2e] sm:$0xff]
      %v1586 = vld [vmem:[%s210 + $0x36] sm:$0xff]
      %v1587 = vld [vmem:[%s210 + $0x3e] sm:$0xff]
      %v1588 = vld [vmem:[%s210 + $0x46] sm:$0xff]
      %v1589 = vld [vmem:[%s210 + $0x4e] sm:$0xff]
      %v1590 = vld [vmem:[%s210 + $0x56] sm:$0xff]
      %v1591 = vld [vmem:[%s210 + $0x5e] sm:$0xff]
      %v1592 = vld [vmem:[%s210 + $0x66] sm:$0xff]
      %v1593 = vld [vmem:[%s210 + $0x6e] sm:$0xff]
      %v1594 = vld [vmem:[%s210 + $0x76] sm:$0xff]
      %v1595 = vld [vmem:[%s210 + $0x7e] sm:$0xff]
      %v1596 = vld [vmem:[%s210 + $0x86] sm:$0xff]
      %v1597 = vld [vmem:[%s210 + $0x8e] sm:$0xff]
      %v1598 = vld [vmem:[%s210 + $0x96] sm:$0xff]
      %v1599 = vld [vmem:[%s210 + $0x9e] sm:$0xff]
      %v1600 = vld [vmem:[%s210 + $0xa6] sm:$0xff]
      %v1601 = vld [vmem:[%s210 + $0xae] sm:$0xff]
      %v1602 = vpack.c.bf16 %v1585, %v1584
      %v1603 = vpack.c.bf16 %v1587, %v1586
      %v1604 = vpack.c.bf16 %v1589, %v1588
      %v1605 = vpack.c.bf16 %v1591, %v1590
      %v1606 = vpack.c.bf16 %v1593, %v1592
      %v1607 = vpack.c.bf16 %v1595, %v1594
      %v1608 = vpack.c.bf16 %v1597, %v1596
      %v1609 = vpack.c.bf16 %v1599, %v1598
      %v1610 = vpack.c.bf16 %v1601, %v1600
      %v1611 = vld [vmem:[#allocation2] sm:$0xff]
      %v1612 = vld [vmem:[#allocation2 + $0x8] sm:$0xff]
      %v1613 = vld [vmem:[#allocation2 + $0x10] sm:$0xff]
      %v1614 = vld [vmem:[#allocation2 + $0x18] sm:$0xff]
      %v1615 = vld [vmem:[#allocation2 + $0x20] sm:$0xff]
      %v1616 = vld [vmem:[#allocation2 + $0x28] sm:$0xff]
      %v1617 = vld [vmem:[#allocation2 + $0x30] sm:$0xff]
      %v1618 = vld [vmem:[#allocation2 + $0x38] sm:$0xff]
      %v1619 = vld [vmem:[#allocation2 + $0x40] sm:$0xff]
      %v1620 = vld [vmem:[#allocation2 + $0x48] sm:$0xff]
      %v1621 = vld [vmem:[#allocation2 + $0x50] sm:$0xff]
      %v1622 = vld [vmem:[#allocation2 + $0x58] sm:$0xff]
      %v1623 = vld [vmem:[#allocation2 + $0x60] sm:$0xff]
      %v1624 = vld [vmem:[#allocation2 + $0x68] sm:$0xff]
      %v1625 = vld [vmem:[#allocation2 + $0x70] sm:$0xff]
      %v1626 = vld [vmem:[#allocation2 + $0x78] sm:$0xff]
      %v1627 = vld [vmem:[#allocation2 + $0x80] sm:$0xff]
      %v1628 = vld [vmem:[#allocation2 + $0x88] sm:$0xff]
      %s1629 = scalar_lea.vmem %s1, 16
      %v1630 = vld [vmem:[%s1629] sm:$0x3]
      %v1632 = vsel %vm293, %v1602, 0
      %v1635 = vsel %vm293, %v1603, 0
      %v1638 = vsel %vm293, %v1604, 0
      %v1641 = vsel %vm293, %v1605, 0
      %v1644 = vsel %vm293, %v1606, 0
      %v1647 = vsel %vm293, %v1607, 0
      %v1650 = vsel %vm293, %v1608, 0
      %v1653 = vsel %vm293, %v1609, 0
      %v1656 = vsel %vm293, %v1610, 0
      %v1659 = vsel %vm321, %v1630, 0
      %1661 = vmatpush.bf16.msra.mxu0 0
      %1662 = vmatpush.bf16.msra.mxu0 0
      %1663 = vmatpush.bf16.msra.mxu0 0
      %1664 = vmatpush.bf16.msra.mxu0 0
      %1665 = vmatpush.bf16.msra.mxu0 0
      %1666 = vmatpush.bf16.msra.mxu0 0
      %1667 = vmatpush.bf16.msra.mxu0 0
      %1668 = vmatpush.bf16.msra.mxu0 %v1659
      %1669 = vmatmul.bf16.gmra.mxu0 %v1632
      %v1670 = vpop.f32.mrf.mxu0
      %v1671 = vadd.f32 0.0, %v1670
      %v1672 = vpop.f32.mrf.mxu0
      %v1673 = vadd.f32 0.0, %v1672
      %1674 = vmatmul.bf16.gmra.mxu0 %v1635
      %v1675 = vpop.f32.mrf.mxu0
      %v1676 = vadd.f32 0.0, %v1675
      %v1677 = vpop.f32.mrf.mxu0
      %v1678 = vadd.f32 0.0, %v1677
      %1679 = vmatmul.bf16.gmra.mxu0 %v1638
      %v1680 = vpop.f32.mrf.mxu0
      %v1681 = vadd.f32 0.0, %v1680
      %v1682 = vpop.f32.mrf.mxu0
      %v1683 = vadd.f32 0.0, %v1682
      %1684 = vmatmul.bf16.gmra.mxu0 %v1641
      %v1685 = vpop.f32.mrf.mxu0
      %v1686 = vadd.f32 0.0, %v1685
      %v1687 = vpop.f32.mrf.mxu0
      %v1688 = vadd.f32 0.0, %v1687
      %1689 = vmatmul.bf16.gmra.mxu0 %v1644
      %v1690 = vpop.f32.mrf.mxu0
      %v1691 = vadd.f32 0.0, %v1690
      %v1692 = vpop.f32.mrf.mxu0
      %v1693 = vadd.f32 0.0, %v1692
      %1694 = vmatmul.bf16.gmra.mxu0 %v1647
      %v1695 = vpop.f32.mrf.mxu0
      %v1696 = vadd.f32 0.0, %v1695
      %v1697 = vpop.f32.mrf.mxu0
      %v1698 = vadd.f32 0.0, %v1697
      %1699 = vmatmul.bf16.gmra.mxu0 %v1650
      %v1700 = vpop.f32.mrf.mxu0
      %v1701 = vadd.f32 0.0, %v1700
      %v1702 = vpop.f32.mrf.mxu0
      %v1703 = vadd.f32 0.0, %v1702
      %1704 = vmatmul.bf16.gmra.mxu0 %v1653
      %v1705 = vpop.f32.mrf.mxu0
      %v1706 = vadd.f32 0.0, %v1705
      %v1707 = vpop.f32.mrf.mxu0
      %v1708 = vadd.f32 0.0, %v1707
      %1709 = vmatmul.bf16.gmra.mxu0 %v1656
      %v1710 = vpop.f32.mrf.mxu0
      %v1711 = vadd.f32 0.0, %v1710
      %v1712 = vpop.f32.mrf.mxu0
      %v1713 = vadd.f32 0.0, %v1712
      %1714 = vdwg.mxu0
      %v1715 = vadd.f32 %v1611, %v1671
      %v1716 = vadd.f32 %v1612, %v1673
      %v1717 = vadd.f32 %v1613, %v1676
      %v1718 = vadd.f32 %v1614, %v1678
      %v1719 = vadd.f32 %v1615, %v1681
      %v1720 = vadd.f32 %v1616, %v1683
      %v1721 = vadd.f32 %v1617, %v1686
      %v1722 = vadd.f32 %v1618, %v1688
      %v1723 = vadd.f32 %v1619, %v1691
      %v1724 = vadd.f32 %v1620, %v1693
      %v1725 = vadd.f32 %v1621, %v1696
      %v1726 = vadd.f32 %v1622, %v1698
      %v1727 = vadd.f32 %v1623, %v1701
      %v1728 = vadd.f32 %v1624, %v1703
      %v1729 = vadd.f32 %v1625, %v1706
      %v1730 = vadd.f32 %v1626, %v1708
      %v1731 = vadd.f32 %v1627, %v1711
      %v1732 = vadd.f32 %v1628, %v1713
      %1733 = vst [vmem:[#allocation2] sm:$0xff] %v1715
      %1734 = vst [vmem:[#allocation2 + $0x8] sm:$0xff] %v1716
      %1735 = vst [vmem:[#allocation2 + $0x10] sm:$0xff] %v1717
      %1736 = vst [vmem:[#allocation2 + $0x18] sm:$0xff] %v1718
      %1737 = vst [vmem:[#allocation2 + $0x20] sm:$0xff] %v1719
      %1738 = vst [vmem:[#allocation2 + $0x28] sm:$0xff] %v1720
      %1739 = vst [vmem:[#allocation2 + $0x30] sm:$0xff] %v1721
      %1740 = vst [vmem:[#allocation2 + $0x38] sm:$0xff] %v1722
      %1741 = vst [vmem:[#allocation2 + $0x40] sm:$0xff] %v1723
      %1742 = vst [vmem:[#allocation2 + $0x48] sm:$0xff] %v1724
      %1743 = vst [vmem:[#allocation2 + $0x50] sm:$0xff] %v1725
      %1744 = vst [vmem:[#allocation2 + $0x58] sm:$0xff] %v1726
      %1745 = vst [vmem:[#allocation2 + $0x60] sm:$0xff] %v1727
      %1746 = vst [vmem:[#allocation2 + $0x68] sm:$0xff] %v1728
      %1747 = vst [vmem:[#allocation2 + $0x70] sm:$0xff] %v1729
      %1748 = vst [vmem:[#allocation2 + $0x78] sm:$0xff] %v1730
      %1749 = vst [vmem:[#allocation2 + $0x80] sm:$0xff] %v1731
      %1750 = vst [vmem:[#allocation2 + $0x88] sm:$0xff] %v1732
      %v1751 = vld [vmem:[#allocation2] sm:$0xff]
      %v1752 = vld [vmem:[#allocation2 + $0x8] sm:$0xff]
      %v1753 = vld [vmem:[#allocation2 + $0x10] sm:$0xff]
      %v1754 = vld [vmem:[#allocation2 + $0x18] sm:$0xff]
      %v1755 = vld [vmem:[#allocation2 + $0x20] sm:$0xff]
      %v1756 = vld [vmem:[#allocation2 + $0x28] sm:$0xff]
      %v1757 = vld [vmem:[#allocation2 + $0x30] sm:$0xff]
      %v1758 = vld [vmem:[#allocation2 + $0x38] sm:$0xff]
      %v1759 = vld [vmem:[#allocation2 + $0x40] sm:$0xff]
      %v1760 = vld [vmem:[#allocation2 + $0x48] sm:$0xff]
      %v1761 = vld [vmem:[#allocation2 + $0x50] sm:$0xff]
      %v1762 = vld [vmem:[#allocation2 + $0x58] sm:$0xff]
      %v1763 = vld [vmem:[#allocation2 + $0x60] sm:$0xff]
      %v1764 = vld [vmem:[#allocation2 + $0x68] sm:$0xff]
      %v1765 = vld [vmem:[#allocation2 + $0x70] sm:$0xff]
      %v1766 = vld [vmem:[#allocation2 + $0x78] sm:$0xff]
      %v1767 = vld [vmem:[#allocation2 + $0x80] sm:$0xff]
      %v1768 = vld [vmem:[#allocation2 + $0x88] sm:$0xff]
      %v1769 = vlaneseq
      %v1770 = vshrl.u32 %v1769, 7
      %v1771 = vadd.s32 %v1770, 8
      %v1772 = vadd.s32 %v1770, 16
      %v1773 = vadd.s32 %v1770, 24
      %v1774 = vadd.s32 %v1770, 32
      %v1775 = vadd.s32 %v1770, 40
      %v1776 = vadd.s32 %v1770, 48
      %v1777 = vadd.s32 %v1770, 56
      %v1778 = vadd.s32 %v1770, 64
      %v1779 = vadd.s32 %v1770, 72
      %v1780 = vadd.s32 %v1770, 80
      %v1781 = vadd.s32 %v1770, 88
      %v1782 = vadd.s32 %v1770, 96
      %v1783 = vadd.s32 %v1770, 104
      %v1784 = vadd.s32 %v1770, 112
      %v1785 = vadd.s32 %v1770, 120
      %v1786 = vadd.s32 %v1770, 128
      %v1787 = vadd.s32 %v1770, 136
      %vm1788 = vcmp.lt.s32.totalorder %v1770, 0
      %v1789 = vsub.s32 0, %v1770
      %v1790 = vsel %vm1788, %v1789, %v1770
      %v1791 = vand.u32 %v1790, 65535
      %v1792 = vshrl.u32 %v1790, 16
      %v1794 = vmul.u32 %v1791, 14564
      %v1795 = vmul.u32 %v1791, 58254
      %v1796 = vmul.u32 %v1792, 14564
      %v1797 = vmul.u32 %v1792, 58254
      %v1798 = vshll.u32 %v1795, 16
      %v1799 = vshrl.u32 %v1795, 16
      %v1800 = vshll.u32 %v1796, 16
      %v1801 = vshrl.u32 %v1796, 16
      %vm1802 = vc.u32 %v1794, %v1798
      %v1803 = vsel %vm1802, 1, 0
      %v1804 = vadd.s32 %v1794, %v1798
      %v1805 = vadd.s32 %v1797, %v1803
      %vm1806 = vc.u32 %v1804, %v1800
      %v1807 = vsel %vm1806, 1, 0
      %v1808 = vadd.s32 %v1804, %v1800
      %v1809 = vadd.s32 %v1805, %v1807
      %v1810 = vadd.s32 %v1809, %v1799
      %v1811 = vadd.s32 %v1810, %v1801
      %v1812 = vshrl.u32 %v1811, 4
      %v1813 = vmul.u32 %v1812, 18
      %v1814 = vsub.s32 %v1790, %v1813
      %v1815 = vsub.s32 0, %v1814
      %v1816 = vsel %vm1788, %v1815, %v1814
      %vm1817 = vcmp.lt.s32.totalorder %v1771, 0
      %v1818 = vsub.s32 0, %v1771
      %v1819 = vsel %vm1817, %v1818, %v1771
      %v1820 = vand.u32 %v1819, 65535
      %v1821 = vshrl.u32 %v1819, 16
      %v1823 = vmul.u32 %v1820, 14564
      %v1824 = vmul.u32 %v1820, 58254
      %v1825 = vmul.u32 %v1821, 14564
      %v1826 = vmul.u32 %v1821, 58254
      %v1827 = vshll.u32 %v1824, 16
      %v1828 = vshrl.u32 %v1824, 16
      %v1829 = vshll.u32 %v1825, 16
      %v1830 = vshrl.u32 %v1825, 16
      %vm1831 = vc.u32 %v1823, %v1827
      %v1832 = vsel %vm1831, 1, 0
      %v1833 = vadd.s32 %v1823, %v1827
      %v1834 = vadd.s32 %v1826, %v1832
      %vm1835 = vc.u32 %v1833, %v1829
      %v1836 = vsel %vm1835, 1, 0
      %v1837 = vadd.s32 %v1833, %v1829
      %v1838 = vadd.s32 %v1834, %v1836
      %v1839 = vadd.s32 %v1838, %v1828
      %v1840 = vadd.s32 %v1839, %v1830
      %v1841 = vshrl.u32 %v1840, 4
      %v1842 = vmul.u32 %v1841, 18
      %v1843 = vsub.s32 %v1819, %v1842
      %v1844 = vsub.s32 0, %v1843
      %v1845 = vsel %vm1817, %v1844, %v1843
      %vm1846 = vcmp.lt.s32.totalorder %v1772, 0
      %v1847 = vsub.s32 0, %v1772
      %v1848 = vsel %vm1846, %v1847, %v1772
      %v1849 = vand.u32 %v1848, 65535
      %v1850 = vshrl.u32 %v1848, 16
      %v1852 = vmul.u32 %v1849, 14564
      %v1853 = vmul.u32 %v1849, 58254
      %v1854 = vmul.u32 %v1850, 14564
      %v1855 = vmul.u32 %v1850, 58254
      %v1856 = vshll.u32 %v1853, 16
      %v1857 = vshrl.u32 %v1853, 16
      %v1858 = vshll.u32 %v1854, 16
      %v1859 = vshrl.u32 %v1854, 16
      %vm1860 = vc.u32 %v1852, %v1856
      %v1861 = vsel %vm1860, 1, 0
      %v1862 = vadd.s32 %v1852, %v1856
      %v1863 = vadd.s32 %v1855, %v1861
      %vm1864 = vc.u32 %v1862, %v1858
      %v1865 = vsel %vm1864, 1, 0
      %v1866 = vadd.s32 %v1862, %v1858
      %v1867 = vadd.s32 %v1863, %v1865
      %v1868 = vadd.s32 %v1867, %v1857
      %v1869 = vadd.s32 %v1868, %v1859
      %v1870 = vshrl.u32 %v1869, 4
      %v1871 = vmul.u32 %v1870, 18
      %v1872 = vsub.s32 %v1848, %v1871
      %v1873 = vsub.s32 0, %v1872
      %v1874 = vsel %vm1846, %v1873, %v1872
      %vm1875 = vcmp.lt.s32.totalorder %v1773, 0
      %v1876 = vsub.s32 0, %v1773
      %v1877 = vsel %vm1875, %v1876, %v1773
      %v1878 = vand.u32 %v1877, 65535
      %v1879 = vshrl.u32 %v1877, 16
      %v1881 = vmul.u32 %v1878, 14564
      %v1882 = vmul.u32 %v1878, 58254
      %v1883 = vmul.u32 %v1879, 14564
      %v1884 = vmul.u32 %v1879, 58254
      %v1885 = vshll.u32 %v1882, 16
      %v1886 = vshrl.u32 %v1882, 16
      %v1887 = vshll.u32 %v1883, 16
      %v1888 = vshrl.u32 %v1883, 16
      %vm1889 = vc.u32 %v1881, %v1885
      %v1890 = vsel %vm1889, 1, 0
      %v1891 = vadd.s32 %v1881, %v1885
      %v1892 = vadd.s32 %v1884, %v1890
      %vm1893 = vc.u32 %v1891, %v1887
      %v1894 = vsel %vm1893, 1, 0
      %v1895 = vadd.s32 %v1891, %v1887
      %v1896 = vadd.s32 %v1892, %v1894
      %v1897 = vadd.s32 %v1896, %v1886
      %v1898 = vadd.s32 %v1897, %v1888
      %v1899 = vshrl.u32 %v1898, 4
      %v1900 = vmul.u32 %v1899, 18
      %v1901 = vsub.s32 %v1877, %v1900
      %v1902 = vsub.s32 0, %v1901
      %v1903 = vsel %vm1875, %v1902, %v1901
      %vm1904 = vcmp.lt.s32.totalorder %v1774, 0
      %v1905 = vsub.s32 0, %v1774
      %v1906 = vsel %vm1904, %v1905, %v1774
      %v1907 = vand.u32 %v1906, 65535
      %v1908 = vshrl.u32 %v1906, 16
      %v1910 = vmul.u32 %v1907, 14564
      %v1911 = vmul.u32 %v1907, 58254
      %v1912 = vmul.u32 %v1908, 14564
      %v1913 = vmul.u32 %v1908, 58254
      %v1914 = vshll.u32 %v1911, 16
      %v1915 = vshrl.u32 %v1911, 16
      %v1916 = vshll.u32 %v1912, 16
      %v1917 = vshrl.u32 %v1912, 16
      %vm1918 = vc.u32 %v1910, %v1914
      %v1919 = vsel %vm1918, 1, 0
      %v1920 = vadd.s32 %v1910, %v1914
      %v1921 = vadd.s32 %v1913, %v1919
      %vm1922 = vc.u32 %v1920, %v1916
      %v1923 = vsel %vm1922, 1, 0
      %v1924 = vadd.s32 %v1920, %v1916
      %v1925 = vadd.s32 %v1921, %v1923
      %v1926 = vadd.s32 %v1925, %v1915
      %v1927 = vadd.s32 %v1926, %v1917
      %v1928 = vshrl.u32 %v1927, 4
      %v1929 = vmul.u32 %v1928, 18
      %v1930 = vsub.s32 %v1906, %v1929
      %v1931 = vsub.s32 0, %v1930
      %v1932 = vsel %vm1904, %v1931, %v1930
      %vm1933 = vcmp.lt.s32.totalorder %v1775, 0
      %v1934 = vsub.s32 0, %v1775
      %v1935 = vsel %vm1933, %v1934, %v1775
      %v1936 = vand.u32 %v1935, 65535
      %v1937 = vshrl.u32 %v1935, 16
      %v1939 = vmul.u32 %v1936, 14564
      %v1940 = vmul.u32 %v1936, 58254
      %v1941 = vmul.u32 %v1937, 14564
      %v1942 = vmul.u32 %v1937, 58254
      %v1943 = vshll.u32 %v1940, 16
      %v1944 = vshrl.u32 %v1940, 16
      %v1945 = vshll.u32 %v1941, 16
      %v1946 = vshrl.u32 %v1941, 16
      %vm1947 = vc.u32 %v1939, %v1943
      %v1948 = vsel %vm1947, 1, 0
      %v1949 = vadd.s32 %v1939, %v1943
      %v1950 = vadd.s32 %v1942, %v1948
      %vm1951 = vc.u32 %v1949, %v1945
      %v1952 = vsel %vm1951, 1, 0
      %v1953 = vadd.s32 %v1949, %v1945
      %v1954 = vadd.s32 %v1950, %v1952
      %v1955 = vadd.s32 %v1954, %v1944
      %v1956 = vadd.s32 %v1955, %v1946
      %v1957 = vshrl.u32 %v1956, 4
      %v1958 = vmul.u32 %v1957, 18
      %v1959 = vsub.s32 %v1935, %v1958
      %v1960 = vsub.s32 0, %v1959
      %v1961 = vsel %vm1933, %v1960, %v1959
      %vm1962 = vcmp.lt.s32.totalorder %v1776, 0
      %v1963 = vsub.s32 0, %v1776
      %v1964 = vsel %vm1962, %v1963, %v1776
      %v1965 = vand.u32 %v1964, 65535
      %v1966 = vshrl.u32 %v1964, 16
      %v1968 = vmul.u32 %v1965, 14564
      %v1969 = vmul.u32 %v1965, 58254
      %v1970 = vmul.u32 %v1966, 14564
      %v1971 = vmul.u32 %v1966, 58254
      %v1972 = vshll.u32 %v1969, 16
      %v1973 = vshrl.u32 %v1969, 16
      %v1974 = vshll.u32 %v1970, 16
      %v1975 = vshrl.u32 %v1970, 16
      %vm1976 = vc.u32 %v1968, %v1972
      %v1977 = vsel %vm1976, 1, 0
      %v1978 = vadd.s32 %v1968, %v1972
      %v1979 = vadd.s32 %v1971, %v1977
      %vm1980 = vc.u32 %v1978, %v1974
      %v1981 = vsel %vm1980, 1, 0
      %v1982 = vadd.s32 %v1978, %v1974
      %v1983 = vadd.s32 %v1979, %v1981
      %v1984 = vadd.s32 %v1983, %v1973
      %v1985 = vadd.s32 %v1984, %v1975
      %v1986 = vshrl.u32 %v1985, 4
      %v1987 = vmul.u32 %v1986, 18
      %v1988 = vsub.s32 %v1964, %v1987
      %v1989 = vsub.s32 0, %v1988
      %v1990 = vsel %vm1962, %v1989, %v1988
      %vm1991 = vcmp.lt.s32.totalorder %v1777, 0
      %v1992 = vsub.s32 0, %v1777
      %v1993 = vsel %vm1991, %v1992, %v1777
      %v1994 = vand.u32 %v1993, 65535
      %v1995 = vshrl.u32 %v1993, 16
      %v1997 = vmul.u32 %v1994, 14564
      %v1998 = vmul.u32 %v1994, 58254
      %v1999 = vmul.u32 %v1995, 14564
      %v2000 = vmul.u32 %v1995, 58254
      %v2001 = vshll.u32 %v1998, 16
      %v2002 = vshrl.u32 %v1998, 16
      %v2003 = vshll.u32 %v1999, 16
      %v2004 = vshrl.u32 %v1999, 16
      %vm2005 = vc.u32 %v1997, %v2001
      %v2006 = vsel %vm2005, 1, 0
      %v2007 = vadd.s32 %v1997, %v2001
      %v2008 = vadd.s32 %v2000, %v2006
      %vm2009 = vc.u32 %v2007, %v2003
      %v2010 = vsel %vm2009, 1, 0
      %v2011 = vadd.s32 %v2007, %v2003
      %v2012 = vadd.s32 %v2008, %v2010
      %v2013 = vadd.s32 %v2012, %v2002
      %v2014 = vadd.s32 %v2013, %v2004
      %v2015 = vshrl.u32 %v2014, 4
      %v2016 = vmul.u32 %v2015, 18
      %v2017 = vsub.s32 %v1993, %v2016
      %v2018 = vsub.s32 0, %v2017
      %v2019 = vsel %vm1991, %v2018, %v2017
      %vm2020 = vcmp.lt.s32.totalorder %v1778, 0
      %v2021 = vsub.s32 0, %v1778
      %v2022 = vsel %vm2020, %v2021, %v1778
      %v2023 = vand.u32 %v2022, 65535
      %v2024 = vshrl.u32 %v2022, 16
      %v2026 = vmul.u32 %v2023, 14564
      %v2027 = vmul.u32 %v2023, 58254
      %v2028 = vmul.u32 %v2024, 14564
      %v2029 = vmul.u32 %v2024, 58254
      %v2030 = vshll.u32 %v2027, 16
      %v2031 = vshrl.u32 %v2027, 16
      %v2032 = vshll.u32 %v2028, 16
      %v2033 = vshrl.u32 %v2028, 16
      %vm2034 = vc.u32 %v2026, %v2030
      %v2035 = vsel %vm2034, 1, 0
      %v2036 = vadd.s32 %v2026, %v2030
      %v2037 = vadd.s32 %v2029, %v2035
      %vm2038 = vc.u32 %v2036, %v2032
      %v2039 = vsel %vm2038, 1, 0
      %v2040 = vadd.s32 %v2036, %v2032
      %v2041 = vadd.s32 %v2037, %v2039
      %v2042 = vadd.s32 %v2041, %v2031
      %v2043 = vadd.s32 %v2042, %v2033
      %v2044 = vshrl.u32 %v2043, 4
      %v2045 = vmul.u32 %v2044, 18
      %v2046 = vsub.s32 %v2022, %v2045
      %v2047 = vsub.s32 0, %v2046
      %v2048 = vsel %vm2020, %v2047, %v2046
      %vm2049 = vcmp.lt.s32.totalorder %v1779, 0
      %v2050 = vsub.s32 0, %v1779
      %v2051 = vsel %vm2049, %v2050, %v1779
      %v2052 = vand.u32 %v2051, 65535
      %v2053 = vshrl.u32 %v2051, 16
      %v2055 = vmul.u32 %v2052, 14564
      %v2056 = vmul.u32 %v2052, 58254
      %v2057 = vmul.u32 %v2053, 14564
      %v2058 = vmul.u32 %v2053, 58254
      %v2059 = vshll.u32 %v2056, 16
      %v2060 = vshrl.u32 %v2056, 16
      %v2061 = vshll.u32 %v2057, 16
      %v2062 = vshrl.u32 %v2057, 16
      %vm2063 = vc.u32 %v2055, %v2059
      %v2064 = vsel %vm2063, 1, 0
      %v2065 = vadd.s32 %v2055, %v2059
      %v2066 = vadd.s32 %v2058, %v2064
      %vm2067 = vc.u32 %v2065, %v2061
      %v2068 = vsel %vm2067, 1, 0
      %v2069 = vadd.s32 %v2065, %v2061
      %v2070 = vadd.s32 %v2066, %v2068
      %v2071 = vadd.s32 %v2070, %v2060
      %v2072 = vadd.s32 %v2071, %v2062
      %v2073 = vshrl.u32 %v2072, 4
      %v2074 = vmul.u32 %v2073, 18
      %v2075 = vsub.s32 %v2051, %v2074
      %v2076 = vsub.s32 0, %v2075
      %v2077 = vsel %vm2049, %v2076, %v2075
      %vm2078 = vcmp.lt.s32.totalorder %v1780, 0
      %v2079 = vsub.s32 0, %v1780
      %v2080 = vsel %vm2078, %v2079, %v1780
      %v2081 = vand.u32 %v2080, 65535
      %v2082 = vshrl.u32 %v2080, 16
      %v2084 = vmul.u32 %v2081, 14564
      %v2085 = vmul.u32 %v2081, 58254
      %v2086 = vmul.u32 %v2082, 14564
      %v2087 = vmul.u32 %v2082, 58254
      %v2088 = vshll.u32 %v2085, 16
      %v2089 = vshrl.u32 %v2085, 16
      %v2090 = vshll.u32 %v2086, 16
      %v2091 = vshrl.u32 %v2086, 16
      %vm2092 = vc.u32 %v2084, %v2088
      %v2093 = vsel %vm2092, 1, 0
      %v2094 = vadd.s32 %v2084, %v2088
      %v2095 = vadd.s32 %v2087, %v2093
      %vm2096 = vc.u32 %v2094, %v2090
      %v2097 = vsel %vm2096, 1, 0
      %v2098 = vadd.s32 %v2094, %v2090
      %v2099 = vadd.s32 %v2095, %v2097
      %v2100 = vadd.s32 %v2099, %v2089
      %v2101 = vadd.s32 %v2100, %v2091
      %v2102 = vshrl.u32 %v2101, 4
      %v2103 = vmul.u32 %v2102, 18
      %v2104 = vsub.s32 %v2080, %v2103
      %v2105 = vsub.s32 0, %v2104
      %v2106 = vsel %vm2078, %v2105, %v2104
      %vm2107 = vcmp.lt.s32.totalorder %v1781, 0
      %v2108 = vsub.s32 0, %v1781
      %v2109 = vsel %vm2107, %v2108, %v1781
      %v2110 = vand.u32 %v2109, 65535
      %v2111 = vshrl.u32 %v2109, 16
      %v2113 = vmul.u32 %v2110, 14564
      %v2114 = vmul.u32 %v2110, 58254
      %v2115 = vmul.u32 %v2111, 14564
      %v2116 = vmul.u32 %v2111, 58254
      %v2117 = vshll.u32 %v2114, 16
      %v2118 = vshrl.u32 %v2114, 16
      %v2119 = vshll.u32 %v2115, 16
      %v2120 = vshrl.u32 %v2115, 16
      %vm2121 = vc.u32 %v2113, %v2117
      %v2122 = vsel %vm2121, 1, 0
      %v2123 = vadd.s32 %v2113, %v2117
      %v2124 = vadd.s32 %v2116, %v2122
      %vm2125 = vc.u32 %v2123, %v2119
      %v2126 = vsel %vm2125, 1, 0
      %v2127 = vadd.s32 %v2123, %v2119
      %v2128 = vadd.s32 %v2124, %v2126
      %v2129 = vadd.s32 %v2128, %v2118
      %v2130 = vadd.s32 %v2129, %v2120
      %v2131 = vshrl.u32 %v2130, 4
      %v2132 = vmul.u32 %v2131, 18
      %v2133 = vsub.s32 %v2109, %v2132
      %v2134 = vsub.s32 0, %v2133
      %v2135 = vsel %vm2107, %v2134, %v2133
      %vm2136 = vcmp.lt.s32.totalorder %v1782, 0
      %v2137 = vsub.s32 0, %v1782
      %v2138 = vsel %vm2136, %v2137, %v1782
      %v2139 = vand.u32 %v2138, 65535
      %v2140 = vshrl.u32 %v2138, 16
      %v2142 = vmul.u32 %v2139, 14564
      %v2143 = vmul.u32 %v2139, 58254
      %v2144 = vmul.u32 %v2140, 14564
      %v2145 = vmul.u32 %v2140, 58254
      %v2146 = vshll.u32 %v2143, 16
      %v2147 = vshrl.u32 %v2143, 16
      %v2148 = vshll.u32 %v2144, 16
      %v2149 = vshrl.u32 %v2144, 16
      %vm2150 = vc.u32 %v2142, %v2146
      %v2151 = vsel %vm2150, 1, 0
      %v2152 = vadd.s32 %v2142, %v2146
      %v2153 = vadd.s32 %v2145, %v2151
      %vm2154 = vc.u32 %v2152, %v2148
      %v2155 = vsel %vm2154, 1, 0
      %v2156 = vadd.s32 %v2152, %v2148
      %v2157 = vadd.s32 %v2153, %v2155
      %v2158 = vadd.s32 %v2157, %v2147
      %v2159 = vadd.s32 %v2158, %v2149
      %v2160 = vshrl.u32 %v2159, 4
      %v2161 = vmul.u32 %v2160, 18
      %v2162 = vsub.s32 %v2138, %v2161
      %v2163 = vsub.s32 0, %v2162
      %v2164 = vsel %vm2136, %v2163, %v2162
      %vm2165 = vcmp.lt.s32.totalorder %v1783, 0
      %v2166 = vsub.s32 0, %v1783
      %v2167 = vsel %vm2165, %v2166, %v1783
      %v2168 = vand.u32 %v2167, 65535
      %v2169 = vshrl.u32 %v2167, 16
      %v2171 = vmul.u32 %v2168, 14564
      %v2172 = vmul.u32 %v2168, 58254
      %v2173 = vmul.u32 %v2169, 14564
      %v2174 = vmul.u32 %v2169, 58254
      %v2175 = vshll.u32 %v2172, 16
      %v2176 = vshrl.u32 %v2172, 16
      %v2177 = vshll.u32 %v2173, 16
      %v2178 = vshrl.u32 %v2173, 16
      %vm2179 = vc.u32 %v2171, %v2175
      %v2180 = vsel %vm2179, 1, 0
      %v2181 = vadd.s32 %v2171, %v2175
      %v2182 = vadd.s32 %v2174, %v2180
      %vm2183 = vc.u32 %v2181, %v2177
      %v2184 = vsel %vm2183, 1, 0
      %v2185 = vadd.s32 %v2181, %v2177
      %v2186 = vadd.s32 %v2182, %v2184
      %v2187 = vadd.s32 %v2186, %v2176
      %v2188 = vadd.s32 %v2187, %v2178
      %v2189 = vshrl.u32 %v2188, 4
      %v2190 = vmul.u32 %v2189, 18
      %v2191 = vsub.s32 %v2167, %v2190
      %v2192 = vsub.s32 0, %v2191
      %v2193 = vsel %vm2165, %v2192, %v2191
      %vm2194 = vcmp.lt.s32.totalorder %v1784, 0
      %v2195 = vsub.s32 0, %v1784
      %v2196 = vsel %vm2194, %v2195, %v1784
      %v2197 = vand.u32 %v2196, 65535
      %v2198 = vshrl.u32 %v2196, 16
      %v2200 = vmul.u32 %v2197, 14564
      %v2201 = vmul.u32 %v2197, 58254
      %v2202 = vmul.u32 %v2198, 14564
      %v2203 = vmul.u32 %v2198, 58254
      %v2204 = vshll.u32 %v2201, 16
      %v2205 = vshrl.u32 %v2201, 16
      %v2206 = vshll.u32 %v2202, 16
      %v2207 = vshrl.u32 %v2202, 16
      %vm2208 = vc.u32 %v2200, %v2204
      %v2209 = vsel %vm2208, 1, 0
      %v2210 = vadd.s32 %v2200, %v2204
      %v2211 = vadd.s32 %v2203, %v2209
      %vm2212 = vc.u32 %v2210, %v2206
      %v2213 = vsel %vm2212, 1, 0
      %v2214 = vadd.s32 %v2210, %v2206
      %v2215 = vadd.s32 %v2211, %v2213
      %v2216 = vadd.s32 %v2215, %v2205
      %v2217 = vadd.s32 %v2216, %v2207
      %v2218 = vshrl.u32 %v2217, 4
      %v2219 = vmul.u32 %v2218, 18
      %v2220 = vsub.s32 %v2196, %v2219
      %v2221 = vsub.s32 0, %v2220
      %v2222 = vsel %vm2194, %v2221, %v2220
      %vm2223 = vcmp.lt.s32.totalorder %v1785, 0
      %v2224 = vsub.s32 0, %v1785
      %v2225 = vsel %vm2223, %v2224, %v1785
      %v2226 = vand.u32 %v2225, 65535
      %v2227 = vshrl.u32 %v2225, 16
      %v2229 = vmul.u32 %v2226, 14564
      %v2230 = vmul.u32 %v2226, 58254
      %v2231 = vmul.u32 %v2227, 14564
      %v2232 = vmul.u32 %v2227, 58254
      %v2233 = vshll.u32 %v2230, 16
      %v2234 = vshrl.u32 %v2230, 16
      %v2235 = vshll.u32 %v2231, 16
      %v2236 = vshrl.u32 %v2231, 16
      %vm2237 = vc.u32 %v2229, %v2233
      %v2238 = vsel %vm2237, 1, 0
      %v2239 = vadd.s32 %v2229, %v2233
      %v2240 = vadd.s32 %v2232, %v2238
      %vm2241 = vc.u32 %v2239, %v2235
      %v2242 = vsel %vm2241, 1, 0
      %v2243 = vadd.s32 %v2239, %v2235
      %v2244 = vadd.s32 %v2240, %v2242
      %v2245 = vadd.s32 %v2244, %v2234
      %v2246 = vadd.s32 %v2245, %v2236
      %v2247 = vshrl.u32 %v2246, 4
      %v2248 = vmul.u32 %v2247, 18
      %v2249 = vsub.s32 %v2225, %v2248
      %v2250 = vsub.s32 0, %v2249
      %v2251 = vsel %vm2223, %v2250, %v2249
      %vm2252 = vcmp.lt.s32.totalorder %v1786, 0
      %v2253 = vsub.s32 0, %v1786
      %v2254 = vsel %vm2252, %v2253, %v1786
      %v2255 = vand.u32 %v2254, 65535
      %v2256 = vshrl.u32 %v2254, 16
      %v2258 = vmul.u32 %v2255, 14564
      %v2259 = vmul.u32 %v2255, 58254
      %v2260 = vmul.u32 %v2256, 14564
      %v2261 = vmul.u32 %v2256, 58254
      %v2262 = vshll.u32 %v2259, 16
      %v2263 = vshrl.u32 %v2259, 16
      %v2264 = vshll.u32 %v2260, 16
      %v2265 = vshrl.u32 %v2260, 16
      %vm2266 = vc.u32 %v2258, %v2262
      %v2267 = vsel %vm2266, 1, 0
      %v2268 = vadd.s32 %v2258, %v2262
      %v2269 = vadd.s32 %v2261, %v2267
      %vm2270 = vc.u32 %v2268, %v2264
      %v2271 = vsel %vm2270, 1, 0
      %v2272 = vadd.s32 %v2268, %v2264
      %v2273 = vadd.s32 %v2269, %v2271
      %v2274 = vadd.s32 %v2273, %v2263
      %v2275 = vadd.s32 %v2274, %v2265
      %v2276 = vshrl.u32 %v2275, 4
      %v2277 = vmul.u32 %v2276, 18
      %v2278 = vsub.s32 %v2254, %v2277
      %v2279 = vsub.s32 0, %v2278
      %v2280 = vsel %vm2252, %v2279, %v2278
      %vm2281 = vcmp.lt.s32.totalorder %v1787, 0
      %v2282 = vsub.s32 0, %v1787
      %v2283 = vsel %vm2281, %v2282, %v1787
      %v2284 = vand.u32 %v2283, 65535
      %v2285 = vshrl.u32 %v2283, 16
      %v2287 = vmul.u32 %v2284, 14564
      %v2288 = vmul.u32 %v2284, 58254
      %v2289 = vmul.u32 %v2285, 14564
      %v2290 = vmul.u32 %v2285, 58254
      %v2291 = vshll.u32 %v2288, 16
      %v2292 = vshrl.u32 %v2288, 16
      %v2293 = vshll.u32 %v2289, 16
      %v2294 = vshrl.u32 %v2289, 16
      %vm2295 = vc.u32 %v2287, %v2291
      %v2296 = vsel %vm2295, 1, 0
      %v2297 = vadd.s32 %v2287, %v2291
      %v2298 = vadd.s32 %v2290, %v2296
      %vm2299 = vc.u32 %v2297, %v2293
      %v2300 = vsel %vm2299, 1, 0
      %v2301 = vadd.s32 %v2297, %v2293
      %v2302 = vadd.s32 %v2298, %v2300
      %v2303 = vadd.s32 %v2302, %v2292
      %v2304 = vadd.s32 %v2303, %v2294
      %v2305 = vshrl.u32 %v2304, 4
      %v2306 = vmul.u32 %v2305, 18
      %v2307 = vsub.s32 %v2283, %v2306
      %v2308 = vsub.s32 0, %v2307
      %v2309 = vsel %vm2281, %v2308, %v2307
      %vm2310 = vcmp.ne.s32.totalorder %v1816, 0
      %vm2311 = vcmp.ne.s32.totalorder %v1845, 0
      %vm2312 = vcmp.ne.s32.totalorder %v1874, 0
      %vm2313 = vcmp.ne.s32.totalorder %v1903, 0
      %vm2314 = vcmp.ne.s32.totalorder %v1932, 0
      %vm2315 = vcmp.ne.s32.totalorder %v1961, 0
      %vm2316 = vcmp.ne.s32.totalorder %v1990, 0
      %vm2317 = vcmp.ne.s32.totalorder %v2019, 0
      %vm2318 = vcmp.ne.s32.totalorder %v2048, 0
      %vm2319 = vcmp.ne.s32.totalorder %v2077, 0
      %vm2320 = vcmp.ne.s32.totalorder %v2106, 0
      %vm2321 = vcmp.ne.s32.totalorder %v2135, 0
      %vm2322 = vcmp.ne.s32.totalorder %v2164, 0
      %vm2323 = vcmp.ne.s32.totalorder %v2193, 0
      %vm2324 = vcmp.ne.s32.totalorder %v2222, 0
      %vm2325 = vcmp.ne.s32.totalorder %v2251, 0
      %vm2326 = vcmp.ne.s32.totalorder %v2280, 0
      %vm2327 = vcmp.ne.s32.totalorder %v2309, 0
      %vm2328 = vcmp.lt.s32.totalorder %v1816, 0
      %vm2329 = vcmp.lt.s32.totalorder %v1845, 0
      %vm2330 = vcmp.lt.s32.totalorder %v1874, 0
      %vm2331 = vcmp.lt.s32.totalorder %v1903, 0
      %vm2332 = vcmp.lt.s32.totalorder %v1932, 0
      %vm2333 = vcmp.lt.s32.totalorder %v1961, 0
      %vm2334 = vcmp.lt.s32.totalorder %v1990, 0
      %vm2335 = vcmp.lt.s32.totalorder %v2019, 0
      %vm2336 = vcmp.lt.s32.totalorder %v2048, 0
      %vm2337 = vcmp.lt.s32.totalorder %v2077, 0
      %vm2338 = vcmp.lt.s32.totalorder %v2106, 0
      %vm2339 = vcmp.lt.s32.totalorder %v2135, 0
      %vm2340 = vcmp.lt.s32.totalorder %v2164, 0
      %vm2341 = vcmp.lt.s32.totalorder %v2193, 0
      %vm2342 = vcmp.lt.s32.totalorder %v2222, 0
      %vm2343 = vcmp.lt.s32.totalorder %v2251, 0
      %vm2344 = vcmp.lt.s32.totalorder %v2280, 0
      %vm2345 = vcmp.lt.s32.totalorder %v2309, 0
      %vm2346 = vmand %vm2328, %vm2310
      %vm2347 = vmand %vm2329, %vm2311
      %vm2348 = vmand %vm2330, %vm2312
      %vm2349 = vmand %vm2331, %vm2313
      %vm2350 = vmand %vm2332, %vm2314
      %vm2351 = vmand %vm2333, %vm2315
      %vm2352 = vmand %vm2334, %vm2316
      %vm2353 = vmand %vm2335, %vm2317
      %vm2354 = vmand %vm2336, %vm2318
      %vm2355 = vmand %vm2337, %vm2319
      %vm2356 = vmand %vm2338, %vm2320
      %vm2357 = vmand %vm2339, %vm2321
      %vm2358 = vmand %vm2340, %vm2322
      %vm2359 = vmand %vm2341, %vm2323
      %vm2360 = vmand %vm2342, %vm2324
      %vm2361 = vmand %vm2343, %vm2325
      %vm2362 = vmand %vm2344, %vm2326
      %vm2363 = vmand %vm2345, %vm2327
      %v2364 = vadd.s32 %v1816, 18
      %v2365 = vadd.s32 %v1845, 18
      %v2366 = vadd.s32 %v1874, 18
      %v2367 = vadd.s32 %v1903, 18
      %v2368 = vadd.s32 %v1932, 18
      %v2369 = vadd.s32 %v1961, 18
      %v2370 = vadd.s32 %v1990, 18
      %v2371 = vadd.s32 %v2019, 18
      %v2372 = vadd.s32 %v2048, 18
      %v2373 = vadd.s32 %v2077, 18
      %v2374 = vadd.s32 %v2106, 18
      %v2375 = vadd.s32 %v2135, 18
      %v2376 = vadd.s32 %v2164, 18
      %v2377 = vadd.s32 %v2193, 18
      %v2378 = vadd.s32 %v2222, 18
      %v2379 = vadd.s32 %v2251, 18
      %v2380 = vadd.s32 %v2280, 18
      %v2381 = vadd.s32 %v2309, 18
      %v2382 = vsel %vm2346, %v2364, %v1816
      %v2383 = vsel %vm2347, %v2365, %v1845
      %v2384 = vsel %vm2348, %v2366, %v1874
      %v2385 = vsel %vm2349, %v2367, %v1903
      %v2386 = vsel %vm2350, %v2368, %v1932
      %v2387 = vsel %vm2351, %v2369, %v1961
      %v2388 = vsel %vm2352, %v2370, %v1990
      %v2389 = vsel %vm2353, %v2371, %v2019
      %v2390 = vsel %vm2354, %v2372, %v2048
      %v2391 = vsel %vm2355, %v2373, %v2077
      %v2392 = vsel %vm2356, %v2374, %v2106
      %v2393 = vsel %vm2357, %v2375, %v2135
      %v2394 = vsel %vm2358, %v2376, %v2164
      %v2395 = vsel %vm2359, %v2377, %v2193
      %v2396 = vsel %vm2360, %v2378, %v2222
      %v2397 = vsel %vm2361, %v2379, %v2251
      %v2398 = vsel %vm2362, %v2380, %v2280
      %v2399 = vsel %vm2363, %v2381, %v2309
      %vm2400 = vcmp.lt.s32.totalorder %v2382, 16
      %vm2401 = vcmp.lt.s32.totalorder %v2383, 16
      %vm2402 = vcmp.lt.s32.totalorder %v2384, 16
      %vm2403 = vcmp.lt.s32.totalorder %v2385, 16
      %vm2404 = vcmp.lt.s32.totalorder %v2386, 16
      %vm2405 = vcmp.lt.s32.totalorder %v2387, 16
      %vm2406 = vcmp.lt.s32.totalorder %v2388, 16
      %vm2407 = vcmp.lt.s32.totalorder %v2389, 16
      %vm2408 = vcmp.lt.s32.totalorder %v2390, 16
      %vm2409 = vcmp.lt.s32.totalorder %v2391, 16
      %vm2410 = vcmp.lt.s32.totalorder %v2392, 16
      %vm2411 = vcmp.lt.s32.totalorder %v2393, 16
      %vm2412 = vcmp.lt.s32.totalorder %v2394, 16
      %vm2413 = vcmp.lt.s32.totalorder %v2395, 16
      %vm2414 = vcmp.lt.s32.totalorder %v2396, 16
      %vm2415 = vcmp.lt.s32.totalorder %v2397, 16
      %vm2416 = vcmp.lt.s32.totalorder %v2398, 16
      %vm2417 = vcmp.lt.s32.totalorder %v2399, 16
      %v2418 = vsel %vm2400, 1, 0
      %v2419 = vsel %vm2401, 1, 0
      %v2420 = vsel %vm2402, 1, 0
      %v2421 = vsel %vm2403, 1, 0
      %v2422 = vsel %vm2404, 1, 0
      %v2423 = vsel %vm2405, 1, 0
      %v2424 = vsel %vm2406, 1, 0
      %v2425 = vsel %vm2407, 1, 0
      %v2426 = vsel %vm2408, 1, 0
      %v2427 = vsel %vm2409, 1, 0
      %v2428 = vsel %vm2410, 1, 0
      %v2429 = vsel %vm2411, 1, 0
      %v2430 = vsel %vm2412, 1, 0
      %v2431 = vsel %vm2413, 1, 0
      %v2432 = vsel %vm2414, 1, 0
      %v2433 = vsel %vm2415, 1, 0
      %v2434 = vsel %vm2416, 1, 0
      %v2435 = vsel %vm2417, 1, 0
      %v2436 = vcvt.s32.f32 %v2418
      %v2437 = vcvt.s32.f32 %v2419
      %v2438 = vcvt.s32.f32 %v2420
      %v2439 = vcvt.s32.f32 %v2421
      %v2440 = vcvt.s32.f32 %v2422
      %v2441 = vcvt.s32.f32 %v2423
      %v2442 = vcvt.s32.f32 %v2424
      %v2443 = vcvt.s32.f32 %v2425
      %v2444 = vcvt.s32.f32 %v2426
      %v2445 = vcvt.s32.f32 %v2427
      %v2446 = vcvt.s32.f32 %v2428
      %v2447 = vcvt.s32.f32 %v2429
      %v2448 = vcvt.s32.f32 %v2430
      %v2449 = vcvt.s32.f32 %v2431
      %v2450 = vcvt.s32.f32 %v2432
      %v2451 = vcvt.s32.f32 %v2433
      %v2452 = vcvt.s32.f32 %v2434
      %v2453 = vcvt.s32.f32 %v2435
      %v2454 = vmul.f32 %v1751, %v2436
      %v2455 = vmul.f32 %v1752, %v2437
      %v2456 = vmul.f32 %v1753, %v2438
      %v2457 = vmul.f32 %v1754, %v2439
      %v2458 = vmul.f32 %v1755, %v2440
      %v2459 = vmul.f32 %v1756, %v2441
      %v2460 = vmul.f32 %v1757, %v2442
      %v2461 = vmul.f32 %v1758, %v2443
      %v2462 = vmul.f32 %v1759, %v2444
      %v2463 = vmul.f32 %v1760, %v2445
      %v2464 = vmul.f32 %v1761, %v2446
      %v2465 = vmul.f32 %v1762, %v2447
      %v2466 = vmul.f32 %v1763, %v2448
      %v2467 = vmul.f32 %v1764, %v2449
      %v2468 = vmul.f32 %v1765, %v2450
      %v2469 = vmul.f32 %v1766, %v2451
      %v2470 = vmul.f32 %v1767, %v2452
      %v2471 = vmul.f32 %v1768, %v2453
      %v2472 = vadd.f32 %v2454, %v2455
      %v2473 = vadd.f32 %v2472, %v2456
      %v2474 = vadd.f32 %v2473, %v2457
      %v2475 = vadd.f32 %v2474, %v2458
      %v2476 = vadd.f32 %v2475, %v2459
      %v2477 = vadd.f32 %v2476, %v2460
      %v2478 = vadd.f32 %v2477, %v2461
      %v2479 = vadd.f32 %v2478, %v2462
      %v2480 = vadd.f32 %v2479, %v2463
      %v2481 = vadd.f32 %v2480, %v2464
      %v2482 = vadd.f32 %v2481, %v2465
      %v2483 = vadd.f32 %v2482, %v2466
      %v2484 = vadd.f32 %v2483, %v2467
      %v2485 = vadd.f32 %v2484, %v2468
      %v2486 = vadd.f32 %v2485, %v2469
      %v2487 = vadd.f32 %v2486, %v2470
      %v2488 = vadd.f32 %v2487, %v2471
      %v2489 = vrot.slane %v2488, 4
      %v2490 = vadd.f32 %v2488, %v2489
      %v2491 = vrot.slane %v2490, 2
      %v2492 = vadd.f32 %v2490, %v2491
      %v2493 = vrot.slane %v2492, 1
      %v2494 = vadd.f32 %v2492, %v2493
      %2495 = vst [vmem:[%s227] sm:$0x1] %v2494
      %v2496 = vmul.f32 %v2454, %v1751
      %v2497 = vmul.f32 %v2455, %v1752
      %v2498 = vmul.f32 %v2456, %v1753
      %v2499 = vmul.f32 %v2457, %v1754
      %v2500 = vmul.f32 %v2458, %v1755
      %v2501 = vmul.f32 %v2459, %v1756
      %v2502 = vmul.f32 %v2460, %v1757
      %v2503 = vmul.f32 %v2461, %v1758
      %v2504 = vmul.f32 %v2462, %v1759
      %v2505 = vmul.f32 %v2463, %v1760
      %v2506 = vmul.f32 %v2464, %v1761
      %v2507 = vmul.f32 %v2465, %v1762
      %v2508 = vmul.f32 %v2466, %v1763
      %v2509 = vmul.f32 %v2467, %v1764
      %v2510 = vmul.f32 %v2468, %v1765
      %v2511 = vmul.f32 %v2469, %v1766
      %v2512 = vmul.f32 %v2470, %v1767
      %v2513 = vmul.f32 %v2471, %v1768
      %v2514 = vadd.f32 %v2496, %v2497
      %v2515 = vadd.f32 %v2514, %v2498
      %v2516 = vadd.f32 %v2515, %v2499
      %v2517 = vadd.f32 %v2516, %v2500
      %v2518 = vadd.f32 %v2517, %v2501
      %v2519 = vadd.f32 %v2518, %v2502
      %v2520 = vadd.f32 %v2519, %v2503
      %v2521 = vadd.f32 %v2520, %v2504
      %v2522 = vadd.f32 %v2521, %v2505
      %v2523 = vadd.f32 %v2522, %v2506
      %v2524 = vadd.f32 %v2523, %v2507
      %v2525 = vadd.f32 %v2524, %v2508
      %v2526 = vadd.f32 %v2525, %v2509
      %v2527 = vadd.f32 %v2526, %v2510
      %v2528 = vadd.f32 %v2527, %v2511
      %v2529 = vadd.f32 %v2528, %v2512
      %v2530 = vadd.f32 %v2529, %v2513
      %v2531 = vrot.slane %v2530, 4
      %v2532 = vadd.f32 %v2530, %v2531
      %v2533 = vrot.slane %v2532, 2
      %v2534 = vadd.f32 %v2532, %v2533
      %v2535 = vrot.slane %v2534, 1
      %v2536 = vadd.f32 %v2534, %v2535
      %2537 = vst [vmem:[%s227 + $0x1] sm:$0x1] %v2536
      %2538 = vst [vmem:[%s219] sm:$0xff] %v1751
      %2539 = vst [vmem:[%s219 + $0x8] sm:$0xff] %v1752
      %2540 = vst [vmem:[%s219 + $0x10] sm:$0xff] %v1753
      %2541 = vst [vmem:[%s219 + $0x18] sm:$0xff] %v1754
      %2542 = vst [vmem:[%s219 + $0x20] sm:$0xff] %v1755
      %2543 = vst [vmem:[%s219 + $0x28] sm:$0xff] %v1756
      %2544 = vst [vmem:[%s219 + $0x30] sm:$0xff] %v1757
      %2545 = vst [vmem:[%s219 + $0x38] sm:$0xff] %v1758
      %2546 = vst [vmem:[%s219 + $0x40] sm:$0xff] %v1759
      %2547 = vst [vmem:[%s219 + $0x48] sm:$0xff] %v1760
      %2548 = vst [vmem:[%s219 + $0x50] sm:$0xff] %v1761
      %2549 = vst [vmem:[%s219 + $0x58] sm:$0xff] %v1762
      %2550 = vst [vmem:[%s219 + $0x60] sm:$0xff] %v1763
      %2551 = vst [vmem:[%s219 + $0x68] sm:$0xff] %v1764
      %2552 = vst [vmem:[%s219 + $0x70] sm:$0xff] %v1765
      %2553 = vst [vmem:[%s219 + $0x78] sm:$0xff] %v1766
      %2554 = vst [vmem:[%s219 + $0x80] sm:$0xff] %v1767
      %2555 = vst [vmem:[%s219 + $0x88] sm:$0xff] %v1768
      %p2556 = scmp.lt.s32.totalorder %s19, 1
      %s2557 = scalar_select %p2556, %s19, 1
      %p2558 = scmp.lt.s32.totalorder %s20, 1
      %s2559 = scalar_select %p2558, %s20, 1
      %s2560 = smul.addr %s2559, 18
      %s2561 = smul.addr %s2557, 36
      %s2562 = sadd.s32 %s2560, %s2561
      %s2563 = smul.addr %s2562, 8
      %s2564 = scalar_lea.vmem %s2, %s2563
      %p2565 = scmp.lt.s32.totalorder %s19, 1
      %s2566 = scalar_select %p2565, %s19, 1
      %p2567 = scmp.lt.s32.totalorder %s20, 1
      %s2568 = scalar_select %p2567, %s20, 1
      %s2569 = smul.addr %s2566, 2
      %s2570 = sadd.s32 %s2568, %s2569
      %s2571 = smul.addr %s2570, 2
      %s2572 = scalar_lea.vmem %s3, %s2571
      // Predicated region
      $region29: #{conv_bn_relu.2} parent=27 // pred_check
        %p2573 = pneg %p96
      $region30: #{conv_bn_relu.2} parent=27 // pred_check_branch
        %2575 = sbr.rel (%p2573) target = $region32
      $region31: #{conv_bn_relu.2} parent=27 // pred_region
        _
      $region32: #{conv_bn_relu.2} parent=27 // pred_fallthru
        _
      // Predicated region
      $region33: #{conv_bn_relu.2} parent=27 // pred_check
        %p2576 = pneg %p124
      $region34: #{conv_bn_relu.2} parent=27 // pred_check_branch
        %2578 = sbr.rel (%p2576) target = $region36
      $region35: #{conv_bn_relu.2} parent=27 // pred_region
        _
      $region36: #{conv_bn_relu.2} parent=27 // pred_fallthru
        _
    $region28: #{conv_bn_relu.2} parent=5 // pred_fallthru
      _
    %p2579 = scmp.le.s32.totalorder 2, %s10
    // Predicated region
    $region37: #{conv_bn_relu.2} parent=5 // pred_check
      %p2580 = pneg %p2579
    $region38: #{conv_bn_relu.2} parent=5 // pred_check_branch
      %2582 = sbr.rel (%p2580) target = $region40
    $region39: #{conv_bn_relu.2} parent=5 // pred_region
      %s2583 = ssub.s32 %s10, 2
      // Predicated region
      $region41: #{conv_bn_relu.2} parent=39 // pred_check
        %p2584 = pneg %p102
      $region42: #{conv_bn_relu.2} parent=39 // pred_check_branch
        %2586 = sbr.rel (%p2584) target = $region44
      $region43: #{conv_bn_relu.2} parent=39 // pred_region
        %p2587 = scmp.lt.s32.totalorder %s21, 1
        %s2588 = scalar_select %p2587, %s21, 1
        %p2589 = scmp.lt.s32.totalorder %s22, 1
        %s2590 = scalar_select %p2589, %s22, 1
        %s2591 = smul.addr %s2590, 18
        %s2592 = smul.addr %s2588, 36
        %s2593 = sadd.s32 %s2591, %s2592
        %s2594 = smul.addr %s2593, 8
        %s2595 = scalar_lea.vmem %s2, %s2594
      $region44: #{conv_bn_relu.2} parent=39 // pred_fallthru
        _
      // Predicated region
      $region45: #{conv_bn_relu.2} parent=39 // pred_check
        %p2596 = pneg %p130
      $region46: #{conv_bn_relu.2} parent=39 // pred_check_branch
        %2598 = sbr.rel (%p2596) target = $region48
      $region47: #{conv_bn_relu.2} parent=39 // pred_region
        %p2599 = scmp.lt.s32.totalorder %s21, 1
        %s2600 = scalar_select %p2599, %s21, 1
        %p2601 = scmp.lt.s32.totalorder %s22, 1
        %s2602 = scalar_select %p2601, %s22, 1
        %s2603 = smul.addr %s2600, 2
        %s2604 = sadd.s32 %s2602, %s2603
        %s2605 = smul.addr %s2604, 2
        %s2606 = scalar_lea.vmem %s3, %s2605
      $region48: #{conv_bn_relu.2} parent=39 // pred_fallthru
        _
    $region40: #{conv_bn_relu.2} parent=5 // pred_fallthru
      _
  $region6: #{conv_bn_relu.2} parent=0 // loop_footer
    %s14 = sadd.s32 1, %s10
  $region7: #{conv_bn_relu.2} parent=0 // loop_footer_branch
    %9 = sbr.rel target = $region3
  $region8: #{conv_bn_relu.2} parent=0 // loop_exit
    _

</llo_original>
